<compile_context>
chip_gen: v7x
topology: tpu7x:2x2x1
jax: 0.10.0
libtpu: 0.0.40
codegen_flags: <defaults>
</compile_context>

<pallas_src>
import functools

import jax
import jax.numpy as jnp
from jax import lax
from jax.experimental import pallas as pl
from jax.experimental.pallas import tpu as pltpu

EPS = 1e-5


def _round_up(x, m):
    return (x + m - 1) // m * m


@functools.lru_cache(maxsize=None)
def _vmem_limit_bytes():
    """Generation-aware scoped-VMEM budget (v7x: 64 MiB phys, v5e/v6e: 128 MiB)."""
    cap = 64 * 1024 * 1024
    try:
        cap = int(pltpu.get_tpu_info().vmem_capacity_bytes)
    except Exception:
        pass
    return int(min(max(cap - 16 * 1024 * 1024, 32 * 1024 * 1024),
                   100 * 1024 * 1024))


def _pick_tiles(M, K, Np):
    """Large-TM, lane-dense-TN, full-K tiling with a VMEM-budget check."""
    TN = 256 if Np % 256 == 0 else 128
    if M >= 512:
        TM = 512
    elif M >= 8:
        TM = (M // 8) * 8            # ragged tail handled by Pallas edge masking
    else:
        TM = M                       # full-extent block (tiny M)

    budget = _vmem_limit_bytes() - (8 << 20)

    def footprint(tm):
        # double-buffered bf16 streams + double-buffered bf16 out + f32 temps
        stream = 2 * 2 * (tm * K + K * TN + tm * TN + TN)
        return stream + 2 * 2 * tm * TN + 8 * tm * TN

    while TM > 128 and footprint(TM) > budget:
        TM = max(128, ((TM // 2) // 8) * 8)

    # Guarantee >=2 parallel (M, N) blocks when possible (v7x has 2 TensorCores).
    if (pl.cdiv(M, TM) * (Np // TN)) < 2 and M > 8:
        TM = min(TM, max(8, _round_up((M + 1) // 2, 8)))
    return TM, TN


# ----------------------------- Pallas kernels ------------------------------

def _gemm_kernel(p_ref, w_ref, b_ref, o_ref, *, apply_relu):
    acc = jnp.dot(p_ref[...], w_ref[...], preferred_element_type=jnp.float32)
    acc = acc + b_ref[...]
    if apply_relu:
        acc = jnp.maximum(acc, 0.0)
    o_ref[...] = acc.astype(o_ref.dtype)


def _gemm_res_kernel(p_ref, w_ref, b_ref, r_ref, o_ref, *, apply_relu):
    acc = jnp.dot(p_ref[...], w_ref[...], preferred_element_type=jnp.float32)
    acc = acc + b_ref[...] + r_ref[...].astype(jnp.float32)
    if apply_relu:
        acc = jnp.maximum(acc, 0.0)
    o_ref[...] = acc.astype(o_ref.dtype)


def gemm_bias_act(patches, w_mat, bias, residual=None, apply_relu=True):
    """out = act(patches @ w_mat + bias [+ residual]) on the MXU.

    patches  : (M, K)  bf16  (K already zero-filled to w_mat's K)
    w_mat    : (K, Np) bf16  (Np multiple of 128)
    bias     : (1, Np) f32
    residual : (M, Np) bf16 or None
    Returns  : (M, Np) bf16
    """
    M, K = patches.shape
    Kw, Np = w_mat.shape
    assert K == Kw and Np % 128 == 0

    TM, TN = _pick_tiles(M, K, Np)
    grid = (pl.cdiv(M, TM), Np // TN)

    in_specs = [
        pl.BlockSpec((TM, K), lambda i, j: (i, 0)),
        pl.BlockSpec((K, TN), lambda i, j: (0, j)),
        pl.BlockSpec((1, TN), lambda i, j: (0, j)),
    ]
    args = [patches, w_mat, bias]
    bytes_accessed = M * K * 2 + K * Np * 2 + M * Np * 2 + Np * 4
    if residual is not None:
        in_specs.append(pl.BlockSpec((TM, TN), lambda i, j: (i, j)))
        args.append(residual)
        bytes_accessed += M * Np * 2
        kernel = functools.partial(_gemm_res_kernel, apply_relu=apply_relu)
    else:
        kernel = functools.partial(_gemm_kernel, apply_relu=apply_relu)

    return pl.pallas_call(
        kernel,
        out_shape=jax.ShapeDtypeStruct((M, Np), jnp.bfloat16),
        grid_spec=pltpu.PrefetchScalarGridSpec(
            num_scalar_prefetch=0,
            grid=grid,
            in_specs=in_specs,
            out_specs=pl.BlockSpec((TM, TN), lambda i, j: (i, j)),
        ),
        compiler_params=pltpu.CompilerParams(
            dimension_semantics=("parallel", "parallel"),
            vmem_limit_bytes=_vmem_limit_bytes(),
        ),
        cost_estimate=pl.CostEstimate(
            flops=2 * M * K * Np,
            transcendentals=0,
            bytes_accessed=bytes_accessed,
        ),
    )(*args)


# ------------------------------- JAX glue -----------------------------------

def _build_patches(x_nhwc, kh, kw, stride, pad, k_total, shortcut_src=None):
    """(M, k_total) bf16 patch matrix.

    One fused concatenate builds: the kh*kw taps, the (optional) 1x1 projection
    shortcut channels (fused along K), and explicit zero fill up to the weight
    matrix's padded K (never garbage -> safe under the single-K reduction).
    """
    N, H, W, _ = x_nhwc.shape
    xp = jnp.pad(x_nhwc, ((0, 0), (pad, pad), (pad, pad), (0, 0))) if pad else x_nhwc
    Ho = (H + 2 * pad - kh) // stride + 1
    Wo = (W + 2 * pad - kw) // stride + 1
    cols = []
    for dy in range(kh):
        for dx in range(kw):
            cols.append(xp[:, dy:dy + stride * (Ho - 1) + 1:stride,
                              dx:dx + stride * (Wo - 1) + 1:stride, :])
    if shortcut_src is not None:
        assert shortcut_src.shape[:3] == (N, Ho, Wo)
        cols.append(shortcut_src)
    k_used = sum(c.shape[-1] for c in cols)
    assert k_used <= k_total
    if k_total > k_used:
        cols.append(jnp.zeros((N, Ho, Wo, k_total - k_used), x_nhwc.dtype))
    patches = jnp.concatenate(cols, axis=-1)              # (N, Ho, Wo, k_total)
    return patches.reshape(N * Ho * Wo, k_total), (N, Ho, Wo)


def conv_bn_pallas(x_nhwc, fp, stride, pad, apply_relu,
                   residual_nhwc=None, shortcut_src=None):
    """Conv (im2col + MXU GEMM) with folded BN, fused bias/residual/shortcut/ReLU."""
    patches, (N, Ho, Wo) = _build_patches(
        x_nhwc, fp["kh"], fp["kw"], stride, pad, fp["k_total"], shortcut_src)
    M = N * Ho * Wo
    res = None
    if residual_nhwc is not None:
        res = residual_nhwc.reshape(M, fp["np"])
    out = gemm_bias_act(patches, fp["w_mat"], fp["bias"], res, apply_relu)
    return out.reshape(N, Ho, Wo, fp["np"])               # stays lane-padded


def basic_block_forward(x_nhwc, fp, stride):
    y = conv_bn_pallas(x_nhwc, fp["branch2a"], stride, 1, apply_relu=True)
    if fp["fused_shortcut"]:
        # 1x1 projection shortcut rides the K axis of the branch2b GEMM.
        sc_src = x_nhwc[:, ::stride, ::stride, :]
        return conv_bn_pallas(y, fp["branch2b"], 1, 1, apply_relu=True,
                              shortcut_src=sc_src)
    # identity shortcut: fused residual add inside the branch2b kernel.
    return conv_bn_pallas(y, fp["branch2b"], 1, 1, apply_relu=True,
                          residual_nhwc=x_nhwc)


def sparse_blocks_forward(x_nchw, folded_blocks, stage_num):
    x = jnp.transpose(x_nchw, (0, 2, 3, 1)).astype(jnp.bfloat16)   # NCHW -> NHWC
    for i, fp in enumerate(folded_blocks):
        stride = 2 if (i == 0 and stage_num != 2) else 1
        x = basic_block_forward(x, fp, stride)
    cout = folded_blocks[-1]["branch2b"]["cout"]
    x = x[..., :cout]                                  # strip lane padding once
    return jnp.transpose(x, (0, 3, 1, 2)).astype(jnp.float32)      # NHWC -> NCHW


# ------------------- one-time BN folding / weight packing -------------------

def _fold_conv_bn_raw(p, cin_eff):
    """BN-folded GEMM weights: f32, K = kh*kw*cin_eff, Cout lane-padded to Np."""
    w = p["w"]                                         # (Cout, Cin, kh, kw) OIHW
    cout, cin, kh, kw = w.shape
    scale = p["gamma"] / jnp.sqrt(p["var"] + EPS)
    bias = p["beta"] - p["mean"] * scale
    if cin_eff > cin:                                  # incoming acts are lane-padded
        w = jnp.pad(w, ((0, 0), (0, cin_eff - cin), (0, 0), (0, 0)))
    w_mat = jnp.transpose(w, (2, 3, 1, 0)).reshape(kh * kw * cin_eff, cout)
    w_mat = w_mat * scale[None, :]
    np_ = _round_up(cout, 128)
    w_mat = jnp.pad(w_mat, ((0, 0), (0, np_ - cout)))
    bias = jnp.pad(bias, (0, np_ - cout)).reshape(1, np_).astype(jnp.float32)
    return {"w_mat": w_mat, "bias": bias, "kh": kh, "kw": kw,
            "cout": cout, "np": np_}


def _finalize_conv(w_mat, bias, kh, kw, cout, np_):
    """Pad K to a 128-multiple (explicit zero rows) and cast weights to bf16."""
    k = w_mat.shape[0]
    k_total = _round_up(k, 128)
    w_mat = jnp.pad(w_mat, ((0, k_total - k), (0, 0))).astype(jnp.bfloat16)
    return {"w_mat": w_mat, "bias": bias, "kh": kh, "kw": kw,
            "cout": cout, "np": np_, "k_total": k_total}


def fold_block_params(bp, cin_eff):
    f2a = _fold_conv_bn_raw(bp["branch2a"], cin_eff)
    f2b = _fold_conv_bn_raw(bp["branch2b"], f2a["np"])
    out = {
        "branch2a": _finalize_conv(f2a["w_mat"], f2a["bias"], f2a["kh"],
                                   f2a["kw"], f2a["cout"], f2a["np"]),
        "fused_shortcut": False,
        "np_out": f2b["np"],
    }
    if "short" in bp:
        fsh = _fold_conv_bn_raw(bp["short"], cin_eff)
        assert fsh["np"] == f2b["np"]
        w_comb = jnp.concatenate([f2b["w_mat"], fsh["w_mat"]], axis=0)
        b_comb = f2b["bias"] + fsh["bias"]
        out["branch2b"] = _finalize_conv(w_comb, b_comb, f2b["kh"], f2b["kw"],
                                         f2b["cout"], f2b["np"])
        out["fused_shortcut"] = True
    else:
        out["branch2b"] = _finalize_conv(f2b["w_mat"], f2b["bias"], f2b["kh"],
                                         f2b["kw"], f2b["cout"], f2b["np"])
    return out


def fold_stage_params(blocks_params, ch_in):
    folded, cin_eff = [], ch_in
    for bp in blocks_params:
        fb = fold_block_params(bp, cin_eff)
        folded.append(fb)
        cin_eff = fb["np_out"]        # next block consumes lane-padded activations
    return folded


# -------------------------- parameter construction --------------------------

def init_conv_bn(key, cout, cin, k):
    kw_, kb, km, kv, kg = jax.random.split(key, 5)
    w = jax.random.normal(kw_, (cout, cin, k, k), jnp.float32)
    w = w * (1.0 / (cin * k * k) ** 0.5)
    return {
        "w": w,
        "gamma": 1.0 + 0.1 * jax.random.normal(kg, (cout,), jnp.float32),
        "beta": 0.1 * jax.random.normal(kb, (cout,), jnp.float32),
        "mean": 0.1 * jax.random.normal(km, (cout,), jnp.float32),
        "var": 1.0 + 0.1 * jax.random.uniform(kv, (cout,), jnp.float32),
    }


def init_sparse_blocks(key, ch_in, ch_out, count):
    expansion = 1  # BasicBlock.expansion
    blocks = []
    for i in range(count):
        k = jax.random.fold_in(key, i)
        k2a, k2b, ks = jax.random.split(k, 3)
        bp = {
            "branch2a": init_conv_bn(k2a, ch_out, ch_in, 3),
            "branch2b": init_conv_bn(k2b, ch_out, ch_out, 3),
        }
        if i == 0:
            bp["short"] = init_conv_bn(ks, ch_out, ch_in, 1)
            ch_in = ch_out * expansion
        blocks.append(bp)
    return blocks


# ------------------------- reference (matched precision) --------------------
# lax.conv reference computed at the precision the kernel uses (bf16 folded
# weights / bf16 activations, f32 accumulation & epilogue; projection shortcut
# fused in f32), so the comparison isolates kernel/tiling/fusion correctness.

def conv_bn_ref(x_bf16_nchw, p, stride, pad, relu):
    scale = p["gamma"] / jnp.sqrt(p["var"] + EPS)
    w = (p["w"] * scale[:, None, None, None]).astype(jnp.bfloat16)
    y = lax.conv_general_dilated(
        x_bf16_nchw, w, (stride, stride), [(pad, pad), (pad, pad)],
        dimension_numbers=("NCHW", "OIHW", "NCHW"),
        preferred_element_type=jnp.float32)
    y = y + (p["beta"] - p["mean"] * scale)[None, :, None, None]
    return jnp.maximum(y, 0.0) if relu else y


def sparse_blocks_ref(x_nchw, blocks_params, stage_num):
    x = x_nchw.astype(jnp.bfloat16)
    for i, bp in enumerate(blocks_params):
        stride = 2 if (i == 0 and stage_num != 2) else 1
        y = conv_bn_ref(x, bp["branch2a"], stride, 1, relu=True).astype(jnp.bfloat16)
        y2 = conv_bn_ref(y, bp["branch2b"], 1, 1, relu=False)
        if i == 0:
            sc = conv_bn_ref(x, bp["short"], stride, 0, relu=False)  # f32 (fused in kernel)
        else:
            sc = x.astype(jnp.float32)                               # identity (bf16 value)
        x = jnp.maximum(y2 + sc, 0.0).astype(jnp.bfloat16)
    return x.astype(jnp.float32)


# ---------------------------------- main ------------------------------------

if __name__ == "__main__":
    key = jax.random.PRNGKey(0)
    kx, kp = jax.random.split(key)

    N, CH_IN, H, W = 2, 4, 16, 16
    CH_OUT, COUNT, STAGE_NUM = 8, 2, 3

    x = jax.random.normal(kx, (N, CH_IN, H, W), jnp.float32)   # NCHW
    params = init_sparse_blocks(kp, CH_IN, CH_OUT, COUNT)
    folded = fold_stage_params(params, CH_IN)                  # one-time BN fold

    fwd = jax.jit(lambda inp: sparse_blocks_forward(inp, folded, STAGE_NUM))
    out = jax.block_until_ready(fwd(x))
    ref = jax.block_until_ready(sparse_blocks_ref(x, params, STAGE_NUM))

    assert out.shape == ref.shape == (N, CH_OUT, H // 2, W // 2), out.shape
    max_err = float(jnp.max(jnp.abs(out - ref)))
    assert jnp.allclose(out, ref, rtol=1e-2, atol=1e-2), max_err

    # TODO(synk): prune_input_channel / prune_output_channel /
    # get_output_channel_mask are structural pruning utilities (no
    # forward-time compute) and are not translated.
    print("KERNEL_OK")
</pallas_src>

<mosaic_0001>
module attributes {stable_mosaic.version = 11 : i64} {
  func.func @_gemm_kernel(%arg0: i32, %arg1: i32, %arg2: memref<64x128xbf16, #tpu.memory_space<vmem>>, %arg3: memref<128x128xbf16, #tpu.memory_space<vmem>>, %arg4: memref<1x128xf32, #tpu.memory_space<vmem>>, %arg5: memref<64x128xbf16, #tpu.memory_space<vmem>>) attributes {dimension_semantics = [#tpu.dimension_semantics<parallel>, #tpu.dimension_semantics<parallel>], iteration_bounds = array<i64: 2, 1>, scalar_prefetch = 0 : i64, scratch_operands = 0 : i64, tpu.core_type = #tpu.core_type<tc>, window_params = [{transform_indices = @transform_0, window_bounds = array<i64: 64, 128>}, {transform_indices = @transform_1, window_bounds = array<i64: 128, 128>}, {transform_indices = @transform_2, window_bounds = array<i64: 1, 128>}, {transform_indices = @transform_3, window_bounds = array<i64: 64, 128>}]} {
    %c0 = arith.constant 0 : index
    %c0_0 = arith.constant 0 : index
    %0 = vector.load %arg2[%c0, %c0_0] : memref<64x128xbf16, #tpu.memory_space<vmem>>, vector<64x128xbf16>
    %c0_1 = arith.constant 0 : index
    %c0_2 = arith.constant 0 : index
    %1 = vector.load %arg3[%c0_1, %c0_2] : memref<128x128xbf16, #tpu.memory_space<vmem>>, vector<128x128xbf16>
    %cst = arith.constant dense<0.000000e+00> : vector<64x128xf32>
    %2 = tpu.matmul %0, %1, %cst {dimension_numbers = #tpu.dot_dimension_numbers<[1], [0], [0], [1], [0, 0, 1, 1], [], []>} : vector<64x128xbf16>, vector<128x128xbf16>, vector<64x128xf32> -> vector<64x128xf32>
    %c0_3 = arith.constant 0 : index
    %c0_4 = arith.constant 0 : index
    %3 = vector.load %arg4[%c0_3, %c0_4] : memref<1x128xf32, #tpu.memory_space<vmem>>, vector<1x128xf32>
    %4 = vector.broadcast %3 : vector<1x128xf32> to vector<64x128xf32>
    %5 = arith.addf %2, %4 : vector<64x128xf32>
    %cst_5 = arith.constant 0.000000e+00 : f32
    %6 = vector.broadcast %cst_5 : f32 to vector<64x128xf32>
    %7 = arith.maximumf %5, %6 : vector<64x128xf32>
    %8 = arith.truncf %7 : vector<64x128xf32> to vector<64x128xbf16>
    %c0_6 = arith.constant 0 : index
    %c0_7 = arith.constant 0 : index
    %9 = vector.load %arg5[%c0_6, %c0_7] : memref<64x128xbf16, #tpu.memory_space<vmem>>, vector<64x128xbf16>
    tpu.vector_store %arg5[%c0_6, %c0_7], %8 {strides = array<i32>} : memref<64x128xbf16, #tpu.memory_space<vmem>>, vector<64x128xbf16>,
    return
  }
  func.func @transform_0(%arg0: i32, %arg1: i32) -> (i32, i32) {
    %c0_i32 = arith.constant 0 : i32
    %c0_i32_0 = arith.constant 0 : i32
    return %arg0, %c0_i32 : i32, i32
  }
  func.func @transform_1(%arg0: i32, %arg1: i32) -> (i32, i32) {
    %c0_i32 = arith.constant 0 : i32
    %c0_i32_0 = arith.constant 0 : i32
    return %c0_i32, %arg1 : i32, i32
  }
  func.func @transform_2(%arg0: i32, %arg1: i32) -> (i32, i32) {
    %c0_i32 = arith.constant 0 : i32
    %c0_i32_0 = arith.constant 0 : i32
    return %c0_i32, %arg1 : i32, i32
  }
  func.func @transform_3(%arg0: i32, %arg1: i32) -> (i32, i32) {
    %c0_i32 = arith.constant 0 : i32
    return %arg0, %arg1 : i32, i32
  }
}

module attributes {stable_mosaic.version = 11 : i64} {
  func.func @_gemm_kernel(%arg0: i32, %arg1: i32, %arg2: memref<64x1280xbf16, #tpu.memory_space<vmem>>, %arg3: memref<1280x128xbf16, #tpu.memory_space<vmem>>, %arg4: memref<1x128xf32, #tpu.memory_space<vmem>>, %arg5: memref<64x128xbf16, #tpu.memory_space<vmem>>) attributes {dimension_semantics = [#tpu.dimension_semantics<parallel>, #tpu.dimension_semantics<parallel>], iteration_bounds = array<i64: 2, 1>, scalar_prefetch = 0 : i64, scratch_operands = 0 : i64, tpu.core_type = #tpu.core_type<tc>, window_params = [{transform_indices = @transform_0, window_bounds = array<i64: 64, 1280>}, {transform_indices = @transform_1, window_bounds = array<i64: 1280, 128>}, {transform_indices = @transform_2, window_bounds = array<i64: 1, 128>}, {transform_indices = @transform_3, window_bounds = array<i64: 64, 128>}]} {
    %c0 = arith.constant 0 : index
    %c0_0 = arith.constant 0 : index
    %0 = vector.load %arg2[%c0, %c0_0] : memref<64x1280xbf16, #tpu.memory_space<vmem>>, vector<64x1280xbf16>
    %c0_1 = arith.constant 0 : index
    %c0_2 = arith.constant 0 : index
    %1 = vector.load %arg3[%c0_1, %c0_2] : memref<1280x128xbf16, #tpu.memory_space<vmem>>, vector<1280x128xbf16>
    %cst = arith.constant dense<0.000000e+00> : vector<64x128xf32>
    %2 = tpu.matmul %0, %1, %cst {dimension_numbers = #tpu.dot_dimension_numbers<[1], [0], [0], [1], [0, 0, 1, 1], [], []>} : vector<64x1280xbf16>, vector<1280x128xbf16>, vector<64x128xf32> -> vector<64x128xf32>
    %c0_3 = arith.constant 0 : index
    %c0_4 = arith.constant 0 : index
    %3 = vector.load %arg4[%c0_3, %c0_4] : memref<1x128xf32, #tpu.memory_space<vmem>>, vector<1x128xf32>
    %4 = vector.broadcast %3 : vector<1x128xf32> to vector<64x128xf32>
    %5 = arith.addf %2, %4 : vector<64x128xf32>
    %cst_5 = arith.constant 0.000000e+00 : f32
    %6 = vector.broadcast %cst_5 : f32 to vector<64x128xf32>
    %7 = arith.maximumf %5, %6 : vector<64x128xf32>
    %8 = arith.truncf %7 : vector<64x128xf32> to vector<64x128xbf16>
    %c0_6 = arith.constant 0 : index
    %c0_7 = arith.constant 0 : index
    %9 = vector.load %arg5[%c0_6, %c0_7] : memref<64x128xbf16, #tpu.memory_space<vmem>>, vector<64x128xbf16>
    tpu.vector_store %arg5[%c0_6, %c0_7], %8 {strides = array<i32>} : memref<64x128xbf16, #tpu.memory_space<vmem>>, vector<64x128xbf16>,
    return
  }
  func.func @transform_0(%arg0: i32, %arg1: i32) -> (i32, i32) {
    %c0_i32 = arith.constant 0 : i32
    %c0_i32_0 = arith.constant 0 : i32
    return %arg0, %c0_i32 : i32, i32
  }
  func.func @transform_1(%arg0: i32, %arg1: i32) -> (i32, i32) {
    %c0_i32 = arith.constant 0 : i32
    %c0_i32_0 = arith.constant 0 : i32
    return %c0_i32, %arg1 : i32, i32
  }
  func.func @transform_2(%arg0: i32, %arg1: i32) -> (i32, i32) {
    %c0_i32 = arith.constant 0 : i32
    %c0_i32_0 = arith.constant 0 : i32
    return %c0_i32, %arg1 : i32, i32
  }
  func.func @transform_3(%arg0: i32, %arg1: i32) -> (i32, i32) {
    %c0_i32 = arith.constant 0 : i32
    return %arg0, %arg1 : i32, i32
  }
}

module attributes {stable_mosaic.version = 11 : i64} {
  func.func @_gemm_res_kernel(%arg0: i32, %arg1: i32, %arg2: memref<64x1152xbf16, #tpu.memory_space<vmem>>, %arg3: memref<1152x128xbf16, #tpu.memory_space<vmem>>, %arg4: memref<1x128xf32, #tpu.memory_space<vmem>>, %arg5: memref<64x128xbf16, #tpu.memory_space<vmem>>, %arg6: memref<64x128xbf16, #tpu.memory_space<vmem>>) attributes {dimension_semantics = [#tpu.dimension_semantics<parallel>, #tpu.dimension_semantics<parallel>], iteration_bounds = array<i64: 2, 1>, scalar_prefetch = 0 : i64, scratch_operands = 0 : i64, tpu.core_type = #tpu.core_type<tc>, window_params = [{transform_indices = @transform_0, window_bounds = array<i64: 64, 1152>}, {transform_indices = @transform_1, window_bounds = array<i64: 1152, 128>}, {transform_indices = @transform_2, window_bounds = array<i64: 1, 128>}, {transform_indices = @transform_3, window_bounds = array<i64: 64, 128>}, {transform_indices = @transform_4, window_bounds = array<i64: 64, 128>}]} {
    %c0 = arith.constant 0 : index
    %c0_0 = arith.constant 0 : index
    %0 = vector.load %arg2[%c0, %c0_0] : memref<64x1152xbf16, #tpu.memory_space<vmem>>, vector<64x1152xbf16>
    %c0_1 = arith.constant 0 : index
    %c0_2 = arith.constant 0 : index
    %1 = vector.load %arg3[%c0_1, %c0_2] : memref<1152x128xbf16, #tpu.memory_space<vmem>>, vector<1152x128xbf16>
    %cst = arith.constant dense<0.000000e+00> : vector<64x128xf32>
    %2 = tpu.matmul %0, %1, %cst {dimension_numbers = #tpu.dot_dimension_numbers<[1], [0], [0], [1], [0, 0, 1, 1], [], []>} : vector<64x1152xbf16>, vector<1152x128xbf16>, vector<64x128xf32> -> vector<64x128xf32>
    %c0_3 = arith.constant 0 : index
    %c0_4 = arith.constant 0 : index
    %3 = vector.load %arg4[%c0_3, %c0_4] : memref<1x128xf32, #tpu.memory_space<vmem>>, vector<1x128xf32>
    %4 = vector.broadcast %3 : vector<1x128xf32> to vector<64x128xf32>
    %5 = arith.addf %2, %4 : vector<64x128xf32>
    %c0_5 = arith.constant 0 : index
    %c0_6 = arith.constant 0 : index
    %6 = vector.load %arg5[%c0_5, %c0_6] : memref<64x128xbf16, #tpu.memory_space<vmem>>, vector<64x128xbf16>
    %7 = arith.extf %6 : vector<64x128xbf16> to vector<64x128xf32>
    %8 = arith.addf %5, %7 : vector<64x128xf32>
    %cst_7 = arith.constant 0.000000e+00 : f32
    %9 = vector.broadcast %cst_7 : f32 to vector<64x128xf32>
    %10 = arith.maximumf %8, %9 : vector<64x128xf32>
    %11 = arith.truncf %10 : vector<64x128xf32> to vector<64x128xbf16>
    %c0_8 = arith.constant 0 : index
    %c0_9 = arith.constant 0 : index
    %12 = vector.load %arg6[%c0_8, %c0_9] : memref<64x128xbf16, #tpu.memory_space<vmem>>, vector<64x128xbf16>
    tpu.vector_store %arg6[%c0_8, %c0_9], %11 {strides = array<i32>} : memref<64x128xbf16, #tpu.memory_space<vmem>>, vector<64x128xbf16>,
    return
  }
  func.func @transform_0(%arg0: i32, %arg1: i32) -> (i32, i32) {
    %c0_i32 = arith.constant 0 : i32
    %c0_i32_0 = arith.constant 0 : i32
    return %arg0, %c0_i32 : i32, i32
  }
  func.func @transform_1(%arg0: i32, %arg1: i32) -> (i32, i32) {
    %c0_i32 = arith.constant 0 : i32
    %c0_i32_0 = arith.constant 0 : i32
    return %c0_i32, %arg1 : i32, i32
  }
  func.func @transform_2(%arg0: i32, %arg1: i32) -> (i32, i32) {
    %c0_i32 = arith.constant 0 : i32
    %c0_i32_0 = arith.constant 0 : i32
    return %c0_i32, %arg1 : i32, i32
  }
  func.func @transform_3(%arg0: i32, %arg1: i32) -> (i32, i32) {
    %c0_i32 = arith.constant 0 : i32
    return %arg0, %arg1 : i32, i32
  }
  func.func @transform_4(%arg0: i32, %arg1: i32) -> (i32, i32) {
    %c0_i32 = arith.constant 0 : i32
    return %arg0, %arg1 : i32, i32
  }
}

module attributes {stable_mosaic.version = 11 : i64} {
  func.func @_gemm_kernel(%arg0: i32, %arg1: i32, %arg2: memref<64x1152xbf16, #tpu.memory_space<vmem>>, %arg3: memref<1152x128xbf16, #tpu.memory_space<vmem>>, %arg4: memref<1x128xf32, #tpu.memory_space<vmem>>, %arg5: memref<64x128xbf16, #tpu.memory_space<vmem>>) attributes {dimension_semantics = [#tpu.dimension_semantics<parallel>, #tpu.dimension_semantics<parallel>], iteration_bounds = array<i64: 2, 1>, scalar_prefetch = 0 : i64, scratch_operands = 0 : i64, tpu.core_type = #tpu.core_type<tc>, window_params = [{transform_indices = @transform_0, window_bounds = array<i64: 64, 1152>}, {transform_indices = @transform_1, window_bounds = array<i64: 1152, 128>}, {transform_indices = @transform_2, window_bounds = array<i64: 1, 128>}, {transform_indices = @transform_3, window_bounds = array<i64: 64, 128>}]} {
    %c0 = arith.constant 0 : index
    %c0_0 = arith.constant 0 : index
    %0 = vector.load %arg2[%c0, %c0_0] : memref<64x1152xbf16, #tpu.memory_space<vmem>>, vector<64x1152xbf16>
    %c0_1 = arith.constant 0 : index
    %c0_2 = arith.constant 0 : index
    %1 = vector.load %arg3[%c0_1, %c0_2] : memref<1152x128xbf16, #tpu.memory_space<vmem>>, vector<1152x128xbf16>
    %cst = arith.constant dense<0.000000e+00> : vector<64x128xf32>
    %2 = tpu.matmul %0, %1, %cst {dimension_numbers = #tpu.dot_dimension_numbers<[1], [0], [0], [1], [0, 0, 1, 1], [], []>} : vector<64x1152xbf16>, vector<1152x128xbf16>, vector<64x128xf32> -> vector<64x128xf32>
    %c0_3 = arith.constant 0 : index
    %c0_4 = arith.constant 0 : index
    %3 = vector.load %arg4[%c0_3, %c0_4] : memref<1x128xf32, #tpu.memory_space<vmem>>, vector<1x128xf32>
    %4 = vector.broadcast %3 : vector<1x128xf32> to vector<64x128xf32>
    %5 = arith.addf %2, %4 : vector<64x128xf32>
    %cst_5 = arith.constant 0.000000e+00 : f32
    %6 = vector.broadcast %cst_5 : f32 to vector<64x128xf32>
    %7 = arith.maximumf %5, %6 : vector<64x128xf32>
    %8 = arith.truncf %7 : vector<64x128xf32> to vector<64x128xbf16>
    %c0_6 = arith.constant 0 : index
    %c0_7 = arith.constant 0 : index
    %9 = vector.load %arg5[%c0_6, %c0_7] : memref<64x128xbf16, #tpu.memory_space<vmem>>, vector<64x128xbf16>
    tpu.vector_store %arg5[%c0_6, %c0_7], %8 {strides = array<i32>} : memref<64x128xbf16, #tpu.memory_space<vmem>>, vector<64x128xbf16>,
    return
  }
  func.func @transform_0(%arg0: i32, %arg1: i32) -> (i32, i32) {
    %c0_i32 = arith.constant 0 : i32
    %c0_i32_0 = arith.constant 0 : i32
    return %arg0, %c0_i32 : i32, i32
  }
  func.func @transform_1(%arg0: i32, %arg1: i32) -> (i32, i32) {
    %c0_i32 = arith.constant 0 : i32
    %c0_i32_0 = arith.constant 0 : i32
    return %c0_i32, %arg1 : i32, i32
  }
  func.func @transform_2(%arg0: i32, %arg1: i32) -> (i32, i32) {
    %c0_i32 = arith.constant 0 : i32
    %c0_i32_0 = arith.constant 0 : i32
    return %c0_i32, %arg1 : i32, i32
  }
  func.func @transform_3(%arg0: i32, %arg1: i32) -> (i32, i32) {
    %c0_i32 = arith.constant 0 : i32
    return %arg0, %arg1 : i32, i32
  }
}

</mosaic_0001>

<llo_original>
// kernel: _lambda_.4
$region0: #{_lambda_.4}
  #allocation0 [shape = 'u32[]', space=smem, size = 0x4, offset = 0x4, fixed_abs, tag = 'smem constant byte address 0x4 - core index']
  #allocation1 [shape = 'u32[144,128]{1,0:T(1,128)}', space=vmem, size = 0x12000, scoped, tag = 'internal scratch']
  %s0 = inlined_call_operand.vmem [shape: bf16[128,128], index: 0, kind: input, shape index: {}]
  %s1 = inlined_call_operand.vmem [shape: bf16[128,128], index: 1, kind: input, shape index: {}]
  %s2 = inlined_call_operand.vmem [shape: f32[1,128], index: 2, kind: input, shape index: {}]
  %s3 = inlined_call_operand.vmem [shape: bf16[128,128], index: 3, kind: output, shape index: {}]
  %s4 = sld [smem:[#allocation0]]
  $region45: #{_lambda_.4} parent=0
    _
  %s6 = ssub.s32 1, %s4
  %s7 = scalar_select 0, %s6, %s4
  loop: start=0, step=1, limit=4
  $region2: #{_lambda_.4} parent=0 // loop_pre_header
    _
  $region3: #{_lambda_.4} parent=0 // loop_header
    %s9 = sphi 0, %s13
    %p10 = scmp.ge.s32.totalorder %s9, 4
    %s16 = sphi 0, %s28
    %s17 = sphi 0, %s24
    %s18 = sphi 0, %s16
    %s19 = sphi 0, %s17
    %s20 = sphi 0, %s18
    %s21 = sphi 0, %s19
    %s31 = sphi 0, %s33
    %s34 = sphi 0, %s31
    %s35 = sphi 0, %s34
    %s51 = sphi 0, %s35
    %s57 = sphi 0, %s59
    %s60 = sphi 0, %s57
    %s61 = sphi 0, %s60
    %s77 = sphi 0, %s61
    %s83 = sphi 0, %s85
    %s86 = sphi 0, %s83
    %s87 = sphi 0, %s86
    %s103 = sphi 0, %s87
    %s111 = sphi 0, %s113
    %s114 = sphi 0, %s111
    %s115 = sphi 0, %s114
    %s131 = sphi 0, %s115
  $region4: #{_lambda_.4} parent=0 // loop_header_branch
    %12 = sbr.rel (%p10) target = $region8
  $region5: #{_lambda_.4} parent=0 // loop_body
    %s14 = ssub.s32 %s9, 1
    %s15 = ssub.s32 %s9, 2
    %s22 = sadd.s32 1, %s17
    %p23 = scmp.ge.s32.totalorder %s22, 1
    %s24 = scalar_select %p23, 0, %s22
    %s25 = sadd.s32 1, %s16
    %s26 = scalar_select %p23, %s25, %s16
    %p27 = scmp.ge.s32.totalorder %s26, 2
    %s28 = scalar_select %p27, 0, %s26
    %s29 = ssub.s32 %s16, %s28
    %p30 = scmp.eq.s32.totalorder %s29, 0
    %s32 = sadd.s32 %s31, 1
    %s33 = scalar_select %p30, %s31, %s32
    %p36 = pneg %p30
    %p37 = scmp.eq.s32.totalorder %s9, 1
    %p38 = por %p36, %p37
    %p39 = scmp.ne.s32.totalorder %s31, %s34
    %p40 = scmp.eq.s32.totalorder %s9, 0
    %p41 = por %p39, %p40
    %p42 = scmp.ne.s32.totalorder %s31, %s34
    %p43 = scmp.eq.s32.totalorder %s14, 1
    %p44 = por %p42, %p43
    %p45 = scmp.ne.s32.totalorder %s34, %s35
    %p46 = scmp.eq.s32.totalorder %s14, 0
    %p47 = por %p45, %p46
    %p48 = scmp.ne.s32.totalorder %s34, %s35
    %p49 = scmp.eq.s32.totalorder %s15, 1
    %p50 = por %p48, %p49
    %p52 = scmp.ne.s32.totalorder %s35, %s51
    %p53 = scmp.eq.s32.totalorder %s15, 0
    %p54 = por %p52, %p53
    %s55 = ssub.s32 %s17, %s24
    %p56 = scmp.eq.s32.totalorder %s55, 0
    %s58 = sadd.s32 %s57, 1
    %s59 = scalar_select %p56, %s57, %s58
    %p62 = pneg %p56
    %p63 = scmp.eq.s32.totalorder %s9, 1
    %p64 = por %p62, %p63
    %p65 = scmp.ne.s32.totalorder %s57, %s60
    %p66 = scmp.eq.s32.totalorder %s9, 0
    %p67 = por %p65, %p66
    %p68 = scmp.ne.s32.totalorder %s57, %s60
    %p69 = scmp.eq.s32.totalorder %s14, 1
    %p70 = por %p68, %p69
    %p71 = scmp.ne.s32.totalorder %s60, %s61
    %p72 = scmp.eq.s32.totalorder %s14, 0
    %p73 = por %p71, %p72
    %p74 = scmp.ne.s32.totalorder %s60, %s61
    %p75 = scmp.eq.s32.totalorder %s15, 1
    %p76 = por %p74, %p75
    %p78 = scmp.ne.s32.totalorder %s61, %s77
    %p79 = scmp.eq.s32.totalorder %s15, 0
    %p80 = por %p78, %p79
    %s81 = ssub.s32 %s17, %s24
    %p82 = scmp.eq.s32.totalorder %s81, 0
    %s84 = sadd.s32 %s83, 1
    %s85 = scalar_select %p82, %s83, %s84
    %p88 = pneg %p82
    %p89 = scmp.eq.s32.totalorder %s9, 1
    %p90 = por %p88, %p89
    %p91 = scmp.ne.s32.totalorder %s83, %s86
    %p92 = scmp.eq.s32.totalorder %s9, 0
    %p93 = por %p91, %p92
    %p94 = scmp.ne.s32.totalorder %s83, %s86
    %p95 = scmp.eq.s32.totalorder %s14, 1
    %p96 = por %p94, %p95
    %p97 = scmp.ne.s32.totalorder %s86, %s87
    %p98 = scmp.eq.s32.totalorder %s14, 0
    %p99 = por %p97, %p98
    %p100 = scmp.ne.s32.totalorder %s86, %s87
    %p101 = scmp.eq.s32.totalorder %s15, 1
    %p102 = por %p100, %p101
    %p104 = scmp.ne.s32.totalorder %s87, %s103
    %p105 = scmp.eq.s32.totalorder %s15, 0
    %p106 = por %p104, %p105
    %s107 = ssub.s32 %s16, %s28
    %s108 = ssub.s32 %s17, %s24
    %s109 = sor.u32 %s107, %s108
    %p110 = scmp.eq.s32.totalorder %s109, 0
    %s112 = sadd.s32 %s111, 1
    %s113 = scalar_select %p110, %s111, %s112
    %p116 = pneg %p110
    %p117 = scmp.eq.s32.totalorder %s9, 1
    %p118 = por %p116, %p117
    %p119 = scmp.ne.s32.totalorder %s111, %s114
    %p120 = scmp.eq.s32.totalorder %s9, 0
    %p121 = por %p119, %p120
    %p122 = scmp.ne.s32.totalorder %s111, %s114
    %p123 = scmp.eq.s32.totalorder %s14, 1
    %p124 = por %p122, %p123
    %p125 = scmp.ne.s32.totalorder %s114, %s115
    %p126 = scmp.eq.s32.totalorder %s14, 0
    %p127 = por %p125, %p126
    %p128 = scmp.ne.s32.totalorder %s114, %s115
    %p129 = scmp.eq.s32.totalorder %s15, 1
    %p130 = por %p128, %p129
    %p132 = scmp.ne.s32.totalorder %s115, %s131
    %p133 = scmp.eq.s32.totalorder %s15, 0
    %p134 = por %p132, %p133
    %p135 = scmp.le.s32.totalorder 1, %s9
    %p136 = scmp.lt.s32.totalorder %s9, 3
    %p137 = pnand %p135, %p136
    %p138 = pneg %p137
    // Predicated region
    $region9: #{_lambda_.4} parent=5 // pred_check
      _
    $region10: #{_lambda_.4} parent=5 // pred_check_branch
      %140 = sbr.rel (%p137) target = $region12
    $region11: #{_lambda_.4} parent=5 // pred_region
      %s141 = ssub.s32 %s9, 1
      // Predicated region
      $region13: #{_lambda_.4} parent=11 // pred_check
        %p142 = pneg %p73
      $region14: #{_lambda_.4} parent=11 // pred_check_branch
        %144 = sbr.rel (%p142) target = $region16
      $region15: #{_lambda_.4} parent=11 // pred_region
        %p145 = scmp.lt.s32.totalorder %s19, 0
        %s146 = scalar_select %p145, %s19, 0
        %s147 = smul.addr %s146, 4
        %s148 = scalar_lea.vmem %s1, %s147
      $region16: #{_lambda_.4} parent=11 // pred_fallthru
        _
      // Predicated region
      $region17: #{_lambda_.4} parent=11 // pred_check
        %p149 = pneg %p99
      $region18: #{_lambda_.4} parent=11 // pred_check_branch
        %151 = sbr.rel (%p149) target = $region20
      $region19: #{_lambda_.4} parent=11 // pred_region
        %p152 = scmp.lt.s32.totalorder %s19, 0
        %s153 = scalar_select %p152, %s19, 0
        %s154 = scalar_lea.vmem %s2, %s153
      $region20: #{_lambda_.4} parent=11 // pred_fallthru
        _
    $region12: #{_lambda_.4} parent=5 // pred_fallthru
      _
    %p155 = scmp.lt.s32.totalorder %s9, 2
    // Predicated region
    $region21: #{_lambda_.4} parent=5 // pred_check
      %p156 = pneg %p155
    $region22: #{_lambda_.4} parent=5 // pred_check_branch
      %158 = sbr.rel (%p156) target = $region24
    $region23: #{_lambda_.4} parent=5 // pred_region
      // Predicated region
      $region25: #{_lambda_.4} parent=23 // pred_check
        %p159 = pneg %p41
      $region26: #{_lambda_.4} parent=23 // pred_check_branch
        %161 = sbr.rel (%p159) target = $region28
      $region27: #{_lambda_.4} parent=23 // pred_region
        %s162 = smul.u32 8, %s16
        %p163 = scmp.lt.s32.totalorder %s162, 15
        %s164 = scalar_select %p163, %s162, 15
        %s165 = smul.addr %s164, 4
        %s166 = scalar_lea.vmem %s0, %s165
        %s167 = smul.u32 8, %s16
      $region28: #{_lambda_.4} parent=23 // pred_fallthru
        _
    $region24: #{_lambda_.4} parent=5 // pred_fallthru
      _
    %p168 = scmp.le.s32.totalorder 1, %s9
    %p169 = scmp.lt.s32.totalorder %s9, 3
    %p170 = pnand %p168, %p169
    %p171 = pneg %p170
    // Predicated region
    $region29: #{_lambda_.4} parent=5 // pred_check
      _
    $region30: #{_lambda_.4} parent=5 // pred_check_branch
      %173 = sbr.rel (%p170) target = $region32
    $region31: #{_lambda_.4} parent=5 // pred_region
      %s174 = ssub.s32 %s9, 1
      %s175 = smul.u32 8, %s18
      %p176 = scmp.lt.s32.totalorder %s175, 15
      %s177 = scalar_select %p176, %s175, 15
      %s178 = smul.addr %s177, 4
      %s179 = scalar_lea.vmem %s0, %s178
      %p180 = pneg %p47
      %p181 = pneg %p44
      %p182 = scmp.lt.s32.totalorder %s19, 0
      %s183 = scalar_select %p182, %s19, 0
      %s184 = smul.addr %s183, 4
      %s185 = scalar_lea.vmem %s1, %s184
      %p186 = pneg %p73
      %p187 = pneg %p70
      %p188 = scmp.lt.s32.totalorder %s19, 0
      %s189 = scalar_select %p188, %s19, 0
      %s190 = scalar_lea.vmem %s2, %s189
      %p191 = pneg %p99
      %p192 = pneg %p96
      %p193 = pneg %p127
      %p194 = pneg %p124
      %s195 = smul.u32 8, %s18
      %p196 = scmp.lt.s32.totalorder %s195, 15
      %s197 = scalar_select %p196, %s195, 15
      %p198 = scmp.lt.s32.totalorder %s19, 0
      %s199 = scalar_select %p198, %s19, 0
      %s200 = sadd.s32 %s199, %s197
      %s201 = smul.addr %s200, 4
      %s202 = scalar_lea.vmem %s3, %s201
      %s203 = smul.u32 8, %s18
      %p204 = scmp.lt.s32.totalorder %s203, 15
      %s205 = scalar_select %p204, %s203, 15
      %s206 = smul.addr %s205, 4
      %s207 = scalar_lea.vmem %s0, %s206
      %s208 = smul.u32 8, %s18
      %p209 = scmp.lt.s32.totalorder %s19, 0
      %s210 = scalar_select %p209, %s19, 0
      %s211 = smul.addr %s210, 4
      %s212 = scalar_lea.vmem %s1, %s211
      %p213 = scmp.lt.s32.totalorder %s19, 0
      %s214 = scalar_select %p213, %s19, 0
      %s215 = scalar_lea.vmem %s2, %s214
      %s216 = smul.u32 8, %s18
      %p217 = scmp.lt.s32.totalorder %s216, 15
      %s218 = scalar_select %p217, %s216, 15
      %p219 = scmp.lt.s32.totalorder %s19, 0
      %s220 = scalar_select %p219, %s19, 0
      %s221 = sadd.s32 %s220, %s218
      %s222 = smul.addr %s221, 4
      %s223 = scalar_lea.vmem %s3, %s222
      %s224 = smul.u32 8, %s18
      %v226 = vld [vmem:[%s207] sm:$0xf]
      %v227 = vld [vmem:[%s207 + $0x4] sm:$0xf]
      %v228 = vld [vmem:[%s207 + $0x8] sm:$0xf]
      %v229 = vld [vmem:[%s207 + $0xc] sm:$0xf]
      %v230 = vld [vmem:[%s207 + $0x10] sm:$0xf]
      %v231 = vld [vmem:[%s207 + $0x14] sm:$0xf]
      %v232 = vld [vmem:[%s207 + $0x18] sm:$0xf]
      %v233 = vld [vmem:[%s207 + $0x1c] sm:$0xf]
      %v234 = vld [vmem:[%s212] sm:$0xf]
      %v235 = vld [vmem:[%s212 + $0x4] sm:$0xf]
      %v236 = vld [vmem:[%s212 + $0x8] sm:$0xf]
      %v237 = vld [vmem:[%s212 + $0xc] sm:$0xf]
      %v238 = vld [vmem:[%s212 + $0x10] sm:$0xf]
      %v239 = vld [vmem:[%s212 + $0x14] sm:$0xf]
      %v240 = vld [vmem:[%s212 + $0x18] sm:$0xf]
      %v241 = vld [vmem:[%s212 + $0x1c] sm:$0xf]
      %v242 = vld [vmem:[%s212 + $0x20] sm:$0xf]
      %v243 = vld [vmem:[%s212 + $0x24] sm:$0xf]
      %v244 = vld [vmem:[%s212 + $0x28] sm:$0xf]
      %v245 = vld [vmem:[%s212 + $0x2c] sm:$0xf]
      %v246 = vld [vmem:[%s212 + $0x30] sm:$0xf]
      %v247 = vld [vmem:[%s212 + $0x34] sm:$0xf]
      %v248 = vld [vmem:[%s212 + $0x38] sm:$0xf]
      %v249 = vld [vmem:[%s212 + $0x3c] sm:$0xf]
      %v250 = vld [vmem:[%s215] sm:$0x1]
      %v252 = vlaneseq
      %v253 = vshrl.u32 %v252, 7
      %v254 = vsub.s32 0, %v253
      %v255 = vrot.slane %v250, %v254
      %v265 = vunpack.c.l.b16 %v226
      %v266 = vunpack.c.l.b16 %v227
      %v267 = vunpack.c.l.b16 %v228
      %v268 = vunpack.c.l.b16 %v229
      %v269 = vunpack.c.l.b16 %v230
      %v270 = vunpack.c.l.b16 %v231
      %v271 = vunpack.c.l.b16 %v232
      %v272 = vunpack.c.l.b16 %v233
      %v273 = vpack.c.b16 %v266, %v265
      %v274 = vpack.c.b16 %v268, %v267
      %v275 = vpack.c.b16 %v270, %v269
      %v276 = vpack.c.b16 %v272, %v271
      %v297 = vunpack.c.l.b16 %v234
      %v298 = vunpack.c.l.b16 %v235
      %v299 = vunpack.c.l.b16 %v236
      %v300 = vunpack.c.l.b16 %v237
      %v301 = vunpack.c.l.b16 %v238
      %v302 = vunpack.c.l.b16 %v239
      %v303 = vunpack.c.l.b16 %v240
      %v304 = vunpack.c.l.b16 %v241
      %v305 = vunpack.c.l.b16 %v242
      %v306 = vunpack.c.l.b16 %v243
      %v307 = vunpack.c.l.b16 %v244
      %v308 = vunpack.c.l.b16 %v245
      %v309 = vunpack.c.l.b16 %v246
      %v310 = vunpack.c.l.b16 %v247
      %v311 = vunpack.c.l.b16 %v248
      %v312 = vunpack.c.l.b16 %v249
      %v313 = vpack.c.b16 %v298, %v297
      %v314 = vpack.c.b16 %v300, %v299
      %v315 = vpack.c.b16 %v302, %v301
      %v316 = vpack.c.b16 %v304, %v303
      %v317 = vpack.c.b16 %v306, %v305
      %v318 = vpack.c.b16 %v308, %v307
      %v319 = vpack.c.b16 %v310, %v309
      %v320 = vpack.c.b16 %v312, %v311
      %329 = vmatprep.subr.bf16.mxu0 0
      %330 = vmatpush1.bf16.msra.mxu0 %v313
      %331 = vmatprep.subr.bf16.mxu0 0
      %332 = vmatpush1.bf16.msra.mxu0 %v314
      %333 = vmatprep.subr.bf16.mxu0 0
      %334 = vmatpush1.bf16.msra.mxu0 %v315
      %335 = vmatprep.subr.bf16.mxu0 0
      %336 = vmatpush1.bf16.msra.mxu0 %v316
      %337 = vmatprep.subr.bf16.mxu0 0
      %338 = vmatpush1.bf16.msra.mxu0 %v317
      %339 = vmatprep.subr.bf16.mxu0 0
      %340 = vmatpush1.bf16.msra.mxu0 %v318
      %341 = vmatprep.subr.bf16.mxu0 0
      %342 = vmatpush1.bf16.msra.mxu0 %v319
      %343 = vmatprep.subr.bf16.mxu0 0
      %344 = vmatpush1.bf16.msra.mxu0 %v320
      %345 = vmatprep.subr.bf16.mxu0 0
      %346 = vmatpush1.bf16.msra.mxu0 0
      %347 = vmatprep.subr.bf16.mxu0 0
      %348 = vmatpush1.bf16.msra.mxu0 0
      %349 = vmatprep.subr.bf16.mxu0 0
      %350 = vmatpush1.bf16.msra.mxu0 0
      %351 = vmatprep.subr.bf16.mxu0 0
      %352 = vmatpush1.bf16.msra.mxu0 0
      %353 = vmatprep.subr.bf16.mxu0 0
      %354 = vmatpush1.bf16.msra.mxu0 0
      %355 = vmatprep.subr.bf16.mxu0 0
      %356 = vmatpush1.bf16.msra.mxu0 0
      %357 = vmatprep.subr.bf16.mxu0 0
      %358 = vmatpush1.bf16.msra.mxu0 0
      %359 = vmatprep.subr.bf16.mxu0 0
      %360 = vmatpush1.bf16.msra.mxu0 0
      %361 = vmatprep.mubr.bf16.mxu0 0
      %362 = vmatmul.mubr.bf16.gmra.mrb[0].mxu0 %v273
      %v363 = vpop.f32.mrb[0].mxu0
      %v364 = vadd.f32 %v255, %v363
      %v365 = vpop.f32.mrb[0].mxu0
      %v366 = vpop.f32.mrb[0].mxu0
      %v367 = vadd.f32 %v255, %v366
      %v368 = vpop.f32.mrb[0].mxu0
      %369 = vmatprep.mubr.bf16.mxu0 0
      %370 = vmatmul.mubr.bf16.gmra.mrb[0].mxu0 %v274
      %v371 = vpop.f32.mrb[0].mxu0
      %v372 = vadd.f32 %v255, %v371
      %v373 = vpop.f32.mrb[0].mxu0
      %v374 = vpop.f32.mrb[0].mxu0
      %v375 = vadd.f32 %v255, %v374
      %v376 = vpop.f32.mrb[0].mxu0
      %377 = vmatprep.mubr.bf16.mxu0 0
      %378 = vmatmul.mubr.bf16.gmra.mrb[0].mxu0 %v275
      %v379 = vpop.f32.mrb[0].mxu0
      %v380 = vadd.f32 %v255, %v379
      %v381 = vpop.f32.mrb[0].mxu0
      %v382 = vpop.f32.mrb[0].mxu0
      %v383 = vadd.f32 %v255, %v382
      %v384 = vpop.f32.mrb[0].mxu0
      %385 = vmatprep.mubr.bf16.mxu0 0
      %386 = vmatmul.mubr.bf16.gmra.mrb[0].mxu0 %v276
      %v387 = vpop.f32.mrb[0].mxu0
      %v388 = vadd.f32 %v255, %v387
      %v389 = vpop.f32.mrb[0].mxu0
      %v390 = vpop.f32.mrb[0].mxu0
      %v391 = vadd.f32 %v255, %v390
      %v392 = vpop.f32.mrb[0].mxu0
      %393 = vdwg.mxu0
      %v394 = vmax.f32 %v364, 0.0
      %v395 = vmax.f32 %v367, 0.0
      %v396 = vmax.f32 %v372, 0.0
      %v397 = vmax.f32 %v375, 0.0
      %v398 = vmax.f32 %v380, 0.0
      %v399 = vmax.f32 %v383, 0.0
      %v400 = vmax.f32 %v388, 0.0
      %v401 = vmax.f32 %v391, 0.0
      %v402 = vpack.c.bf16 %v395, %v394
      %v403 = vpack.c.bf16 %v397, %v396
      %v404 = vpack.c.bf16 %v399, %v398
      %v405 = vpack.c.bf16 %v401, %v400
      %v410 = vunpack.c.l.b16 %v402
      %v411 = vunpack.c.h.b16 %v402
      %v412 = vunpack.c.l.b16 %v403
      %v413 = vunpack.c.h.b16 %v403
      %v414 = vunpack.c.l.b16 %v404
      %v415 = vunpack.c.h.b16 %v404
      %v416 = vunpack.c.l.b16 %v405
      %v417 = vunpack.c.h.b16 %v405
      %v418 = vpack.c.b16 %v410, %v410
      %v419 = vpack.c.b16 %v411, %v411
      %v420 = vpack.c.b16 %v412, %v412
      %v421 = vpack.c.b16 %v413, %v413
      %v422 = vpack.c.b16 %v414, %v414
      %v423 = vpack.c.b16 %v415, %v415
      %v424 = vpack.c.b16 %v416, %v416
      %v425 = vpack.c.b16 %v417, %v417
      %434 = vst [vmem:[%s223] sm:$0xf] %v418
      %435 = vst [vmem:[%s223 + $0x4] sm:$0xf] %v419
      %436 = vst [vmem:[%s223 + $0x8] sm:$0xf] %v420
      %437 = vst [vmem:[%s223 + $0xc] sm:$0xf] %v421
      %438 = vst [vmem:[%s223 + $0x10] sm:$0xf] %v422
      %439 = vst [vmem:[%s223 + $0x14] sm:$0xf] %v423
      %440 = vst [vmem:[%s223 + $0x18] sm:$0xf] %v424
      %441 = vst [vmem:[%s223 + $0x1c] sm:$0xf] %v425
      %s442 = smul.u32 8, %s18
      %p443 = scmp.lt.s32.totalorder %s442, 15
      %s444 = scalar_select %p443, %s442, 15
      %p445 = scmp.lt.s32.totalorder %s19, 0
      %s446 = scalar_select %p445, %s19, 0
      %s447 = sadd.s32 %s446, %s444
      %s448 = smul.addr %s447, 4
      %s449 = scalar_lea.vmem %s3, %s448
      // Predicated region
      $region33: #{_lambda_.4} parent=31 // pred_check
        %p450 = pneg %p124
      $region34: #{_lambda_.4} parent=31 // pred_check_branch
        %452 = sbr.rel (%p450) target = $region36
      $region35: #{_lambda_.4} parent=31 // pred_region
        %s453 = smul.u32 8, %s18
      $region36: #{_lambda_.4} parent=31 // pred_fallthru
        _
    $region32: #{_lambda_.4} parent=5 // pred_fallthru
      _
    %p454 = scmp.le.s32.totalorder 2, %s9
    // Predicated region
    $region37: #{_lambda_.4} parent=5 // pred_check
      %p455 = pneg %p454
    $region38: #{_lambda_.4} parent=5 // pred_check_branch
      %457 = sbr.rel (%p455) target = $region40
    $region39: #{_lambda_.4} parent=5 // pred_region
      %s458 = ssub.s32 %s9, 2
      // Predicated region
      $region41: #{_lambda_.4} parent=39 // pred_check
        %p459 = pneg %p130
      $region42: #{_lambda_.4} parent=39 // pred_check_branch
        %461 = sbr.rel (%p459) target = $region44
      $region43: #{_lambda_.4} parent=39 // pred_region
        %s462 = smul.u32 8, %s20
        %p463 = scmp.lt.s32.totalorder %s462, 15
        %s464 = scalar_select %p463, %s462, 15
        %p465 = scmp.lt.s32.totalorder %s21, 0
        %s466 = scalar_select %p465, %s21, 0
        %s467 = sadd.s32 %s466, %s464
        %s468 = smul.addr %s467, 4
        %s469 = scalar_lea.vmem %s3, %s468
      $region44: #{_lambda_.4} parent=39 // pred_fallthru
        _
    $region40: #{_lambda_.4} parent=5 // pred_fallthru
      _
  $region6: #{_lambda_.4} parent=0 // loop_footer
    %s13 = sadd.s32 1, %s9
  $region7: #{_lambda_.4} parent=0 // loop_footer_branch
    %8 = sbr.rel target = $region3
  $region8: #{_lambda_.4} parent=0 // loop_exit
    _

// kernel: _lambda_.5
$region0: #{_lambda_.5}
  #allocation0 [shape = 'u32[]', space=smem, size = 0x4, offset = 0x4, fixed_abs, tag = 'smem constant byte address 0x4 - core index']
  #allocation1 [shape = 'u32[144,128]{1,0:T(1,128)}', space=vmem, size = 0x12000, scoped, tag = 'internal scratch']
  %s0 = inlined_call_operand.vmem [shape: bf16[128,1280], index: 0, kind: input, shape index: {}]
  %s1 = inlined_call_operand.vmem [shape: bf16[1280,128], index: 1, kind: input, shape index: {}]
  %s2 = inlined_call_operand.vmem [shape: f32[1,128], index: 2, kind: input, shape index: {}]
  %s3 = inlined_call_operand.vmem [shape: bf16[128,128], index: 3, kind: output, shape index: {}]
  %s4 = sld [smem:[#allocation0]]
  $region45: #{_lambda_.5} parent=0
    _
  %s6 = ssub.s32 1, %s4
  %s7 = scalar_select 0, %s6, %s4
  loop: start=0, step=1, limit=4
  $region2: #{_lambda_.5} parent=0 // loop_pre_header
    _
  $region3: #{_lambda_.5} parent=0 // loop_header
    %s9 = sphi 0, %s13
    %p10 = scmp.ge.s32.totalorder %s9, 4
    %s16 = sphi 0, %s28
    %s17 = sphi 0, %s24
    %s18 = sphi 0, %s16
    %s19 = sphi 0, %s17
    %s20 = sphi 0, %s18
    %s21 = sphi 0, %s19
    %s31 = sphi 0, %s33
    %s34 = sphi 0, %s31
    %s35 = sphi 0, %s34
    %s51 = sphi 0, %s35
    %s57 = sphi 0, %s59
    %s60 = sphi 0, %s57
    %s61 = sphi 0, %s60
    %s77 = sphi 0, %s61
    %s83 = sphi 0, %s85
    %s86 = sphi 0, %s83
    %s87 = sphi 0, %s86
    %s103 = sphi 0, %s87
    %s111 = sphi 0, %s113
    %s114 = sphi 0, %s111
    %s115 = sphi 0, %s114
    %s131 = sphi 0, %s115
  $region4: #{_lambda_.5} parent=0 // loop_header_branch
    %12 = sbr.rel (%p10) target = $region8
  $region5: #{_lambda_.5} parent=0 // loop_body
    %s14 = ssub.s32 %s9, 1
    %s15 = ssub.s32 %s9, 2
    %s22 = sadd.s32 1, %s17
    %p23 = scmp.ge.s32.totalorder %s22, 1
    %s24 = scalar_select %p23, 0, %s22
    %s25 = sadd.s32 1, %s16
    %s26 = scalar_select %p23, %s25, %s16
    %p27 = scmp.ge.s32.totalorder %s26, 2
    %s28 = scalar_select %p27, 0, %s26
    %s29 = ssub.s32 %s16, %s28
    %p30 = scmp.eq.s32.totalorder %s29, 0
    %s32 = sadd.s32 %s31, 1
    %s33 = scalar_select %p30, %s31, %s32
    %p36 = pneg %p30
    %p37 = scmp.eq.s32.totalorder %s9, 1
    %p38 = por %p36, %p37
    %p39 = scmp.ne.s32.totalorder %s31, %s34
    %p40 = scmp.eq.s32.totalorder %s9, 0
    %p41 = por %p39, %p40
    %p42 = scmp.ne.s32.totalorder %s31, %s34
    %p43 = scmp.eq.s32.totalorder %s14, 1
    %p44 = por %p42, %p43
    %p45 = scmp.ne.s32.totalorder %s34, %s35
    %p46 = scmp.eq.s32.totalorder %s14, 0
    %p47 = por %p45, %p46
    %p48 = scmp.ne.s32.totalorder %s34, %s35
    %p49 = scmp.eq.s32.totalorder %s15, 1
    %p50 = por %p48, %p49
    %p52 = scmp.ne.s32.totalorder %s35, %s51
    %p53 = scmp.eq.s32.totalorder %s15, 0
    %p54 = por %p52, %p53
    %s55 = ssub.s32 %s17, %s24
    %p56 = scmp.eq.s32.totalorder %s55, 0
    %s58 = sadd.s32 %s57, 1
    %s59 = scalar_select %p56, %s57, %s58
    %p62 = pneg %p56
    %p63 = scmp.eq.s32.totalorder %s9, 1
    %p64 = por %p62, %p63
    %p65 = scmp.ne.s32.totalorder %s57, %s60
    %p66 = scmp.eq.s32.totalorder %s9, 0
    %p67 = por %p65, %p66
    %p68 = scmp.ne.s32.totalorder %s57, %s60
    %p69 = scmp.eq.s32.totalorder %s14, 1
    %p70 = por %p68, %p69
    %p71 = scmp.ne.s32.totalorder %s60, %s61
    %p72 = scmp.eq.s32.totalorder %s14, 0
    %p73 = por %p71, %p72
    %p74 = scmp.ne.s32.totalorder %s60, %s61
    %p75 = scmp.eq.s32.totalorder %s15, 1
    %p76 = por %p74, %p75
    %p78 = scmp.ne.s32.totalorder %s61, %s77
    %p79 = scmp.eq.s32.totalorder %s15, 0
    %p80 = por %p78, %p79
    %s81 = ssub.s32 %s17, %s24
    %p82 = scmp.eq.s32.totalorder %s81, 0
    %s84 = sadd.s32 %s83, 1
    %s85 = scalar_select %p82, %s83, %s84
    %p88 = pneg %p82
    %p89 = scmp.eq.s32.totalorder %s9, 1
    %p90 = por %p88, %p89
    %p91 = scmp.ne.s32.totalorder %s83, %s86
    %p92 = scmp.eq.s32.totalorder %s9, 0
    %p93 = por %p91, %p92
    %p94 = scmp.ne.s32.totalorder %s83, %s86
    %p95 = scmp.eq.s32.totalorder %s14, 1
    %p96 = por %p94, %p95
    %p97 = scmp.ne.s32.totalorder %s86, %s87
    %p98 = scmp.eq.s32.totalorder %s14, 0
    %p99 = por %p97, %p98
    %p100 = scmp.ne.s32.totalorder %s86, %s87
    %p101 = scmp.eq.s32.totalorder %s15, 1
    %p102 = por %p100, %p101
    %p104 = scmp.ne.s32.totalorder %s87, %s103
    %p105 = scmp.eq.s32.totalorder %s15, 0
    %p106 = por %p104, %p105
    %s107 = ssub.s32 %s16, %s28
    %s108 = ssub.s32 %s17, %s24
    %s109 = sor.u32 %s107, %s108
    %p110 = scmp.eq.s32.totalorder %s109, 0
    %s112 = sadd.s32 %s111, 1
    %s113 = scalar_select %p110, %s111, %s112
    %p116 = pneg %p110
    %p117 = scmp.eq.s32.totalorder %s9, 1
    %p118 = por %p116, %p117
    %p119 = scmp.ne.s32.totalorder %s111, %s114
    %p120 = scmp.eq.s32.totalorder %s9, 0
    %p121 = por %p119, %p120
    %p122 = scmp.ne.s32.totalorder %s111, %s114
    %p123 = scmp.eq.s32.totalorder %s14, 1
    %p124 = por %p122, %p123
    %p125 = scmp.ne.s32.totalorder %s114, %s115
    %p126 = scmp.eq.s32.totalorder %s14, 0
    %p127 = por %p125, %p126
    %p128 = scmp.ne.s32.totalorder %s114, %s115
    %p129 = scmp.eq.s32.totalorder %s15, 1
    %p130 = por %p128, %p129
    %p132 = scmp.ne.s32.totalorder %s115, %s131
    %p133 = scmp.eq.s32.totalorder %s15, 0
    %p134 = por %p132, %p133
    %p135 = scmp.le.s32.totalorder 1, %s9
    %p136 = scmp.lt.s32.totalorder %s9, 3
    %p137 = pnand %p135, %p136
    %p138 = pneg %p137
    // Predicated region
    $region9: #{_lambda_.5} parent=5 // pred_check
      _
    $region10: #{_lambda_.5} parent=5 // pred_check_branch
      %140 = sbr.rel (%p137) target = $region12
    $region11: #{_lambda_.5} parent=5 // pred_region
      %s141 = ssub.s32 %s9, 1
      // Predicated region
      $region13: #{_lambda_.5} parent=11 // pred_check
        %p142 = pneg %p73
      $region14: #{_lambda_.5} parent=11 // pred_check_branch
        %144 = sbr.rel (%p142) target = $region16
      $region15: #{_lambda_.5} parent=11 // pred_region
        %p145 = scmp.lt.s32.totalorder %s19, 0
        %s146 = scalar_select %p145, %s19, 0
        %s147 = smul.addr %s146, 4
        %s148 = scalar_lea.vmem %s1, %s147
      $region16: #{_lambda_.5} parent=11 // pred_fallthru
        _
      // Predicated region
      $region17: #{_lambda_.5} parent=11 // pred_check
        %p149 = pneg %p99
      $region18: #{_lambda_.5} parent=11 // pred_check_branch
        %151 = sbr.rel (%p149) target = $region20
      $region19: #{_lambda_.5} parent=11 // pred_region
        %p152 = scmp.lt.s32.totalorder %s19, 0
        %s153 = scalar_select %p152, %s19, 0
        %s154 = scalar_lea.vmem %s2, %s153
      $region20: #{_lambda_.5} parent=11 // pred_fallthru
        _
    $region12: #{_lambda_.5} parent=5 // pred_fallthru
      _
    %p155 = scmp.lt.s32.totalorder %s9, 2
    // Predicated region
    $region21: #{_lambda_.5} parent=5 // pred_check
      %p156 = pneg %p155
    $region22: #{_lambda_.5} parent=5 // pred_check_branch
      %158 = sbr.rel (%p156) target = $region24
    $region23: #{_lambda_.5} parent=5 // pred_region
      // Predicated region
      $region25: #{_lambda_.5} parent=23 // pred_check
        %p159 = pneg %p41
      $region26: #{_lambda_.5} parent=23 // pred_check_branch
        %161 = sbr.rel (%p159) target = $region28
      $region27: #{_lambda_.5} parent=23 // pred_region
        %s162 = smul.u32 8, %s16
        %p163 = scmp.lt.s32.totalorder %s162, 15
        %s164 = scalar_select %p163, %s162, 15
        %s165 = smul.addr %s164, 10
        %s166 = smul.addr %s165, 4
        %s167 = scalar_lea.vmem %s0, %s166
        %s168 = smul.u32 8, %s16
      $region28: #{_lambda_.5} parent=23 // pred_fallthru
        _
    $region24: #{_lambda_.5} parent=5 // pred_fallthru
      _
    %p169 = scmp.le.s32.totalorder 1, %s9
    %p170 = scmp.lt.s32.totalorder %s9, 3
    %p171 = pnand %p169, %p170
    %p172 = pneg %p171
    // Predicated region
    $region29: #{_lambda_.5} parent=5 // pred_check
      _
    $region30: #{_lambda_.5} parent=5 // pred_check_branch
      %174 = sbr.rel (%p171) target = $region32
    $region31: #{_lambda_.5} parent=5 // pred_region
      %s175 = ssub.s32 %s9, 1
      %s176 = smul.u32 8, %s18
      %p177 = scmp.lt.s32.totalorder %s176, 15
      %s178 = scalar_select %p177, %s176, 15
      %s179 = smul.addr %s178, 10
      %s180 = smul.addr %s179, 4
      %s181 = scalar_lea.vmem %s0, %s180
      %p182 = pneg %p47
      %p183 = pneg %p44
      %p184 = scmp.lt.s32.totalorder %s19, 0
      %s185 = scalar_select %p184, %s19, 0
      %s186 = smul.addr %s185, 4
      %s187 = scalar_lea.vmem %s1, %s186
      %p188 = pneg %p73
      %p189 = pneg %p70
      %p190 = scmp.lt.s32.totalorder %s19, 0
      %s191 = scalar_select %p190, %s19, 0
      %s192 = scalar_lea.vmem %s2, %s191
      %p193 = pneg %p99
      %p194 = pneg %p96
      %p195 = pneg %p127
      %p196 = pneg %p124
      %s197 = smul.u32 8, %s18
      %p198 = scmp.lt.s32.totalorder %s197, 15
      %s199 = scalar_select %p198, %s197, 15
      %p200 = scmp.lt.s32.totalorder %s19, 0
      %s201 = scalar_select %p200, %s19, 0
      %s202 = sadd.s32 %s201, %s199
      %s203 = smul.addr %s202, 4
      %s204 = scalar_lea.vmem %s3, %s203
      %s205 = smul.u32 8, %s18
      %p206 = scmp.lt.s32.totalorder %s205, 15
      %s207 = scalar_select %p206, %s205, 15
      %s208 = smul.addr %s207, 10
      %s209 = smul.addr %s208, 4
      %s210 = scalar_lea.vmem %s0, %s209
      %s211 = smul.u32 8, %s18
      %p212 = scmp.lt.s32.totalorder %s19, 0
      %s213 = scalar_select %p212, %s19, 0
      %s214 = smul.addr %s213, 4
      %s215 = scalar_lea.vmem %s1, %s214
      %p216 = scmp.lt.s32.totalorder %s19, 0
      %s217 = scalar_select %p216, %s19, 0
      %s218 = scalar_lea.vmem %s2, %s217
      %s219 = smul.u32 8, %s18
      %p220 = scmp.lt.s32.totalorder %s219, 15
      %s221 = scalar_select %p220, %s219, 15
      %p222 = scmp.lt.s32.totalorder %s19, 0
      %s223 = scalar_select %p222, %s19, 0
      %s224 = sadd.s32 %s223, %s221
      %s225 = smul.addr %s224, 4
      %s226 = scalar_lea.vmem %s3, %s225
      %s227 = smul.u32 8, %s18
      %v229 = vld [vmem:[%s210] sm:$0xff]
      %v230 = vld [vmem:[%s210 + $0x8] sm:$0xff]
      %v231 = vld [vmem:[%s210 + $0x10] sm:$0xff]
      %v232 = vld [vmem:[%s210 + $0x18] sm:$0xff]
      %v233 = vld [vmem:[%s210 + $0x20] sm:$0xff]
      %v234 = vld [vmem:[%s210 + $0x28] sm:$0xff]
      %v235 = vld [vmem:[%s210 + $0x30] sm:$0xff]
      %v236 = vld [vmem:[%s210 + $0x38] sm:$0xff]
      %v237 = vld [vmem:[%s210 + $0x40] sm:$0xff]
      %v238 = vld [vmem:[%s210 + $0x48] sm:$0xff]
      %v239 = vld [vmem:[%s210 + $0x50] sm:$0xff]
      %v240 = vld [vmem:[%s210 + $0x58] sm:$0xff]
      %v241 = vld [vmem:[%s210 + $0x60] sm:$0xff]
      %v242 = vld [vmem:[%s210 + $0x68] sm:$0xff]
      %v243 = vld [vmem:[%s210 + $0x70] sm:$0xff]
      %v244 = vld [vmem:[%s210 + $0x78] sm:$0xff]
      %v245 = vld [vmem:[%s210 + $0x80] sm:$0xff]
      %v246 = vld [vmem:[%s210 + $0x88] sm:$0xff]
      %v247 = vld [vmem:[%s210 + $0x90] sm:$0xff]
      %v248 = vld [vmem:[%s210 + $0x98] sm:$0xff]
      %v249 = vld [vmem:[%s210 + $0xa0] sm:$0xff]
      %v250 = vld [vmem:[%s210 + $0xa8] sm:$0xff]
      %v251 = vld [vmem:[%s210 + $0xb0] sm:$0xff]
      %v252 = vld [vmem:[%s210 + $0xb8] sm:$0xff]
      %v253 = vld [vmem:[%s210 + $0xc0] sm:$0xff]
      %v254 = vld [vmem:[%s210 + $0xc8] sm:$0xff]
      %v255 = vld [vmem:[%s210 + $0xd0] sm:$0xff]
      %v256 = vld [vmem:[%s210 + $0xd8] sm:$0xff]
      %v257 = vld [vmem:[%s210 + $0xe0] sm:$0xff]
      %v258 = vld [vmem:[%s210 + $0xe8] sm:$0xff]
      %v259 = vld [vmem:[%s210 + $0xf0] sm:$0xff]
      %v260 = vld [vmem:[%s210 + $0xf8] sm:$0xff]
      %v261 = vld [vmem:[%s210 + $0x100] sm:$0xff]
      %v262 = vld [vmem:[%s210 + $0x108] sm:$0xff]
      %v263 = vld [vmem:[%s210 + $0x110] sm:$0xff]
      %v264 = vld [vmem:[%s210 + $0x118] sm:$0xff]
      %v265 = vld [vmem:[%s210 + $0x120] sm:$0xff]
      %v266 = vld [vmem:[%s210 + $0x128] sm:$0xff]
      %v267 = vld [vmem:[%s210 + $0x130] sm:$0xff]
      %v268 = vld [vmem:[%s210 + $0x138] sm:$0xff]
      %v269 = vld [vmem:[%s215] sm:$0xf]
      %v270 = vld [vmem:[%s215 + $0x4] sm:$0xf]
      %v271 = vld [vmem:[%s215 + $0x8] sm:$0xf]
      %v272 = vld [vmem:[%s215 + $0xc] sm:$0xf]
      %v273 = vld [vmem:[%s215 + $0x10] sm:$0xf]
      %v274 = vld [vmem:[%s215 + $0x14] sm:$0xf]
      %v275 = vld [vmem:[%s215 + $0x18] sm:$0xf]
      %v276 = vld [vmem:[%s215 + $0x1c] sm:$0xf]
      %v277 = vld [vmem:[%s215 + $0x20] sm:$0xf]
      %v278 = vld [vmem:[%s215 + $0x24] sm:$0xf]
      %v279 = vld [vmem:[%s215 + $0x28] sm:$0xf]
      %v280 = vld [vmem:[%s215 + $0x2c] sm:$0xf]
      %v281 = vld [vmem:[%s215 + $0x30] sm:$0xf]
      %v282 = vld [vmem:[%s215 + $0x34] sm:$0xf]
      %v283 = vld [vmem:[%s215 + $0x38] sm:$0xf]
      %v284 = vld [vmem:[%s215 + $0x3c] sm:$0xf]
      %v285 = vld [vmem:[%s215 + $0x40] sm:$0xf]
      %v286 = vld [vmem:[%s215 + $0x44] sm:$0xf]
      %v287 = vld [vmem:[%s215 + $0x48] sm:$0xf]
      %v288 = vld [vmem:[%s215 + $0x4c] sm:$0xf]
      %v289 = vld [vmem:[%s215 + $0x50] sm:$0xf]
      %v290 = vld [vmem:[%s215 + $0x54] sm:$0xf]
      %v291 = vld [vmem:[%s215 + $0x58] sm:$0xf]
      %v292 = vld [vmem:[%s215 + $0x5c] sm:$0xf]
      %v293 = vld [vmem:[%s215 + $0x60] sm:$0xf]
      %v294 = vld [vmem:[%s215 + $0x64] sm:$0xf]
      %v295 = vld [vmem:[%s215 + $0x68] sm:$0xf]
      %v296 = vld [vmem:[%s215 + $0x6c] sm:$0xf]
      %v297 = vld [vmem:[%s215 + $0x70] sm:$0xf]
      %v298 = vld [vmem:[%s215 + $0x74] sm:$0xf]
      %v299 = vld [vmem:[%s215 + $0x78] sm:$0xf]
      %v300 = vld [vmem:[%s215 + $0x7c] sm:$0xf]
      %v301 = vld [vmem:[%s215 + $0x80] sm:$0xf]
      %v302 = vld [vmem:[%s215 + $0x84] sm:$0xf]
      %v303 = vld [vmem:[%s215 + $0x88] sm:$0xf]
      %v304 = vld [vmem:[%s215 + $0x8c] sm:$0xf]
      %v305 = vld [vmem:[%s215 + $0x90] sm:$0xf]
      %v306 = vld [vmem:[%s215 + $0x94] sm:$0xf]
      %v307 = vld [vmem:[%s215 + $0x98] sm:$0xf]
      %v308 = vld [vmem:[%s215 + $0x9c] sm:$0xf]
      %v309 = vld [vmem:[%s215 + $0xa0] sm:$0xf]
      %v310 = vld [vmem:[%s215 + $0xa4] sm:$0xf]
      %v311 = vld [vmem:[%s215 + $0xa8] sm:$0xf]
      %v312 = vld [vmem:[%s215 + $0xac] sm:$0xf]
      %v313 = vld [vmem:[%s215 + $0xb0] sm:$0xf]
      %v314 = vld [vmem:[%s215 + $0xb4] sm:$0xf]
      %v315 = vld [vmem:[%s215 + $0xb8] sm:$0xf]
      %v316 = vld [vmem:[%s215 + $0xbc] sm:$0xf]
      %v317 = vld [vmem:[%s215 + $0xc0] sm:$0xf]
      %v318 = vld [vmem:[%s215 + $0xc4] sm:$0xf]
      %v319 = vld [vmem:[%s215 + $0xc8] sm:$0xf]
      %v320 = vld [vmem:[%s215 + $0xcc] sm:$0xf]
      %v321 = vld [vmem:[%s215 + $0xd0] sm:$0xf]
      %v322 = vld [vmem:[%s215 + $0xd4] sm:$0xf]
      %v323 = vld [vmem:[%s215 + $0xd8] sm:$0xf]
      %v324 = vld [vmem:[%s215 + $0xdc] sm:$0xf]
      %v325 = vld [vmem:[%s215 + $0xe0] sm:$0xf]
      %v326 = vld [vmem:[%s215 + $0xe4] sm:$0xf]
      %v327 = vld [vmem:[%s215 + $0xe8] sm:$0xf]
      %v328 = vld [vmem:[%s215 + $0xec] sm:$0xf]
      %v329 = vld [vmem:[%s215 + $0xf0] sm:$0xf]
      %v330 = vld [vmem:[%s215 + $0xf4] sm:$0xf]
      %v331 = vld [vmem:[%s215 + $0xf8] sm:$0xf]
      %v332 = vld [vmem:[%s215 + $0xfc] sm:$0xf]
      %v333 = vld [vmem:[%s215 + $0x100] sm:$0xf]
      %v334 = vld [vmem:[%s215 + $0x104] sm:$0xf]
      %v335 = vld [vmem:[%s215 + $0x108] sm:$0xf]
      %v336 = vld [vmem:[%s215 + $0x10c] sm:$0xf]
      %v337 = vld [vmem:[%s215 + $0x110] sm:$0xf]
      %v338 = vld [vmem:[%s215 + $0x114] sm:$0xf]
      %v339 = vld [vmem:[%s215 + $0x118] sm:$0xf]
      %v340 = vld [vmem:[%s215 + $0x11c] sm:$0xf]
      %v341 = vld [vmem:[%s215 + $0x120] sm:$0xf]
      %v342 = vld [vmem:[%s215 + $0x124] sm:$0xf]
      %v343 = vld [vmem:[%s215 + $0x128] sm:$0xf]
      %v344 = vld [vmem:[%s215 + $0x12c] sm:$0xf]
      %v345 = vld [vmem:[%s215 + $0x130] sm:$0xf]
      %v346 = vld [vmem:[%s215 + $0x134] sm:$0xf]
      %v347 = vld [vmem:[%s215 + $0x138] sm:$0xf]
      %v348 = vld [vmem:[%s215 + $0x13c] sm:$0xf]
      %v349 = vld [vmem:[%s215 + $0x140] sm:$0xf]
      %v350 = vld [vmem:[%s215 + $0x144] sm:$0xf]
      %v351 = vld [vmem:[%s215 + $0x148] sm:$0xf]
      %v352 = vld [vmem:[%s215 + $0x14c] sm:$0xf]
      %v353 = vld [vmem:[%s215 + $0x150] sm:$0xf]
      %v354 = vld [vmem:[%s215 + $0x154] sm:$0xf]
      %v355 = vld [vmem:[%s215 + $0x158] sm:$0xf]
      %v356 = vld [vmem:[%s215 + $0x15c] sm:$0xf]
      %v357 = vld [vmem:[%s215 + $0x160] sm:$0xf]
      %v358 = vld [vmem:[%s215 + $0x164] sm:$0xf]
      %v359 = vld [vmem:[%s215 + $0x168] sm:$0xf]
      %v360 = vld [vmem:[%s215 + $0x16c] sm:$0xf]
      %v361 = vld [vmem:[%s215 + $0x170] sm:$0xf]
      %v362 = vld [vmem:[%s215 + $0x174] sm:$0xf]
      %v363 = vld [vmem:[%s215 + $0x178] sm:$0xf]
      %v364 = vld [vmem:[%s215 + $0x17c] sm:$0xf]
      %v365 = vld [vmem:[%s215 + $0x180] sm:$0xf]
      %v366 = vld [vmem:[%s215 + $0x184] sm:$0xf]
      %v367 = vld [vmem:[%s215 + $0x188] sm:$0xf]
      %v368 = vld [vmem:[%s215 + $0x18c] sm:$0xf]
      %v369 = vld [vmem:[%s215 + $0x190] sm:$0xf]
      %v370 = vld [vmem:[%s215 + $0x194] sm:$0xf]
      %v371 = vld [vmem:[%s215 + $0x198] sm:$0xf]
      %v372 = vld [vmem:[%s215 + $0x19c] sm:$0xf]
      %v373 = vld [vmem:[%s215 + $0x1a0] sm:$0xf]
      %v374 = vld [vmem:[%s215 + $0x1a4] sm:$0xf]
      %v375 = vld [vmem:[%s215 + $0x1a8] sm:$0xf]
      %v376 = vld [vmem:[%s215 + $0x1ac] sm:$0xf]
      %v377 = vld [vmem:[%s215 + $0x1b0] sm:$0xf]
      %v378 = vld [vmem:[%s215 + $0x1b4] sm:$0xf]
      %v379 = vld [vmem:[%s215 + $0x1b8] sm:$0xf]
      %v380 = vld [vmem:[%s215 + $0x1bc] sm:$0xf]
      %v381 = vld [vmem:[%s215 + $0x1c0] sm:$0xf]
      %v382 = vld [vmem:[%s215 + $0x1c4] sm:$0xf]
      %v383 = vld [vmem:[%s215 + $0x1c8] sm:$0xf]
      %v384 = vld [vmem:[%s215 + $0x1cc] sm:$0xf]
      %v385 = vld [vmem:[%s215 + $0x1d0] sm:$0xf]
      %v386 = vld [vmem:[%s215 + $0x1d4] sm:$0xf]
      %v387 = vld [vmem:[%s215 + $0x1d8] sm:$0xf]
      %v388 = vld [vmem:[%s215 + $0x1dc] sm:$0xf]
      %v389 = vld [vmem:[%s215 + $0x1e0] sm:$0xf]
      %v390 = vld [vmem:[%s215 + $0x1e4] sm:$0xf]
      %v391 = vld [vmem:[%s215 + $0x1e8] sm:$0xf]
      %v392 = vld [vmem:[%s215 + $0x1ec] sm:$0xf]
      %v393 = vld [vmem:[%s215 + $0x1f0] sm:$0xf]
      %v394 = vld [vmem:[%s215 + $0x1f4] sm:$0xf]
      %v395 = vld [vmem:[%s215 + $0x1f8] sm:$0xf]
      %v396 = vld [vmem:[%s215 + $0x1fc] sm:$0xf]
      %v397 = vld [vmem:[%s215 + $0x200] sm:$0xf]
      %v398 = vld [vmem:[%s215 + $0x204] sm:$0xf]
      %v399 = vld [vmem:[%s215 + $0x208] sm:$0xf]
      %v400 = vld [vmem:[%s215 + $0x20c] sm:$0xf]
      %v401 = vld [vmem:[%s215 + $0x210] sm:$0xf]
      %v402 = vld [vmem:[%s215 + $0x214] sm:$0xf]
      %v403 = vld [vmem:[%s215 + $0x218] sm:$0xf]
      %v404 = vld [vmem:[%s215 + $0x21c] sm:$0xf]
      %v405 = vld [vmem:[%s215 + $0x220] sm:$0xf]
      %v406 = vld [vmem:[%s215 + $0x224] sm:$0xf]
      %v407 = vld [vmem:[%s215 + $0x228] sm:$0xf]
      %v408 = vld [vmem:[%s215 + $0x22c] sm:$0xf]
      %v409 = vld [vmem:[%s215 + $0x230] sm:$0xf]
      %v410 = vld [vmem:[%s215 + $0x234] sm:$0xf]
      %v411 = vld [vmem:[%s215 + $0x238] sm:$0xf]
      %v412 = vld [vmem:[%s215 + $0x23c] sm:$0xf]
      %v413 = vld [vmem:[%s215 + $0x240] sm:$0xf]
      %v414 = vld [vmem:[%s215 + $0x244] sm:$0xf]
      %v415 = vld [vmem:[%s215 + $0x248] sm:$0xf]
      %v416 = vld [vmem:[%s215 + $0x24c] sm:$0xf]
      %v417 = vld [vmem:[%s215 + $0x250] sm:$0xf]
      %v418 = vld [vmem:[%s215 + $0x254] sm:$0xf]
      %v419 = vld [vmem:[%s215 + $0x258] sm:$0xf]
      %v420 = vld [vmem:[%s215 + $0x25c] sm:$0xf]
      %v421 = vld [vmem:[%s215 + $0x260] sm:$0xf]
      %v422 = vld [vmem:[%s215 + $0x264] sm:$0xf]
      %v423 = vld [vmem:[%s215 + $0x268] sm:$0xf]
      %v424 = vld [vmem:[%s215 + $0x26c] sm:$0xf]
      %v425 = vld [vmem:[%s215 + $0x270] sm:$0xf]
      %v426 = vld [vmem:[%s215 + $0x274] sm:$0xf]
      %v427 = vld [vmem:[%s215 + $0x278] sm:$0xf]
      %v428 = vld [vmem:[%s215 + $0x27c] sm:$0xf]
      %v429 = vld [vmem:[%s218] sm:$0x1]
      %v431 = vlaneseq
      %v432 = vshrl.u32 %v431, 7
      %v433 = vsub.s32 0, %v432
      %v434 = vrot.slane %v429, %v433
      %v476 = vunpack.c.l.b16 %v229
      %v477 = vunpack.c.h.b16 %v229
      %v478 = vunpack.c.l.b16 %v230
      %v479 = vunpack.c.h.b16 %v230
      %v480 = vunpack.c.l.b16 %v231
      %v481 = vunpack.c.h.b16 %v231
      %v482 = vunpack.c.l.b16 %v232
      %v483 = vunpack.c.h.b16 %v232
      %v484 = vunpack.c.l.b16 %v233
      %v485 = vunpack.c.h.b16 %v233
      %v486 = vunpack.c.l.b16 %v234
      %v487 = vunpack.c.h.b16 %v234
      %v488 = vunpack.c.l.b16 %v235
      %v489 = vunpack.c.h.b16 %v235
      %v490 = vunpack.c.l.b16 %v236
      %v491 = vunpack.c.h.b16 %v236
      %v492 = vunpack.c.l.b16 %v237
      %v493 = vunpack.c.h.b16 %v237
      %v494 = vunpack.c.l.b16 %v238
      %v495 = vunpack.c.h.b16 %v238
      %v496 = vunpack.c.l.b16 %v239
      %v497 = vunpack.c.h.b16 %v239
      %v498 = vunpack.c.l.b16 %v240
      %v499 = vunpack.c.h.b16 %v240
      %v500 = vunpack.c.l.b16 %v241
      %v501 = vunpack.c.h.b16 %v241
      %v502 = vunpack.c.l.b16 %v242
      %v503 = vunpack.c.h.b16 %v242
      %v504 = vunpack.c.l.b16 %v243
      %v505 = vunpack.c.h.b16 %v243
      %v506 = vunpack.c.l.b16 %v244
      %v507 = vunpack.c.h.b16 %v244
      %v508 = vunpack.c.l.b16 %v245
      %v509 = vunpack.c.h.b16 %v245
      %v510 = vunpack.c.l.b16 %v246
      %v511 = vunpack.c.h.b16 %v246
      %v512 = vunpack.c.l.b16 %v247
      %v513 = vunpack.c.h.b16 %v247
      %v514 = vunpack.c.l.b16 %v248
      %v515 = vunpack.c.h.b16 %v248
      %v516 = vunpack.c.l.b16 %v249
      %v517 = vunpack.c.h.b16 %v249
      %v518 = vunpack.c.l.b16 %v250
      %v519 = vunpack.c.h.b16 %v250
      %v520 = vunpack.c.l.b16 %v251
      %v521 = vunpack.c.h.b16 %v251
      %v522 = vunpack.c.l.b16 %v252
      %v523 = vunpack.c.h.b16 %v252
      %v524 = vunpack.c.l.b16 %v253
      %v525 = vunpack.c.h.b16 %v253
      %v526 = vunpack.c.l.b16 %v254
      %v527 = vunpack.c.h.b16 %v254
      %v528 = vunpack.c.l.b16 %v255
      %v529 = vunpack.c.h.b16 %v255
      %v530 = vunpack.c.l.b16 %v256
      %v531 = vunpack.c.h.b16 %v256
      %v532 = vunpack.c.l.b16 %v257
      %v533 = vunpack.c.h.b16 %v257
      %v534 = vunpack.c.l.b16 %v258
      %v535 = vunpack.c.h.b16 %v258
      %v536 = vunpack.c.l.b16 %v259
      %v537 = vunpack.c.h.b16 %v259
      %v538 = vunpack.c.l.b16 %v260
      %v539 = vunpack.c.h.b16 %v260
      %v540 = vunpack.c.l.b16 %v261
      %v541 = vunpack.c.h.b16 %v261
      %v542 = vunpack.c.l.b16 %v262
      %v543 = vunpack.c.h.b16 %v262
      %v544 = vunpack.c.l.b16 %v263
      %v545 = vunpack.c.h.b16 %v263
      %v546 = vunpack.c.l.b16 %v264
      %v547 = vunpack.c.h.b16 %v264
      %v548 = vunpack.c.l.b16 %v265
      %v549 = vunpack.c.h.b16 %v265
      %v550 = vunpack.c.l.b16 %v266
      %v551 = vunpack.c.h.b16 %v266
      %v552 = vunpack.c.l.b16 %v267
      %v553 = vunpack.c.h.b16 %v267
      %v554 = vunpack.c.l.b16 %v268
      %v555 = vunpack.c.h.b16 %v268
      %v556 = vpack.c.b16 %v486, %v476
      %v557 = vpack.c.b16 %v487, %v477
      %v558 = vpack.c.b16 %v488, %v478
      %v559 = vpack.c.b16 %v489, %v479
      %v560 = vpack.c.b16 %v490, %v480
      %v561 = vpack.c.b16 %v491, %v481
      %v562 = vpack.c.b16 %v492, %v482
      %v563 = vpack.c.b16 %v493, %v483
      %v564 = vpack.c.b16 %v494, %v484
      %v565 = vpack.c.b16 %v495, %v485
      %v566 = vpack.c.b16 %v506, %v496
      %v567 = vpack.c.b16 %v507, %v497
      %v568 = vpack.c.b16 %v508, %v498
      %v569 = vpack.c.b16 %v509, %v499
      %v570 = vpack.c.b16 %v510, %v500
      %v571 = vpack.c.b16 %v511, %v501
      %v572 = vpack.c.b16 %v512, %v502
      %v573 = vpack.c.b16 %v513, %v503
      %v574 = vpack.c.b16 %v514, %v504
      %v575 = vpack.c.b16 %v515, %v505
      %v576 = vpack.c.b16 %v526, %v516
      %v577 = vpack.c.b16 %v527, %v517
      %v578 = vpack.c.b16 %v528, %v518
      %v579 = vpack.c.b16 %v529, %v519
      %v580 = vpack.c.b16 %v530, %v520
      %v581 = vpack.c.b16 %v531, %v521
      %v582 = vpack.c.b16 %v532, %v522
      %v583 = vpack.c.b16 %v533, %v523
      %v584 = vpack.c.b16 %v534, %v524
      %v585 = vpack.c.b16 %v535, %v525
      %v586 = vpack.c.b16 %v546, %v536
      %v587 = vpack.c.b16 %v547, %v537
      %v588 = vpack.c.b16 %v548, %v538
      %v589 = vpack.c.b16 %v549, %v539
      %v590 = vpack.c.b16 %v550, %v540
      %v591 = vpack.c.b16 %v551, %v541
      %v592 = vpack.c.b16 %v552, %v542
      %v593 = vpack.c.b16 %v553, %v543
      %v594 = vpack.c.b16 %v554, %v544
      %v595 = vpack.c.b16 %v555, %v545
      %v796 = vunpack.c.l.b16 %v269
      %v797 = vunpack.c.l.b16 %v270
      %v798 = vunpack.c.l.b16 %v271
      %v799 = vunpack.c.l.b16 %v272
      %v800 = vunpack.c.l.b16 %v273
      %v801 = vunpack.c.l.b16 %v274
      %v802 = vunpack.c.l.b16 %v275
      %v803 = vunpack.c.l.b16 %v276
      %v804 = vunpack.c.l.b16 %v277
      %v805 = vunpack.c.l.b16 %v278
      %v806 = vunpack.c.l.b16 %v279
      %v807 = vunpack.c.l.b16 %v280
      %v808 = vunpack.c.l.b16 %v281
      %v809 = vunpack.c.l.b16 %v282
      %v810 = vunpack.c.l.b16 %v283
      %v811 = vunpack.c.l.b16 %v284
      %v812 = vunpack.c.l.b16 %v285
      %v813 = vunpack.c.l.b16 %v286
      %v814 = vunpack.c.l.b16 %v287
      %v815 = vunpack.c.l.b16 %v288
      %v816 = vunpack.c.l.b16 %v289
      %v817 = vunpack.c.l.b16 %v290
      %v818 = vunpack.c.l.b16 %v291
      %v819 = vunpack.c.l.b16 %v292
      %v820 = vunpack.c.l.b16 %v293
      %v821 = vunpack.c.l.b16 %v294
      %v822 = vunpack.c.l.b16 %v295
      %v823 = vunpack.c.l.b16 %v296
      %v824 = vunpack.c.l.b16 %v297
      %v825 = vunpack.c.l.b16 %v298
      %v826 = vunpack.c.l.b16 %v299
      %v827 = vunpack.c.l.b16 %v300
      %v828 = vunpack.c.l.b16 %v301
      %v829 = vunpack.c.l.b16 %v302
      %v830 = vunpack.c.l.b16 %v303
      %v831 = vunpack.c.l.b16 %v304
      %v832 = vunpack.c.l.b16 %v305
      %v833 = vunpack.c.l.b16 %v306
      %v834 = vunpack.c.l.b16 %v307
      %v835 = vunpack.c.l.b16 %v308
      %v836 = vunpack.c.l.b16 %v309
      %v837 = vunpack.c.l.b16 %v310
      %v838 = vunpack.c.l.b16 %v311
      %v839 = vunpack.c.l.b16 %v312
      %v840 = vunpack.c.l.b16 %v313
      %v841 = vunpack.c.l.b16 %v314
      %v842 = vunpack.c.l.b16 %v315
      %v843 = vunpack.c.l.b16 %v316
      %v844 = vunpack.c.l.b16 %v317
      %v845 = vunpack.c.l.b16 %v318
      %v846 = vunpack.c.l.b16 %v319
      %v847 = vunpack.c.l.b16 %v320
      %v848 = vunpack.c.l.b16 %v321
      %v849 = vunpack.c.l.b16 %v322
      %v850 = vunpack.c.l.b16 %v323
      %v851 = vunpack.c.l.b16 %v324
      %v852 = vunpack.c.l.b16 %v325
      %v853 = vunpack.c.l.b16 %v326
      %v854 = vunpack.c.l.b16 %v327
      %v855 = vunpack.c.l.b16 %v328
      %v856 = vunpack.c.l.b16 %v329
      %v857 = vunpack.c.l.b16 %v330
      %v858 = vunpack.c.l.b16 %v331
      %v859 = vunpack.c.l.b16 %v332
      %v860 = vunpack.c.l.b16 %v333
      %v861 = vunpack.c.l.b16 %v334
      %v862 = vunpack.c.l.b16 %v335
      %v863 = vunpack.c.l.b16 %v336
      %v864 = vunpack.c.l.b16 %v337
      %v865 = vunpack.c.l.b16 %v338
      %v866 = vunpack.c.l.b16 %v339
      %v867 = vunpack.c.l.b16 %v340
      %v868 = vunpack.c.l.b16 %v341
      %v869 = vunpack.c.l.b16 %v342
      %v870 = vunpack.c.l.b16 %v343
      %v871 = vunpack.c.l.b16 %v344
      %v872 = vunpack.c.l.b16 %v345
      %v873 = vunpack.c.l.b16 %v346
      %v874 = vunpack.c.l.b16 %v347
      %v875 = vunpack.c.l.b16 %v348
      %v876 = vunpack.c.l.b16 %v349
      %v877 = vunpack.c.l.b16 %v350
      %v878 = vunpack.c.l.b16 %v351
      %v879 = vunpack.c.l.b16 %v352
      %v880 = vunpack.c.l.b16 %v353
      %v881 = vunpack.c.l.b16 %v354
      %v882 = vunpack.c.l.b16 %v355
      %v883 = vunpack.c.l.b16 %v356
      %v884 = vunpack.c.l.b16 %v357
      %v885 = vunpack.c.l.b16 %v358
      %v886 = vunpack.c.l.b16 %v359
      %v887 = vunpack.c.l.b16 %v360
      %v888 = vunpack.c.l.b16 %v361
      %v889 = vunpack.c.l.b16 %v362
      %v890 = vunpack.c.l.b16 %v363
      %v891 = vunpack.c.l.b16 %v364
      %v892 = vunpack.c.l.b16 %v365
      %v893 = vunpack.c.l.b16 %v366
      %v894 = vunpack.c.l.b16 %v367
      %v895 = vunpack.c.l.b16 %v368
      %v896 = vunpack.c.l.b16 %v369
      %v897 = vunpack.c.l.b16 %v370
      %v898 = vunpack.c.l.b16 %v371
      %v899 = vunpack.c.l.b16 %v372
      %v900 = vunpack.c.l.b16 %v373
      %v901 = vunpack.c.l.b16 %v374
      %v902 = vunpack.c.l.b16 %v375
      %v903 = vunpack.c.l.b16 %v376
      %v904 = vunpack.c.l.b16 %v377
      %v905 = vunpack.c.l.b16 %v378
      %v906 = vunpack.c.l.b16 %v379
      %v907 = vunpack.c.l.b16 %v380
      %v908 = vunpack.c.l.b16 %v381
      %v909 = vunpack.c.l.b16 %v382
      %v910 = vunpack.c.l.b16 %v383
      %v911 = vunpack.c.l.b16 %v384
      %v912 = vunpack.c.l.b16 %v385
      %v913 = vunpack.c.l.b16 %v386
      %v914 = vunpack.c.l.b16 %v387
      %v915 = vunpack.c.l.b16 %v388
      %v916 = vunpack.c.l.b16 %v389
      %v917 = vunpack.c.l.b16 %v390
      %v918 = vunpack.c.l.b16 %v391
      %v919 = vunpack.c.l.b16 %v392
      %v920 = vunpack.c.l.b16 %v393
      %v921 = vunpack.c.l.b16 %v394
      %v922 = vunpack.c.l.b16 %v395
      %v923 = vunpack.c.l.b16 %v396
      %v924 = vunpack.c.l.b16 %v397
      %v925 = vunpack.c.l.b16 %v398
      %v926 = vunpack.c.l.b16 %v399
      %v927 = vunpack.c.l.b16 %v400
      %v928 = vunpack.c.l.b16 %v401
      %v929 = vunpack.c.l.b16 %v402
      %v930 = vunpack.c.l.b16 %v403
      %v931 = vunpack.c.l.b16 %v404
      %v932 = vunpack.c.l.b16 %v405
      %v933 = vunpack.c.l.b16 %v406
      %v934 = vunpack.c.l.b16 %v407
      %v935 = vunpack.c.l.b16 %v408
      %v936 = vunpack.c.l.b16 %v409
      %v937 = vunpack.c.l.b16 %v410
      %v938 = vunpack.c.l.b16 %v411
      %v939 = vunpack.c.l.b16 %v412
      %v940 = vunpack.c.l.b16 %v413
      %v941 = vunpack.c.l.b16 %v414
      %v942 = vunpack.c.l.b16 %v415
      %v943 = vunpack.c.l.b16 %v416
      %v944 = vunpack.c.l.b16 %v417
      %v945 = vunpack.c.l.b16 %v418
      %v946 = vunpack.c.l.b16 %v419
      %v947 = vunpack.c.l.b16 %v420
      %v948 = vunpack.c.l.b16 %v421
      %v949 = vunpack.c.l.b16 %v422
      %v950 = vunpack.c.l.b16 %v423
      %v951 = vunpack.c.l.b16 %v424
      %v952 = vunpack.c.l.b16 %v425
      %v953 = vunpack.c.l.b16 %v426
      %v954 = vunpack.c.l.b16 %v427
      %v955 = vunpack.c.l.b16 %v428
      %v956 = vpack.c.b16 %v797, %v796
      %v957 = vpack.c.b16 %v799, %v798
      %v958 = vpack.c.b16 %v801, %v800
      %v959 = vpack.c.b16 %v803, %v802
      %v960 = vpack.c.b16 %v805, %v804
      %v961 = vpack.c.b16 %v807, %v806
      %v962 = vpack.c.b16 %v809, %v808
      %v963 = vpack.c.b16 %v811, %v810
      %v964 = vpack.c.b16 %v813, %v812
      %v965 = vpack.c.b16 %v815, %v814
      %v966 = vpack.c.b16 %v817, %v816
      %v967 = vpack.c.b16 %v819, %v818
      %v968 = vpack.c.b16 %v821, %v820
      %v969 = vpack.c.b16 %v823, %v822
      %v970 = vpack.c.b16 %v825, %v824
      %v971 = vpack.c.b16 %v827, %v826
      %v972 = vpack.c.b16 %v829, %v828
      %v973 = vpack.c.b16 %v831, %v830
      %v974 = vpack.c.b16 %v833, %v832
      %v975 = vpack.c.b16 %v835, %v834
      %v976 = vpack.c.b16 %v837, %v836
      %v977 = vpack.c.b16 %v839, %v838
      %v978 = vpack.c.b16 %v841, %v840
      %v979 = vpack.c.b16 %v843, %v842
      %v980 = vpack.c.b16 %v845, %v844
      %v981 = vpack.c.b16 %v847, %v846
      %v982 = vpack.c.b16 %v849, %v848
      %v983 = vpack.c.b16 %v851, %v850
      %v984 = vpack.c.b16 %v853, %v852
      %v985 = vpack.c.b16 %v855, %v854
      %v986 = vpack.c.b16 %v857, %v856
      %v987 = vpack.c.b16 %v859, %v858
      %v988 = vpack.c.b16 %v861, %v860
      %v989 = vpack.c.b16 %v863, %v862
      %v990 = vpack.c.b16 %v865, %v864
      %v991 = vpack.c.b16 %v867, %v866
      %v992 = vpack.c.b16 %v869, %v868
      %v993 = vpack.c.b16 %v871, %v870
      %v994 = vpack.c.b16 %v873, %v872
      %v995 = vpack.c.b16 %v875, %v874
      %v996 = vpack.c.b16 %v877, %v876
      %v997 = vpack.c.b16 %v879, %v878
      %v998 = vpack.c.b16 %v881, %v880
      %v999 = vpack.c.b16 %v883, %v882
      %v1000 = vpack.c.b16 %v885, %v884
      %v1001 = vpack.c.b16 %v887, %v886
      %v1002 = vpack.c.b16 %v889, %v888
      %v1003 = vpack.c.b16 %v891, %v890
      %v1004 = vpack.c.b16 %v893, %v892
      %v1005 = vpack.c.b16 %v895, %v894
      %v1006 = vpack.c.b16 %v897, %v896
      %v1007 = vpack.c.b16 %v899, %v898
      %v1008 = vpack.c.b16 %v901, %v900
      %v1009 = vpack.c.b16 %v903, %v902
      %v1010 = vpack.c.b16 %v905, %v904
      %v1011 = vpack.c.b16 %v907, %v906
      %v1012 = vpack.c.b16 %v909, %v908
      %v1013 = vpack.c.b16 %v911, %v910
      %v1014 = vpack.c.b16 %v913, %v912
      %v1015 = vpack.c.b16 %v915, %v914
      %v1016 = vpack.c.b16 %v917, %v916
      %v1017 = vpack.c.b16 %v919, %v918
      %v1018 = vpack.c.b16 %v921, %v920
      %v1019 = vpack.c.b16 %v923, %v922
      %v1020 = vpack.c.b16 %v925, %v924
      %v1021 = vpack.c.b16 %v927, %v926
      %v1022 = vpack.c.b16 %v929, %v928
      %v1023 = vpack.c.b16 %v931, %v930
      %v1024 = vpack.c.b16 %v933, %v932
      %v1025 = vpack.c.b16 %v935, %v934
      %v1026 = vpack.c.b16 %v937, %v936
      %v1027 = vpack.c.b16 %v939, %v938
      %v1028 = vpack.c.b16 %v941, %v940
      %v1029 = vpack.c.b16 %v943, %v942
      %v1030 = vpack.c.b16 %v945, %v944
      %v1031 = vpack.c.b16 %v947, %v946
      %v1032 = vpack.c.b16 %v949, %v948
      %v1033 = vpack.c.b16 %v951, %v950
      %v1034 = vpack.c.b16 %v953, %v952
      %v1035 = vpack.c.b16 %v955, %v954
      %1116 = vmatprep.subr.bf16.mxu0 0
      %1117 = vmatpush1.bf16.msra.mxu0 %v956
      %1118 = vmatprep.subr.bf16.mxu0 0
      %1119 = vmatpush1.bf16.msra.mxu0 %v957
      %1120 = vmatprep.subr.bf16.mxu0 0
      %1121 = vmatpush1.bf16.msra.mxu0 %v958
      %1122 = vmatprep.subr.bf16.mxu0 0
      %1123 = vmatpush1.bf16.msra.mxu0 %v959
      %1124 = vmatprep.subr.bf16.mxu0 0
      %1125 = vmatpush1.bf16.msra.mxu0 %v960
      %1126 = vmatprep.subr.bf16.mxu0 0
      %1127 = vmatpush1.bf16.msra.mxu0 %v961
      %1128 = vmatprep.subr.bf16.mxu0 0
      %1129 = vmatpush1.bf16.msra.mxu0 %v962
      %1130 = vmatprep.subr.bf16.mxu0 0
      %1131 = vmatpush1.bf16.msra.mxu0 %v963
      %1132 = vmatprep.subr.bf16.mxu0 0
      %1133 = vmatpush1.bf16.msra.mxu0 %v964
      %1134 = vmatprep.subr.bf16.mxu0 0
      %1135 = vmatpush1.bf16.msra.mxu0 %v965
      %1136 = vmatprep.subr.bf16.mxu0 0
      %1137 = vmatpush1.bf16.msra.mxu0 %v966
      %1138 = vmatprep.subr.bf16.mxu0 0
      %1139 = vmatpush1.bf16.msra.mxu0 %v967
      %1140 = vmatprep.subr.bf16.mxu0 0
      %1141 = vmatpush1.bf16.msra.mxu0 %v968
      %1142 = vmatprep.subr.bf16.mxu0 0
      %1143 = vmatpush1.bf16.msra.mxu0 %v969
      %1144 = vmatprep.subr.bf16.mxu0 0
      %1145 = vmatpush1.bf16.msra.mxu0 %v970
      %1146 = vmatprep.subr.bf16.mxu0 0
      %1147 = vmatpush1.bf16.msra.mxu0 %v971
      %1148 = vmatprep.mubr.bf16.mxu0 %v557
      %1149 = vmatmul.mubr.bf16.gmra.mrb[0].mxu0 %v556
      %v1150 = vpop.f32.mrb[0].mxu0
      %v1151 = vadd.f32 %v434, %v1150
      %v1152 = vpop.f32.mrb[0].mxu0
      %v1153 = vpop.f32.mrb[0].mxu0
      %v1154 = vadd.f32 %v434, %v1153
      %v1155 = vpop.f32.mrb[0].mxu0
      %1156 = vmatprep.mubr.bf16.mxu0 %v567
      %1157 = vmatmul.mubr.bf16.gmra.mrb[0].mxu0 %v566
      %v1158 = vpop.f32.mrb[0].mxu0
      %v1159 = vadd.f32 %v434, %v1158
      %v1160 = vpop.f32.mrb[0].mxu0
      %v1161 = vpop.f32.mrb[0].mxu0
      %v1162 = vadd.f32 %v434, %v1161
      %v1163 = vpop.f32.mrb[0].mxu0
      %1164 = vmatprep.mubr.bf16.mxu0 %v577
      %1165 = vmatmul.mubr.bf16.gmra.mrb[0].mxu0 %v576
      %v1166 = vpop.f32.mrb[0].mxu0
      %v1167 = vadd.f32 %v434, %v1166
      %v1168 = vpop.f32.mrb[0].mxu0
      %v1169 = vpop.f32.mrb[0].mxu0
      %v1170 = vadd.f32 %v434, %v1169
      %v1171 = vpop.f32.mrb[0].mxu0
      %1172 = vmatprep.mubr.bf16.mxu0 %v587
      %1173 = vmatmul.mubr.bf16.gmra.mrb[0].mxu0 %v586
      %v1174 = vpop.f32.mrb[0].mxu0
      %v1175 = vadd.f32 %v434, %v1174
      %v1176 = vpop.f32.mrb[0].mxu0
      %v1177 = vpop.f32.mrb[0].mxu0
      %v1178 = vadd.f32 %v434, %v1177
      %v1179 = vpop.f32.mrb[0].mxu0
      %1180 = vdwg.mxu0
      %1181 = vmatprep.subr.bf16.mxu0 0
      %1182 = vmatpush1.bf16.msra.mxu0 %v972
      %1183 = vmatprep.subr.bf16.mxu0 0
      %1184 = vmatpush1.bf16.msra.mxu0 %v973
      %1185 = vmatprep.subr.bf16.mxu0 0
      %1186 = vmatpush1.bf16.msra.mxu0 %v974
      %1187 = vmatprep.subr.bf16.mxu0 0
      %1188 = vmatpush1.bf16.msra.mxu0 %v975
      %1189 = vmatprep.subr.bf16.mxu0 0
      %1190 = vmatpush1.bf16.msra.mxu0 %v976
      %1191 = vmatprep.subr.bf16.mxu0 0
      %1192 = vmatpush1.bf16.msra.mxu0 %v977
      %1193 = vmatprep.subr.bf16.mxu0 0
      %1194 = vmatpush1.bf16.msra.mxu0 %v978
      %1195 = vmatprep.subr.bf16.mxu0 0
      %1196 = vmatpush1.bf16.msra.mxu0 %v979
      %1197 = vmatprep.subr.bf16.mxu0 0
      %1198 = vmatpush1.bf16.msra.mxu0 %v980
      %1199 = vmatprep.subr.bf16.mxu0 0
      %1200 = vmatpush1.bf16.msra.mxu0 %v981
      %1201 = vmatprep.subr.bf16.mxu0 0
      %1202 = vmatpush1.bf16.msra.mxu0 %v982
      %1203 = vmatprep.subr.bf16.mxu0 0
      %1204 = vmatpush1.bf16.msra.mxu0 %v983
      %1205 = vmatprep.subr.bf16.mxu0 0
      %1206 = vmatpush1.bf16.msra.mxu0 %v984
      %1207 = vmatprep.subr.bf16.mxu0 0
      %1208 = vmatpush1.bf16.msra.mxu0 %v985
      %1209 = vmatprep.subr.bf16.mxu0 0
      %1210 = vmatpush1.bf16.msra.mxu0 %v986
      %1211 = vmatprep.subr.bf16.mxu0 0
      %1212 = vmatpush1.bf16.msra.mxu0 %v987
      %1213 = vmatprep.mubr.bf16.mxu0 %v559
      %1214 = vmatmul.mubr.bf16.gmra.mrb[0].mxu0 %v558
      %v1215 = vpop.f32.mrb[0].mxu0
      %v1216 = vadd.f32 %v1151, %v1215
      %v1217 = vpop.f32.mrb[0].mxu0
      %v1218 = vpop.f32.mrb[0].mxu0
      %v1219 = vadd.f32 %v1154, %v1218
      %v1220 = vpop.f32.mrb[0].mxu0
      %1221 = vmatprep.mubr.bf16.mxu0 %v569
      %1222 = vmatmul.mubr.bf16.gmra.mrb[0].mxu0 %v568
      %v1223 = vpop.f32.mrb[0].mxu0
      %v1224 = vadd.f32 %v1159, %v1223
      %v1225 = vpop.f32.mrb[0].mxu0
      %v1226 = vpop.f32.mrb[0].mxu0
      %v1227 = vadd.f32 %v1162, %v1226
      %v1228 = vpop.f32.mrb[0].mxu0
      %1229 = vmatprep.mubr.bf16.mxu0 %v579
      %1230 = vmatmul.mubr.bf16.gmra.mrb[0].mxu0 %v578
      %v1231 = vpop.f32.mrb[0].mxu0
      %v1232 = vadd.f32 %v1167, %v1231
      %v1233 = vpop.f32.mrb[0].mxu0
      %v1234 = vpop.f32.mrb[0].mxu0
      %v1235 = vadd.f32 %v1170, %v1234
      %v1236 = vpop.f32.mrb[0].mxu0
      %1237 = vmatprep.mubr.bf16.mxu0 %v589
      %1238 = vmatmul.mubr.bf16.gmra.mrb[0].mxu0 %v588
      %v1239 = vpop.f32.mrb[0].mxu0
      %v1240 = vadd.f32 %v1175, %v1239
      %v1241 = vpop.f32.mrb[0].mxu0
      %v1242 = vpop.f32.mrb[0].mxu0
      %v1243 = vadd.f32 %v1178, %v1242
      %v1244 = vpop.f32.mrb[0].mxu0
      %1245 = vdwg.mxu0
      %1246 = vmatprep.subr.bf16.mxu0 0
      %1247 = vmatpush1.bf16.msra.mxu0 %v988
      %1248 = vmatprep.subr.bf16.mxu0 0
      %1249 = vmatpush1.bf16.msra.mxu0 %v989
      %1250 = vmatprep.subr.bf16.mxu0 0
      %1251 = vmatpush1.bf16.msra.mxu0 %v990
      %1252 = vmatprep.subr.bf16.mxu0 0
      %1253 = vmatpush1.bf16.msra.mxu0 %v991
      %1254 = vmatprep.subr.bf16.mxu0 0
      %1255 = vmatpush1.bf16.msra.mxu0 %v992
      %1256 = vmatprep.subr.bf16.mxu0 0
      %1257 = vmatpush1.bf16.msra.mxu0 %v993
      %1258 = vmatprep.subr.bf16.mxu0 0
      %1259 = vmatpush1.bf16.msra.mxu0 %v994
      %1260 = vmatprep.subr.bf16.mxu0 0
      %1261 = vmatpush1.bf16.msra.mxu0 %v995
      %1262 = vmatprep.subr.bf16.mxu0 0
      %1263 = vmatpush1.bf16.msra.mxu0 %v996
      %1264 = vmatprep.subr.bf16.mxu0 0
      %1265 = vmatpush1.bf16.msra.mxu0 %v997
      %1266 = vmatprep.subr.bf16.mxu0 0
      %1267 = vmatpush1.bf16.msra.mxu0 %v998
      %1268 = vmatprep.subr.bf16.mxu0 0
      %1269 = vmatpush1.bf16.msra.mxu0 %v999
      %1270 = vmatprep.subr.bf16.mxu0 0
      %1271 = vmatpush1.bf16.msra.mxu0 %v1000
      %1272 = vmatprep.subr.bf16.mxu0 0
      %1273 = vmatpush1.bf16.msra.mxu0 %v1001
      %1274 = vmatprep.subr.bf16.mxu0 0
      %1275 = vmatpush1.bf16.msra.mxu0 %v1002
      %1276 = vmatprep.subr.bf16.mxu0 0
      %1277 = vmatpush1.bf16.msra.mxu0 %v1003
      %1278 = vmatprep.mubr.bf16.mxu0 %v561
      %1279 = vmatmul.mubr.bf16.gmra.mrb[0].mxu0 %v560
      %v1280 = vpop.f32.mrb[0].mxu0
      %v1281 = vadd.f32 %v1216, %v1280
      %v1282 = vpop.f32.mrb[0].mxu0
      %v1283 = vpop.f32.mrb[0].mxu0
      %v1284 = vadd.f32 %v1219, %v1283
      %v1285 = vpop.f32.mrb[0].mxu0
      %1286 = vmatprep.mubr.bf16.mxu0 %v571
      %1287 = vmatmul.mubr.bf16.gmra.mrb[0].mxu0 %v570
      %v1288 = vpop.f32.mrb[0].mxu0
      %v1289 = vadd.f32 %v1224, %v1288
      %v1290 = vpop.f32.mrb[0].mxu0
      %v1291 = vpop.f32.mrb[0].mxu0
      %v1292 = vadd.f32 %v1227, %v1291
      %v1293 = vpop.f32.mrb[0].mxu0
      %1294 = vmatprep.mubr.bf16.mxu0 %v581
      %1295 = vmatmul.mubr.bf16.gmra.mrb[0].mxu0 %v580
      %v1296 = vpop.f32.mrb[0].mxu0
      %v1297 = vadd.f32 %v1232, %v1296
      %v1298 = vpop.f32.mrb[0].mxu0
      %v1299 = vpop.f32.mrb[0].mxu0
      %v1300 = vadd.f32 %v1235, %v1299
      %v1301 = vpop.f32.mrb[0].mxu0
      %1302 = vmatprep.mubr.bf16.mxu0 %v591
      %1303 = vmatmul.mubr.bf16.gmra.mrb[0].mxu0 %v590
      %v1304 = vpop.f32.mrb[0].mxu0
      %v1305 = vadd.f32 %v1240, %v1304
      %v1306 = vpop.f32.mrb[0].mxu0
      %v1307 = vpop.f32.mrb[0].mxu0
      %v1308 = vadd.f32 %v1243, %v1307
      %v1309 = vpop.f32.mrb[0].mxu0
      %1310 = vdwg.mxu0
      %1311 = vmatprep.subr.bf16.mxu0 0
      %1312 = vmatpush1.bf16.msra.mxu0 %v1004
      %1313 = vmatprep.subr.bf16.mxu0 0
      %1314 = vmatpush1.bf16.msra.mxu0 %v1005
      %1315 = vmatprep.subr.bf16.mxu0 0
      %1316 = vmatpush1.bf16.msra.mxu0 %v1006
      %1317 = vmatprep.subr.bf16.mxu0 0
      %1318 = vmatpush1.bf16.msra.mxu0 %v1007
      %1319 = vmatprep.subr.bf16.mxu0 0
      %1320 = vmatpush1.bf16.msra.mxu0 %v1008
      %1321 = vmatprep.subr.bf16.mxu0 0
      %1322 = vmatpush1.bf16.msra.mxu0 %v1009
      %1323 = vmatprep.subr.bf16.mxu0 0
      %1324 = vmatpush1.bf16.msra.mxu0 %v1010
      %1325 = vmatprep.subr.bf16.mxu0 0
      %1326 = vmatpush1.bf16.msra.mxu0 %v1011
      %1327 = vmatprep.subr.bf16.mxu0 0
      %1328 = vmatpush1.bf16.msra.mxu0 %v1012
      %1329 = vmatprep.subr.bf16.mxu0 0
      %1330 = vmatpush1.bf16.msra.mxu0 %v1013
      %1331 = vmatprep.subr.bf16.mxu0 0
      %1332 = vmatpush1.bf16.msra.mxu0 %v1014
      %1333 = vmatprep.subr.bf16.mxu0 0
      %1334 = vmatpush1.bf16.msra.mxu0 %v1015
      %1335 = vmatprep.subr.bf16.mxu0 0
      %1336 = vmatpush1.bf16.msra.mxu0 %v1016
      %1337 = vmatprep.subr.bf16.mxu0 0
      %1338 = vmatpush1.bf16.msra.mxu0 %v1017
      %1339 = vmatprep.subr.bf16.mxu0 0
      %1340 = vmatpush1.bf16.msra.mxu0 %v1018
      %1341 = vmatprep.subr.bf16.mxu0 0
      %1342 = vmatpush1.bf16.msra.mxu0 %v1019
      %1343 = vmatprep.mubr.bf16.mxu0 %v563
      %1344 = vmatmul.mubr.bf16.gmra.mrb[0].mxu0 %v562
      %v1345 = vpop.f32.mrb[0].mxu0
      %v1346 = vadd.f32 %v1281, %v1345
      %v1347 = vpop.f32.mrb[0].mxu0
      %v1348 = vpop.f32.mrb[0].mxu0
      %v1349 = vadd.f32 %v1284, %v1348
      %v1350 = vpop.f32.mrb[0].mxu0
      %1351 = vmatprep.mubr.bf16.mxu0 %v573
      %1352 = vmatmul.mubr.bf16.gmra.mrb[0].mxu0 %v572
      %v1353 = vpop.f32.mrb[0].mxu0
      %v1354 = vadd.f32 %v1289, %v1353
      %v1355 = vpop.f32.mrb[0].mxu0
      %v1356 = vpop.f32.mrb[0].mxu0
      %v1357 = vadd.f32 %v1292, %v1356
      %v1358 = vpop.f32.mrb[0].mxu0
      %1359 = vmatprep.mubr.bf16.mxu0 %v583
      %1360 = vmatmul.mubr.bf16.gmra.mrb[0].mxu0 %v582
      %v1361 = vpop.f32.mrb[0].mxu0
      %v1362 = vadd.f32 %v1297, %v1361
      %v1363 = vpop.f32.mrb[0].mxu0
      %v1364 = vpop.f32.mrb[0].mxu0
      %v1365 = vadd.f32 %v1300, %v1364
      %v1366 = vpop.f32.mrb[0].mxu0
      %1367 = vmatprep.mubr.bf16.mxu0 %v593
      %1368 = vmatmul.mubr.bf16.gmra.mrb[0].mxu0 %v592
      %v1369 = vpop.f32.mrb[0].mxu0
      %v1370 = vadd.f32 %v1305, %v1369
      %v1371 = vpop.f32.mrb[0].mxu0
      %v1372 = vpop.f32.mrb[0].mxu0
      %v1373 = vadd.f32 %v1308, %v1372
      %v1374 = vpop.f32.mrb[0].mxu0
      %1375 = vdwg.mxu0
      %1376 = vmatprep.subr.bf16.mxu0 0
      %1377 = vmatpush1.bf16.msra.mxu0 %v1020
      %1378 = vmatprep.subr.bf16.mxu0 0
      %1379 = vmatpush1.bf16.msra.mxu0 %v1021
      %1380 = vmatprep.subr.bf16.mxu0 0
      %1381 = vmatpush1.bf16.msra.mxu0 %v1022
      %1382 = vmatprep.subr.bf16.mxu0 0
      %1383 = vmatpush1.bf16.msra.mxu0 %v1023
      %1384 = vmatprep.subr.bf16.mxu0 0
      %1385 = vmatpush1.bf16.msra.mxu0 %v1024
      %1386 = vmatprep.subr.bf16.mxu0 0
      %1387 = vmatpush1.bf16.msra.mxu0 %v1025
      %1388 = vmatprep.subr.bf16.mxu0 0
      %1389 = vmatpush1.bf16.msra.mxu0 %v1026
      %1390 = vmatprep.subr.bf16.mxu0 0
      %1391 = vmatpush1.bf16.msra.mxu0 %v1027
      %1392 = vmatprep.subr.bf16.mxu0 0
      %1393 = vmatpush1.bf16.msra.mxu0 %v1028
      %1394 = vmatprep.subr.bf16.mxu0 0
      %1395 = vmatpush1.bf16.msra.mxu0 %v1029
      %1396 = vmatprep.subr.bf16.mxu0 0
      %1397 = vmatpush1.bf16.msra.mxu0 %v1030
      %1398 = vmatprep.subr.bf16.mxu0 0
      %1399 = vmatpush1.bf16.msra.mxu0 %v1031
      %1400 = vmatprep.subr.bf16.mxu0 0
      %1401 = vmatpush1.bf16.msra.mxu0 %v1032
      %1402 = vmatprep.subr.bf16.mxu0 0
      %1403 = vmatpush1.bf16.msra.mxu0 %v1033
      %1404 = vmatprep.subr.bf16.mxu0 0
      %1405 = vmatpush1.bf16.msra.mxu0 %v1034
      %1406 = vmatprep.subr.bf16.mxu0 0
      %1407 = vmatpush1.bf16.msra.mxu0 %v1035
      %1408 = vmatprep.mubr.bf16.mxu0 %v565
      %1409 = vmatmul.mubr.bf16.gmra.mrb[0].mxu0 %v564
      %v1410 = vpop.f32.mrb[0].mxu0
      %v1411 = vadd.f32 %v1346, %v1410
      %v1412 = vpop.f32.mrb[0].mxu0
      %v1413 = vpop.f32.mrb[0].mxu0
      %v1414 = vadd.f32 %v1349, %v1413
      %v1415 = vpop.f32.mrb[0].mxu0
      %1416 = vmatprep.mubr.bf16.mxu0 %v575
      %1417 = vmatmul.mubr.bf16.gmra.mrb[0].mxu0 %v574
      %v1418 = vpop.f32.mrb[0].mxu0
      %v1419 = vadd.f32 %v1354, %v1418
      %v1420 = vpop.f32.mrb[0].mxu0
      %v1421 = vpop.f32.mrb[0].mxu0
      %v1422 = vadd.f32 %v1357, %v1421
      %v1423 = vpop.f32.mrb[0].mxu0
      %1424 = vmatprep.mubr.bf16.mxu0 %v585
      %1425 = vmatmul.mubr.bf16.gmra.mrb[0].mxu0 %v584
      %v1426 = vpop.f32.mrb[0].mxu0
      %v1427 = vadd.f32 %v1362, %v1426
      %v1428 = vpop.f32.mrb[0].mxu0
      %v1429 = vpop.f32.mrb[0].mxu0
      %v1430 = vadd.f32 %v1365, %v1429
      %v1431 = vpop.f32.mrb[0].mxu0
      %1432 = vmatprep.mubr.bf16.mxu0 %v595
      %1433 = vmatmul.mubr.bf16.gmra.mrb[0].mxu0 %v594
      %v1434 = vpop.f32.mrb[0].mxu0
      %v1435 = vadd.f32 %v1370, %v1434
      %v1436 = vpop.f32.mrb[0].mxu0
      %v1437 = vpop.f32.mrb[0].mxu0
      %v1438 = vadd.f32 %v1373, %v1437
      %v1439 = vpop.f32.mrb[0].mxu0
      %1440 = vdwg.mxu0
      %v1441 = vmax.f32 %v1411, 0.0
      %v1442 = vmax.f32 %v1414, 0.0
      %v1443 = vmax.f32 %v1419, 0.0
      %v1444 = vmax.f32 %v1422, 0.0
      %v1445 = vmax.f32 %v1427, 0.0
      %v1446 = vmax.f32 %v1430, 0.0
      %v1447 = vmax.f32 %v1435, 0.0
      %v1448 = vmax.f32 %v1438, 0.0
      %v1449 = vpack.c.bf16 %v1442, %v1441
      %v1450 = vpack.c.bf16 %v1444, %v1443
      %v1451 = vpack.c.bf16 %v1446, %v1445
      %v1452 = vpack.c.bf16 %v1448, %v1447
      %v1457 = vunpack.c.l.b16 %v1449
      %v1458 = vunpack.c.h.b16 %v1449
      %v1459 = vunpack.c.l.b16 %v1450
      %v1460 = vunpack.c.h.b16 %v1450
      %v1461 = vunpack.c.l.b16 %v1451
      %v1462 = vunpack.c.h.b16 %v1451
      %v1463 = vunpack.c.l.b16 %v1452
      %v1464 = vunpack.c.h.b16 %v1452
      %v1465 = vpack.c.b16 %v1457, %v1457
      %v1466 = vpack.c.b16 %v1458, %v1458
      %v1467 = vpack.c.b16 %v1459, %v1459
      %v1468 = vpack.c.b16 %v1460, %v1460
      %v1469 = vpack.c.b16 %v1461, %v1461
      %v1470 = vpack.c.b16 %v1462, %v1462
      %v1471 = vpack.c.b16 %v1463, %v1463
      %v1472 = vpack.c.b16 %v1464, %v1464
      %1481 = vst [vmem:[%s226] sm:$0xf] %v1465
      %1482 = vst [vmem:[%s226 + $0x4] sm:$0xf] %v1466
      %1483 = vst [vmem:[%s226 + $0x8] sm:$0xf] %v1467
      %1484 = vst [vmem:[%s226 + $0xc] sm:$0xf] %v1468
      %1485 = vst [vmem:[%s226 + $0x10] sm:$0xf] %v1469
      %1486 = vst [vmem:[%s226 + $0x14] sm:$0xf] %v1470
      %1487 = vst [vmem:[%s226 + $0x18] sm:$0xf] %v1471
      %1488 = vst [vmem:[%s226 + $0x1c] sm:$0xf] %v1472
      %s1489 = smul.u32 8, %s18
      %p1490 = scmp.lt.s32.totalorder %s1489, 15
      %s1491 = scalar_select %p1490, %s1489, 15
      %p1492 = scmp.lt.s32.totalorder %s19, 0
      %s1493 = scalar_select %p1492, %s19, 0
      %s1494 = sadd.s32 %s1493, %s1491
      %s1495 = smul.addr %s1494, 4
      %s1496 = scalar_lea.vmem %s3, %s1495
      // Predicated region
      $region33: #{_lambda_.5} parent=31 // pred_check
        %p1497 = pneg %p124
      $region34: #{_lambda_.5} parent=31 // pred_check_branch
        %1499 = sbr.rel (%p1497) target = $region36
      $region35: #{_lambda_.5} parent=31 // pred_region
        %s1500 = smul.u32 8, %s18
      $region36: #{_lambda_.5} parent=31 // pred_fallthru
        _
    $region32: #{_lambda_.5} parent=5 // pred_fallthru
      _
    %p1501 = scmp.le.s32.totalorder 2, %s9
    // Predicated region
    $region37: #{_lambda_.5} parent=5 // pred_check
      %p1502 = pneg %p1501
    $region38: #{_lambda_.5} parent=5 // pred_check_branch
      %1504 = sbr.rel (%p1502) target = $region40
    $region39: #{_lambda_.5} parent=5 // pred_region
      %s1505 = ssub.s32 %s9, 2
      // Predicated region
      $region41: #{_lambda_.5} parent=39 // pred_check
        %p1506 = pneg %p130
      $region42: #{_lambda_.5} parent=39 // pred_check_branch
        %1508 = sbr.rel (%p1506) target = $region44
      $region43: #{_lambda_.5} parent=39 // pred_region
        %s1509 = smul.u32 8, %s20
        %p1510 = scmp.lt.s32.totalorder %s1509, 15
        %s1511 = scalar_select %p1510, %s1509, 15
        %p1512 = scmp.lt.s32.totalorder %s21, 0
        %s1513 = scalar_select %p1512, %s21, 0
        %s1514 = sadd.s32 %s1513, %s1511
        %s1515 = smul.addr %s1514, 4
        %s1516 = scalar_lea.vmem %s3, %s1515
      $region44: #{_lambda_.5} parent=39 // pred_fallthru
        _
    $region40: #{_lambda_.5} parent=5 // pred_fallthru
      _
  $region6: #{_lambda_.5} parent=0 // loop_footer
    %s13 = sadd.s32 1, %s9
  $region7: #{_lambda_.5} parent=0 // loop_footer_branch
    %8 = sbr.rel target = $region3
  $region8: #{_lambda_.5} parent=0 // loop_exit
    _

// kernel: _lambda_.6
$region0: #{_lambda_.6}
  #allocation0 [shape = 'u32[]', space=smem, size = 0x4, offset = 0x4, fixed_abs, tag = 'smem constant byte address 0x4 - core index']
  #allocation1 [shape = 'u32[144,128]{1,0:T(1,128)}', space=vmem, size = 0x12000, scoped, tag = 'internal scratch']
  %s0 = inlined_call_operand.vmem [shape: bf16[128,1152], index: 0, kind: input, shape index: {}]
  %s1 = inlined_call_operand.vmem [shape: bf16[1152,128], index: 1, kind: input, shape index: {}]
  %s2 = inlined_call_operand.vmem [shape: f32[1,128], index: 2, kind: input, shape index: {}]
  %s3 = inlined_call_operand.vmem [shape: bf16[128,128], index: 3, kind: output, shape index: {}]
  %s4 = sld [smem:[#allocation0]]
  $region45: #{_lambda_.6} parent=0
    _
  %s6 = ssub.s32 1, %s4
  %s7 = scalar_select 0, %s6, %s4
  loop: start=0, step=1, limit=4
  $region2: #{_lambda_.6} parent=0 // loop_pre_header
    _
  $region3: #{_lambda_.6} parent=0 // loop_header
    %s9 = sphi 0, %s13
    %p10 = scmp.ge.s32.totalorder %s9, 4
    %s16 = sphi 0, %s28
    %s17 = sphi 0, %s24
    %s18 = sphi 0, %s16
    %s19 = sphi 0, %s17
    %s20 = sphi 0, %s18
    %s21 = sphi 0, %s19
    %s31 = sphi 0, %s33
    %s34 = sphi 0, %s31
    %s35 = sphi 0, %s34
    %s51 = sphi 0, %s35
    %s57 = sphi 0, %s59
    %s60 = sphi 0, %s57
    %s61 = sphi 0, %s60
    %s77 = sphi 0, %s61
    %s83 = sphi 0, %s85
    %s86 = sphi 0, %s83
    %s87 = sphi 0, %s86
    %s103 = sphi 0, %s87
    %s111 = sphi 0, %s113
    %s114 = sphi 0, %s111
    %s115 = sphi 0, %s114
    %s131 = sphi 0, %s115
  $region4: #{_lambda_.6} parent=0 // loop_header_branch
    %12 = sbr.rel (%p10) target = $region8
  $region5: #{_lambda_.6} parent=0 // loop_body
    %s14 = ssub.s32 %s9, 1
    %s15 = ssub.s32 %s9, 2
    %s22 = sadd.s32 1, %s17
    %p23 = scmp.ge.s32.totalorder %s22, 1
    %s24 = scalar_select %p23, 0, %s22
    %s25 = sadd.s32 1, %s16
    %s26 = scalar_select %p23, %s25, %s16
    %p27 = scmp.ge.s32.totalorder %s26, 2
    %s28 = scalar_select %p27, 0, %s26
    %s29 = ssub.s32 %s16, %s28
    %p30 = scmp.eq.s32.totalorder %s29, 0
    %s32 = sadd.s32 %s31, 1
    %s33 = scalar_select %p30, %s31, %s32
    %p36 = pneg %p30
    %p37 = scmp.eq.s32.totalorder %s9, 1
    %p38 = por %p36, %p37
    %p39 = scmp.ne.s32.totalorder %s31, %s34
    %p40 = scmp.eq.s32.totalorder %s9, 0
    %p41 = por %p39, %p40
    %p42 = scmp.ne.s32.totalorder %s31, %s34
    %p43 = scmp.eq.s32.totalorder %s14, 1
    %p44 = por %p42, %p43
    %p45 = scmp.ne.s32.totalorder %s34, %s35
    %p46 = scmp.eq.s32.totalorder %s14, 0
    %p47 = por %p45, %p46
    %p48 = scmp.ne.s32.totalorder %s34, %s35
    %p49 = scmp.eq.s32.totalorder %s15, 1
    %p50 = por %p48, %p49
    %p52 = scmp.ne.s32.totalorder %s35, %s51
    %p53 = scmp.eq.s32.totalorder %s15, 0
    %p54 = por %p52, %p53
    %s55 = ssub.s32 %s17, %s24
    %p56 = scmp.eq.s32.totalorder %s55, 0
    %s58 = sadd.s32 %s57, 1
    %s59 = scalar_select %p56, %s57, %s58
    %p62 = pneg %p56
    %p63 = scmp.eq.s32.totalorder %s9, 1
    %p64 = por %p62, %p63
    %p65 = scmp.ne.s32.totalorder %s57, %s60
    %p66 = scmp.eq.s32.totalorder %s9, 0
    %p67 = por %p65, %p66
    %p68 = scmp.ne.s32.totalorder %s57, %s60
    %p69 = scmp.eq.s32.totalorder %s14, 1
    %p70 = por %p68, %p69
    %p71 = scmp.ne.s32.totalorder %s60, %s61
    %p72 = scmp.eq.s32.totalorder %s14, 0
    %p73 = por %p71, %p72
    %p74 = scmp.ne.s32.totalorder %s60, %s61
    %p75 = scmp.eq.s32.totalorder %s15, 1
    %p76 = por %p74, %p75
    %p78 = scmp.ne.s32.totalorder %s61, %s77
    %p79 = scmp.eq.s32.totalorder %s15, 0
    %p80 = por %p78, %p79
    %s81 = ssub.s32 %s17, %s24
    %p82 = scmp.eq.s32.totalorder %s81, 0
    %s84 = sadd.s32 %s83, 1
    %s85 = scalar_select %p82, %s83, %s84
    %p88 = pneg %p82
    %p89 = scmp.eq.s32.totalorder %s9, 1
    %p90 = por %p88, %p89
    %p91 = scmp.ne.s32.totalorder %s83, %s86
    %p92 = scmp.eq.s32.totalorder %s9, 0
    %p93 = por %p91, %p92
    %p94 = scmp.ne.s32.totalorder %s83, %s86
    %p95 = scmp.eq.s32.totalorder %s14, 1
    %p96 = por %p94, %p95
    %p97 = scmp.ne.s32.totalorder %s86, %s87
    %p98 = scmp.eq.s32.totalorder %s14, 0
    %p99 = por %p97, %p98
    %p100 = scmp.ne.s32.totalorder %s86, %s87
    %p101 = scmp.eq.s32.totalorder %s15, 1
    %p102 = por %p100, %p101
    %p104 = scmp.ne.s32.totalorder %s87, %s103
    %p105 = scmp.eq.s32.totalorder %s15, 0
    %p106 = por %p104, %p105
    %s107 = ssub.s32 %s16, %s28
    %s108 = ssub.s32 %s17, %s24
    %s109 = sor.u32 %s107, %s108
    %p110 = scmp.eq.s32.totalorder %s109, 0
    %s112 = sadd.s32 %s111, 1
    %s113 = scalar_select %p110, %s111, %s112
    %p116 = pneg %p110
    %p117 = scmp.eq.s32.totalorder %s9, 1
    %p118 = por %p116, %p117
    %p119 = scmp.ne.s32.totalorder %s111, %s114
    %p120 = scmp.eq.s32.totalorder %s9, 0
    %p121 = por %p119, %p120
    %p122 = scmp.ne.s32.totalorder %s111, %s114
    %p123 = scmp.eq.s32.totalorder %s14, 1
    %p124 = por %p122, %p123
    %p125 = scmp.ne.s32.totalorder %s114, %s115
    %p126 = scmp.eq.s32.totalorder %s14, 0
    %p127 = por %p125, %p126
    %p128 = scmp.ne.s32.totalorder %s114, %s115
    %p129 = scmp.eq.s32.totalorder %s15, 1
    %p130 = por %p128, %p129
    %p132 = scmp.ne.s32.totalorder %s115, %s131
    %p133 = scmp.eq.s32.totalorder %s15, 0
    %p134 = por %p132, %p133
    %p135 = scmp.le.s32.totalorder 1, %s9
    %p136 = scmp.lt.s32.totalorder %s9, 3
    %p137 = pnand %p135, %p136
    %p138 = pneg %p137
    // Predicated region
    $region9: #{_lambda_.6} parent=5 // pred_check
      _
    $region10: #{_lambda_.6} parent=5 // pred_check_branch
      %140 = sbr.rel (%p137) target = $region12
    $region11: #{_lambda_.6} parent=5 // pred_region
      %s141 = ssub.s32 %s9, 1
      // Predicated region
      $region13: #{_lambda_.6} parent=11 // pred_check
        %p142 = pneg %p73
      $region14: #{_lambda_.6} parent=11 // pred_check_branch
        %144 = sbr.rel (%p142) target = $region16
      $region15: #{_lambda_.6} parent=11 // pred_region
        %p145 = scmp.lt.s32.totalorder %s19, 0
        %s146 = scalar_select %p145, %s19, 0
        %s147 = smul.addr %s146, 4
        %s148 = scalar_lea.vmem %s1, %s147
      $region16: #{_lambda_.6} parent=11 // pred_fallthru
        _
      // Predicated region
      $region17: #{_lambda_.6} parent=11 // pred_check
        %p149 = pneg %p99
      $region18: #{_lambda_.6} parent=11 // pred_check_branch
        %151 = sbr.rel (%p149) target = $region20
      $region19: #{_lambda_.6} parent=11 // pred_region
        %p152 = scmp.lt.s32.totalorder %s19, 0
        %s153 = scalar_select %p152, %s19, 0
        %s154 = scalar_lea.vmem %s2, %s153
      $region20: #{_lambda_.6} parent=11 // pred_fallthru
        _
    $region12: #{_lambda_.6} parent=5 // pred_fallthru
      _
    %p155 = scmp.lt.s32.totalorder %s9, 2
    // Predicated region
    $region21: #{_lambda_.6} parent=5 // pred_check
      %p156 = pneg %p155
    $region22: #{_lambda_.6} parent=5 // pred_check_branch
      %158 = sbr.rel (%p156) target = $region24
    $region23: #{_lambda_.6} parent=5 // pred_region
      // Predicated region
      $region25: #{_lambda_.6} parent=23 // pred_check
        %p159 = pneg %p41
      $region26: #{_lambda_.6} parent=23 // pred_check_branch
        %161 = sbr.rel (%p159) target = $region28
      $region27: #{_lambda_.6} parent=23 // pred_region
        %s162 = smul.u32 8, %s16
        %p163 = scmp.lt.s32.totalorder %s162, 15
        %s164 = scalar_select %p163, %s162, 15
        %s165 = smul.addr %s164, 9
        %s166 = smul.addr %s165, 4
        %s167 = scalar_lea.vmem %s0, %s166
        %s168 = smul.u32 8, %s16
      $region28: #{_lambda_.6} parent=23 // pred_fallthru
        _
    $region24: #{_lambda_.6} parent=5 // pred_fallthru
      _
    %p169 = scmp.le.s32.totalorder 1, %s9
    %p170 = scmp.lt.s32.totalorder %s9, 3
    %p171 = pnand %p169, %p170
    %p172 = pneg %p171
    // Predicated region
    $region29: #{_lambda_.6} parent=5 // pred_check
      _
    $region30: #{_lambda_.6} parent=5 // pred_check_branch
      %174 = sbr.rel (%p171) target = $region32
    $region31: #{_lambda_.6} parent=5 // pred_region
      %s175 = ssub.s32 %s9, 1
      %s176 = smul.u32 8, %s18
      %p177 = scmp.lt.s32.totalorder %s176, 15
      %s178 = scalar_select %p177, %s176, 15
      %s179 = smul.addr %s178, 9
      %s180 = smul.addr %s179, 4
      %s181 = scalar_lea.vmem %s0, %s180
      %p182 = pneg %p47
      %p183 = pneg %p44
      %p184 = scmp.lt.s32.totalorder %s19, 0
      %s185 = scalar_select %p184, %s19, 0
      %s186 = smul.addr %s185, 4
      %s187 = scalar_lea.vmem %s1, %s186
      %p188 = pneg %p73
      %p189 = pneg %p70
      %p190 = scmp.lt.s32.totalorder %s19, 0
      %s191 = scalar_select %p190, %s19, 0
      %s192 = scalar_lea.vmem %s2, %s191
      %p193 = pneg %p99
      %p194 = pneg %p96
      %p195 = pneg %p127
      %p196 = pneg %p124
      %s197 = smul.u32 8, %s18
      %p198 = scmp.lt.s32.totalorder %s197, 15
      %s199 = scalar_select %p198, %s197, 15
      %p200 = scmp.lt.s32.totalorder %s19, 0
      %s201 = scalar_select %p200, %s19, 0
      %s202 = sadd.s32 %s201, %s199
      %s203 = smul.addr %s202, 4
      %s204 = scalar_lea.vmem %s3, %s203
      %s205 = smul.u32 8, %s18
      %p206 = scmp.lt.s32.totalorder %s205, 15
      %s207 = scalar_select %p206, %s205, 15
      %s208 = smul.addr %s207, 9
      %s209 = smul.addr %s208, 4
      %s210 = scalar_lea.vmem %s0, %s209
      %s211 = smul.u32 8, %s18
      %p212 = scmp.lt.s32.totalorder %s19, 0
      %s213 = scalar_select %p212, %s19, 0
      %s214 = smul.addr %s213, 4
      %s215 = scalar_lea.vmem %s1, %s214
      %p216 = scmp.lt.s32.totalorder %s19, 0
      %s217 = scalar_select %p216, %s19, 0
      %s218 = scalar_lea.vmem %s2, %s217
      %s219 = smul.u32 8, %s18
      %p220 = scmp.lt.s32.totalorder %s219, 15
      %s221 = scalar_select %p220, %s219, 15
      %p222 = scmp.lt.s32.totalorder %s19, 0
      %s223 = scalar_select %p222, %s19, 0
      %s224 = sadd.s32 %s223, %s221
      %s225 = smul.addr %s224, 4
      %s226 = scalar_lea.vmem %s3, %s225
      %s227 = smul.u32 8, %s18
      %v229 = vld [vmem:[%s210] sm:$0xff]
      %v230 = vld [vmem:[%s210 + $0x8] sm:$0xff]
      %v231 = vld [vmem:[%s210 + $0x10] sm:$0xff]
      %v232 = vld [vmem:[%s210 + $0x18] sm:$0xff]
      %v233 = vld [vmem:[%s210 + $0x20] sm:$0xf]
      %v234 = vld [vmem:[%s210 + $0x24] sm:$0xff]
      %v235 = vld [vmem:[%s210 + $0x2c] sm:$0xff]
      %v236 = vld [vmem:[%s210 + $0x34] sm:$0xff]
      %v237 = vld [vmem:[%s210 + $0x3c] sm:$0xff]
      %v238 = vld [vmem:[%s210 + $0x44] sm:$0xf]
      %v239 = vld [vmem:[%s210 + $0x48] sm:$0xff]
      %v240 = vld [vmem:[%s210 + $0x50] sm:$0xff]
      %v241 = vld [vmem:[%s210 + $0x58] sm:$0xff]
      %v242 = vld [vmem:[%s210 + $0x60] sm:$0xff]
      %v243 = vld [vmem:[%s210 + $0x68] sm:$0xf]
      %v244 = vld [vmem:[%s210 + $0x6c] sm:$0xff]
      %v245 = vld [vmem:[%s210 + $0x74] sm:$0xff]
      %v246 = vld [vmem:[%s210 + $0x7c] sm:$0xff]
      %v247 = vld [vmem:[%s210 + $0x84] sm:$0xff]
      %v248 = vld [vmem:[%s210 + $0x8c] sm:$0xf]
      %v249 = vld [vmem:[%s210 + $0x90] sm:$0xff]
      %v250 = vld [vmem:[%s210 + $0x98] sm:$0xff]
      %v251 = vld [vmem:[%s210 + $0xa0] sm:$0xff]
      %v252 = vld [vmem:[%s210 + $0xa8] sm:$0xff]
      %v253 = vld [vmem:[%s210 + $0xb0] sm:$0xf]
      %v254 = vld [vmem:[%s210 + $0xb4] sm:$0xff]
      %v255 = vld [vmem:[%s210 + $0xbc] sm:$0xff]
      %v256 = vld [vmem:[%s210 + $0xc4] sm:$0xff]
      %v257 = vld [vmem:[%s210 + $0xcc] sm:$0xff]
      %v258 = vld [vmem:[%s210 + $0xd4] sm:$0xf]
      %v259 = vld [vmem:[%s210 + $0xd8] sm:$0xff]
      %v260 = vld [vmem:[%s210 + $0xe0] sm:$0xff]
      %v261 = vld [vmem:[%s210 + $0xe8] sm:$0xff]
      %v262 = vld [vmem:[%s210 + $0xf0] sm:$0xff]
      %v263 = vld [vmem:[%s210 + $0xf8] sm:$0xf]
      %v264 = vld [vmem:[%s210 + $0xfc] sm:$0xff]
      %v265 = vld [vmem:[%s210 + $0x104] sm:$0xff]
      %v266 = vld [vmem:[%s210 + $0x10c] sm:$0xff]
      %v267 = vld [vmem:[%s210 + $0x114] sm:$0xff]
      %v268 = vld [vmem:[%s210 + $0x11c] sm:$0xf]
      %v269 = vld [vmem:[%s215] sm:$0xf]
      %v270 = vld [vmem:[%s215 + $0x4] sm:$0xf]
      %v271 = vld [vmem:[%s215 + $0x8] sm:$0xf]
      %v272 = vld [vmem:[%s215 + $0xc] sm:$0xf]
      %v273 = vld [vmem:[%s215 + $0x10] sm:$0xf]
      %v274 = vld [vmem:[%s215 + $0x14] sm:$0xf]
      %v275 = vld [vmem:[%s215 + $0x18] sm:$0xf]
      %v276 = vld [vmem:[%s215 + $0x1c] sm:$0xf]
      %v277 = vld [vmem:[%s215 + $0x20] sm:$0xf]
      %v278 = vld [vmem:[%s215 + $0x24] sm:$0xf]
      %v279 = vld [vmem:[%s215 + $0x28] sm:$0xf]
      %v280 = vld [vmem:[%s215 + $0x2c] sm:$0xf]
      %v281 = vld [vmem:[%s215 + $0x30] sm:$0xf]
      %v282 = vld [vmem:[%s215 + $0x34] sm:$0xf]
      %v283 = vld [vmem:[%s215 + $0x38] sm:$0xf]
      %v284 = vld [vmem:[%s215 + $0x3c] sm:$0xf]
      %v285 = vld [vmem:[%s215 + $0x40] sm:$0xf]
      %v286 = vld [vmem:[%s215 + $0x44] sm:$0xf]
      %v287 = vld [vmem:[%s215 + $0x48] sm:$0xf]
      %v288 = vld [vmem:[%s215 + $0x4c] sm:$0xf]
      %v289 = vld [vmem:[%s215 + $0x50] sm:$0xf]
      %v290 = vld [vmem:[%s215 + $0x54] sm:$0xf]
      %v291 = vld [vmem:[%s215 + $0x58] sm:$0xf]
      %v292 = vld [vmem:[%s215 + $0x5c] sm:$0xf]
      %v293 = vld [vmem:[%s215 + $0x60] sm:$0xf]
      %v294 = vld [vmem:[%s215 + $0x64] sm:$0xf]
      %v295 = vld [vmem:[%s215 + $0x68] sm:$0xf]
      %v296 = vld [vmem:[%s215 + $0x6c] sm:$0xf]
      %v297 = vld [vmem:[%s215 + $0x70] sm:$0xf]
      %v298 = vld [vmem:[%s215 + $0x74] sm:$0xf]
      %v299 = vld [vmem:[%s215 + $0x78] sm:$0xf]
      %v300 = vld [vmem:[%s215 + $0x7c] sm:$0xf]
      %v301 = vld [vmem:[%s215 + $0x80] sm:$0xf]
      %v302 = vld [vmem:[%s215 + $0x84] sm:$0xf]
      %v303 = vld [vmem:[%s215 + $0x88] sm:$0xf]
      %v304 = vld [vmem:[%s215 + $0x8c] sm:$0xf]
      %v305 = vld [vmem:[%s215 + $0x90] sm:$0xf]
      %v306 = vld [vmem:[%s215 + $0x94] sm:$0xf]
      %v307 = vld [vmem:[%s215 + $0x98] sm:$0xf]
      %v308 = vld [vmem:[%s215 + $0x9c] sm:$0xf]
      %v309 = vld [vmem:[%s215 + $0xa0] sm:$0xf]
      %v310 = vld [vmem:[%s215 + $0xa4] sm:$0xf]
      %v311 = vld [vmem:[%s215 + $0xa8] sm:$0xf]
      %v312 = vld [vmem:[%s215 + $0xac] sm:$0xf]
      %v313 = vld [vmem:[%s215 + $0xb0] sm:$0xf]
      %v314 = vld [vmem:[%s215 + $0xb4] sm:$0xf]
      %v315 = vld [vmem:[%s215 + $0xb8] sm:$0xf]
      %v316 = vld [vmem:[%s215 + $0xbc] sm:$0xf]
      %v317 = vld [vmem:[%s215 + $0xc0] sm:$0xf]
      %v318 = vld [vmem:[%s215 + $0xc4] sm:$0xf]
      %v319 = vld [vmem:[%s215 + $0xc8] sm:$0xf]
      %v320 = vld [vmem:[%s215 + $0xcc] sm:$0xf]
      %v321 = vld [vmem:[%s215 + $0xd0] sm:$0xf]
      %v322 = vld [vmem:[%s215 + $0xd4] sm:$0xf]
      %v323 = vld [vmem:[%s215 + $0xd8] sm:$0xf]
      %v324 = vld [vmem:[%s215 + $0xdc] sm:$0xf]
      %v325 = vld [vmem:[%s215 + $0xe0] sm:$0xf]
      %v326 = vld [vmem:[%s215 + $0xe4] sm:$0xf]
      %v327 = vld [vmem:[%s215 + $0xe8] sm:$0xf]
      %v328 = vld [vmem:[%s215 + $0xec] sm:$0xf]
      %v329 = vld [vmem:[%s215 + $0xf0] sm:$0xf]
      %v330 = vld [vmem:[%s215 + $0xf4] sm:$0xf]
      %v331 = vld [vmem:[%s215 + $0xf8] sm:$0xf]
      %v332 = vld [vmem:[%s215 + $0xfc] sm:$0xf]
      %v333 = vld [vmem:[%s215 + $0x100] sm:$0xf]
      %v334 = vld [vmem:[%s215 + $0x104] sm:$0xf]
      %v335 = vld [vmem:[%s215 + $0x108] sm:$0xf]
      %v336 = vld [vmem:[%s215 + $0x10c] sm:$0xf]
      %v337 = vld [vmem:[%s215 + $0x110] sm:$0xf]
      %v338 = vld [vmem:[%s215 + $0x114] sm:$0xf]
      %v339 = vld [vmem:[%s215 + $0x118] sm:$0xf]
      %v340 = vld [vmem:[%s215 + $0x11c] sm:$0xf]
      %v341 = vld [vmem:[%s215 + $0x120] sm:$0xf]
      %v342 = vld [vmem:[%s215 + $0x124] sm:$0xf]
      %v343 = vld [vmem:[%s215 + $0x128] sm:$0xf]
      %v344 = vld [vmem:[%s215 + $0x12c] sm:$0xf]
      %v345 = vld [vmem:[%s215 + $0x130] sm:$0xf]
      %v346 = vld [vmem:[%s215 + $0x134] sm:$0xf]
      %v347 = vld [vmem:[%s215 + $0x138] sm:$0xf]
      %v348 = vld [vmem:[%s215 + $0x13c] sm:$0xf]
      %v349 = vld [vmem:[%s215 + $0x140] sm:$0xf]
      %v350 = vld [vmem:[%s215 + $0x144] sm:$0xf]
      %v351 = vld [vmem:[%s215 + $0x148] sm:$0xf]
      %v352 = vld [vmem:[%s215 + $0x14c] sm:$0xf]
      %v353 = vld [vmem:[%s215 + $0x150] sm:$0xf]
      %v354 = vld [vmem:[%s215 + $0x154] sm:$0xf]
      %v355 = vld [vmem:[%s215 + $0x158] sm:$0xf]
      %v356 = vld [vmem:[%s215 + $0x15c] sm:$0xf]
      %v357 = vld [vmem:[%s215 + $0x160] sm:$0xf]
      %v358 = vld [vmem:[%s215 + $0x164] sm:$0xf]
      %v359 = vld [vmem:[%s215 + $0x168] sm:$0xf]
      %v360 = vld [vmem:[%s215 + $0x16c] sm:$0xf]
      %v361 = vld [vmem:[%s215 + $0x170] sm:$0xf]
      %v362 = vld [vmem:[%s215 + $0x174] sm:$0xf]
      %v363 = vld [vmem:[%s215 + $0x178] sm:$0xf]
      %v364 = vld [vmem:[%s215 + $0x17c] sm:$0xf]
      %v365 = vld [vmem:[%s215 + $0x180] sm:$0xf]
      %v366 = vld [vmem:[%s215 + $0x184] sm:$0xf]
      %v367 = vld [vmem:[%s215 + $0x188] sm:$0xf]
      %v368 = vld [vmem:[%s215 + $0x18c] sm:$0xf]
      %v369 = vld [vmem:[%s215 + $0x190] sm:$0xf]
      %v370 = vld [vmem:[%s215 + $0x194] sm:$0xf]
      %v371 = vld [vmem:[%s215 + $0x198] sm:$0xf]
      %v372 = vld [vmem:[%s215 + $0x19c] sm:$0xf]
      %v373 = vld [vmem:[%s215 + $0x1a0] sm:$0xf]
      %v374 = vld [vmem:[%s215 + $0x1a4] sm:$0xf]
      %v375 = vld [vmem:[%s215 + $0x1a8] sm:$0xf]
      %v376 = vld [vmem:[%s215 + $0x1ac] sm:$0xf]
      %v377 = vld [vmem:[%s215 + $0x1b0] sm:$0xf]
      %v378 = vld [vmem:[%s215 + $0x1b4] sm:$0xf]
      %v379 = vld [vmem:[%s215 + $0x1b8] sm:$0xf]
      %v380 = vld [vmem:[%s215 + $0x1bc] sm:$0xf]
      %v381 = vld [vmem:[%s215 + $0x1c0] sm:$0xf]
      %v382 = vld [vmem:[%s215 + $0x1c4] sm:$0xf]
      %v383 = vld [vmem:[%s215 + $0x1c8] sm:$0xf]
      %v384 = vld [vmem:[%s215 + $0x1cc] sm:$0xf]
      %v385 = vld [vmem:[%s215 + $0x1d0] sm:$0xf]
      %v386 = vld [vmem:[%s215 + $0x1d4] sm:$0xf]
      %v387 = vld [vmem:[%s215 + $0x1d8] sm:$0xf]
      %v388 = vld [vmem:[%s215 + $0x1dc] sm:$0xf]
      %v389 = vld [vmem:[%s215 + $0x1e0] sm:$0xf]
      %v390 = vld [vmem:[%s215 + $0x1e4] sm:$0xf]
      %v391 = vld [vmem:[%s215 + $0x1e8] sm:$0xf]
      %v392 = vld [vmem:[%s215 + $0x1ec] sm:$0xf]
      %v393 = vld [vmem:[%s215 + $0x1f0] sm:$0xf]
      %v394 = vld [vmem:[%s215 + $0x1f4] sm:$0xf]
      %v395 = vld [vmem:[%s215 + $0x1f8] sm:$0xf]
      %v396 = vld [vmem:[%s215 + $0x1fc] sm:$0xf]
      %v397 = vld [vmem:[%s215 + $0x200] sm:$0xf]
      %v398 = vld [vmem:[%s215 + $0x204] sm:$0xf]
      %v399 = vld [vmem:[%s215 + $0x208] sm:$0xf]
      %v400 = vld [vmem:[%s215 + $0x20c] sm:$0xf]
      %v401 = vld [vmem:[%s215 + $0x210] sm:$0xf]
      %v402 = vld [vmem:[%s215 + $0x214] sm:$0xf]
      %v403 = vld [vmem:[%s215 + $0x218] sm:$0xf]
      %v404 = vld [vmem:[%s215 + $0x21c] sm:$0xf]
      %v405 = vld [vmem:[%s215 + $0x220] sm:$0xf]
      %v406 = vld [vmem:[%s215 + $0x224] sm:$0xf]
      %v407 = vld [vmem:[%s215 + $0x228] sm:$0xf]
      %v408 = vld [vmem:[%s215 + $0x22c] sm:$0xf]
      %v409 = vld [vmem:[%s215 + $0x230] sm:$0xf]
      %v410 = vld [vmem:[%s215 + $0x234] sm:$0xf]
      %v411 = vld [vmem:[%s215 + $0x238] sm:$0xf]
      %v412 = vld [vmem:[%s215 + $0x23c] sm:$0xf]
      %v413 = vld [vmem:[%s218] sm:$0x1]
      %v415 = vlaneseq
      %v416 = vshrl.u32 %v415, 7
      %v417 = vsub.s32 0, %v416
      %v418 = vrot.slane %v413, %v417
      %v460 = vunpack.c.l.b16 %v229
      %v461 = vunpack.c.h.b16 %v229
      %v462 = vunpack.c.l.b16 %v230
      %v463 = vunpack.c.h.b16 %v230
      %v464 = vunpack.c.l.b16 %v231
      %v465 = vunpack.c.h.b16 %v231
      %v466 = vunpack.c.l.b16 %v232
      %v467 = vunpack.c.h.b16 %v232
      %v468 = vunpack.c.l.b16 %v233
      %v469 = vunpack.c.l.b16 %v234
      %v470 = vunpack.c.h.b16 %v234
      %v471 = vunpack.c.l.b16 %v235
      %v472 = vunpack.c.h.b16 %v235
      %v473 = vunpack.c.l.b16 %v236
      %v474 = vunpack.c.h.b16 %v236
      %v475 = vunpack.c.l.b16 %v237
      %v476 = vunpack.c.h.b16 %v237
      %v477 = vunpack.c.l.b16 %v238
      %v478 = vunpack.c.l.b16 %v239
      %v479 = vunpack.c.h.b16 %v239
      %v480 = vunpack.c.l.b16 %v240
      %v481 = vunpack.c.h.b16 %v240
      %v482 = vunpack.c.l.b16 %v241
      %v483 = vunpack.c.h.b16 %v241
      %v484 = vunpack.c.l.b16 %v242
      %v485 = vunpack.c.h.b16 %v242
      %v486 = vunpack.c.l.b16 %v243
      %v487 = vunpack.c.l.b16 %v244
      %v488 = vunpack.c.h.b16 %v244
      %v489 = vunpack.c.l.b16 %v245
      %v490 = vunpack.c.h.b16 %v245
      %v491 = vunpack.c.l.b16 %v246
      %v492 = vunpack.c.h.b16 %v246
      %v493 = vunpack.c.l.b16 %v247
      %v494 = vunpack.c.h.b16 %v247
      %v495 = vunpack.c.l.b16 %v248
      %v496 = vunpack.c.l.b16 %v249
      %v497 = vunpack.c.h.b16 %v249
      %v498 = vunpack.c.l.b16 %v250
      %v499 = vunpack.c.h.b16 %v250
      %v500 = vunpack.c.l.b16 %v251
      %v501 = vunpack.c.h.b16 %v251
      %v502 = vunpack.c.l.b16 %v252
      %v503 = vunpack.c.h.b16 %v252
      %v504 = vunpack.c.l.b16 %v253
      %v505 = vunpack.c.l.b16 %v254
      %v506 = vunpack.c.h.b16 %v254
      %v507 = vunpack.c.l.b16 %v255
      %v508 = vunpack.c.h.b16 %v255
      %v509 = vunpack.c.l.b16 %v256
      %v510 = vunpack.c.h.b16 %v256
      %v511 = vunpack.c.l.b16 %v257
      %v512 = vunpack.c.h.b16 %v257
      %v513 = vunpack.c.l.b16 %v258
      %v514 = vunpack.c.l.b16 %v259
      %v515 = vunpack.c.h.b16 %v259
      %v516 = vunpack.c.l.b16 %v260
      %v517 = vunpack.c.h.b16 %v260
      %v518 = vunpack.c.l.b16 %v261
      %v519 = vunpack.c.h.b16 %v261
      %v520 = vunpack.c.l.b16 %v262
      %v521 = vunpack.c.h.b16 %v262
      %v522 = vunpack.c.l.b16 %v263
      %v523 = vunpack.c.l.b16 %v264
      %v524 = vunpack.c.h.b16 %v264
      %v525 = vunpack.c.l.b16 %v265
      %v526 = vunpack.c.h.b16 %v265
      %v527 = vunpack.c.l.b16 %v266
      %v528 = vunpack.c.h.b16 %v266
      %v529 = vunpack.c.l.b16 %v267
      %v530 = vunpack.c.h.b16 %v267
      %v531 = vunpack.c.l.b16 %v268
      %v532 = vpack.c.b16 %v469, %v460
      %v533 = vpack.c.b16 %v470, %v461
      %v534 = vpack.c.b16 %v471, %v462
      %v535 = vpack.c.b16 %v472, %v463
      %v536 = vpack.c.b16 %v473, %v464
      %v537 = vpack.c.b16 %v474, %v465
      %v538 = vpack.c.b16 %v475, %v466
      %v539 = vpack.c.b16 %v476, %v467
      %v540 = vpack.c.b16 %v477, %v468
      %v541 = vpack.c.b16 %v487, %v478
      %v542 = vpack.c.b16 %v488, %v479
      %v543 = vpack.c.b16 %v489, %v480
      %v544 = vpack.c.b16 %v490, %v481
      %v545 = vpack.c.b16 %v491, %v482
      %v546 = vpack.c.b16 %v492, %v483
      %v547 = vpack.c.b16 %v493, %v484
      %v548 = vpack.c.b16 %v494, %v485
      %v549 = vpack.c.b16 %v495, %v486
      %v550 = vpack.c.b16 %v505, %v496
      %v551 = vpack.c.b16 %v506, %v497
      %v552 = vpack.c.b16 %v507, %v498
      %v553 = vpack.c.b16 %v508, %v499
      %v554 = vpack.c.b16 %v509, %v500
      %v555 = vpack.c.b16 %v510, %v501
      %v556 = vpack.c.b16 %v511, %v502
      %v557 = vpack.c.b16 %v512, %v503
      %v558 = vpack.c.b16 %v513, %v504
      %v559 = vpack.c.b16 %v523, %v514
      %v560 = vpack.c.b16 %v524, %v515
      %v561 = vpack.c.b16 %v525, %v516
      %v562 = vpack.c.b16 %v526, %v517
      %v563 = vpack.c.b16 %v527, %v518
      %v564 = vpack.c.b16 %v528, %v519
      %v565 = vpack.c.b16 %v529, %v520
      %v566 = vpack.c.b16 %v530, %v521
      %v567 = vpack.c.b16 %v531, %v522
      %v748 = vunpack.c.l.b16 %v269
      %v749 = vunpack.c.l.b16 %v270
      %v750 = vunpack.c.l.b16 %v271
      %v751 = vunpack.c.l.b16 %v272
      %v752 = vunpack.c.l.b16 %v273
      %v753 = vunpack.c.l.b16 %v274
      %v754 = vunpack.c.l.b16 %v275
      %v755 = vunpack.c.l.b16 %v276
      %v756 = vunpack.c.l.b16 %v277
      %v757 = vunpack.c.l.b16 %v278
      %v758 = vunpack.c.l.b16 %v279
      %v759 = vunpack.c.l.b16 %v280
      %v760 = vunpack.c.l.b16 %v281
      %v761 = vunpack.c.l.b16 %v282
      %v762 = vunpack.c.l.b16 %v283
      %v763 = vunpack.c.l.b16 %v284
      %v764 = vunpack.c.l.b16 %v285
      %v765 = vunpack.c.l.b16 %v286
      %v766 = vunpack.c.l.b16 %v287
      %v767 = vunpack.c.l.b16 %v288
      %v768 = vunpack.c.l.b16 %v289
      %v769 = vunpack.c.l.b16 %v290
      %v770 = vunpack.c.l.b16 %v291
      %v771 = vunpack.c.l.b16 %v292
      %v772 = vunpack.c.l.b16 %v293
      %v773 = vunpack.c.l.b16 %v294
      %v774 = vunpack.c.l.b16 %v295
      %v775 = vunpack.c.l.b16 %v296
      %v776 = vunpack.c.l.b16 %v297
      %v777 = vunpack.c.l.b16 %v298
      %v778 = vunpack.c.l.b16 %v299
      %v779 = vunpack.c.l.b16 %v300
      %v780 = vunpack.c.l.b16 %v301
      %v781 = vunpack.c.l.b16 %v302
      %v782 = vunpack.c.l.b16 %v303
      %v783 = vunpack.c.l.b16 %v304
      %v784 = vunpack.c.l.b16 %v305
      %v785 = vunpack.c.l.b16 %v306
      %v786 = vunpack.c.l.b16 %v307
      %v787 = vunpack.c.l.b16 %v308
      %v788 = vunpack.c.l.b16 %v309
      %v789 = vunpack.c.l.b16 %v310
      %v790 = vunpack.c.l.b16 %v311
      %v791 = vunpack.c.l.b16 %v312
      %v792 = vunpack.c.l.b16 %v313
      %v793 = vunpack.c.l.b16 %v314
      %v794 = vunpack.c.l.b16 %v315
      %v795 = vunpack.c.l.b16 %v316
      %v796 = vunpack.c.l.b16 %v317
      %v797 = vunpack.c.l.b16 %v318
      %v798 = vunpack.c.l.b16 %v319
      %v799 = vunpack.c.l.b16 %v320
      %v800 = vunpack.c.l.b16 %v321
      %v801 = vunpack.c.l.b16 %v322
      %v802 = vunpack.c.l.b16 %v323
      %v803 = vunpack.c.l.b16 %v324
      %v804 = vunpack.c.l.b16 %v325
      %v805 = vunpack.c.l.b16 %v326
      %v806 = vunpack.c.l.b16 %v327
      %v807 = vunpack.c.l.b16 %v328
      %v808 = vunpack.c.l.b16 %v329
      %v809 = vunpack.c.l.b16 %v330
      %v810 = vunpack.c.l.b16 %v331
      %v811 = vunpack.c.l.b16 %v332
      %v812 = vunpack.c.l.b16 %v333
      %v813 = vunpack.c.l.b16 %v334
      %v814 = vunpack.c.l.b16 %v335
      %v815 = vunpack.c.l.b16 %v336
      %v816 = vunpack.c.l.b16 %v337
      %v817 = vunpack.c.l.b16 %v338
      %v818 = vunpack.c.l.b16 %v339
      %v819 = vunpack.c.l.b16 %v340
      %v820 = vunpack.c.l.b16 %v341
      %v821 = vunpack.c.l.b16 %v342
      %v822 = vunpack.c.l.b16 %v343
      %v823 = vunpack.c.l.b16 %v344
      %v824 = vunpack.c.l.b16 %v345
      %v825 = vunpack.c.l.b16 %v346
      %v826 = vunpack.c.l.b16 %v347
      %v827 = vunpack.c.l.b16 %v348
      %v828 = vunpack.c.l.b16 %v349
      %v829 = vunpack.c.l.b16 %v350
      %v830 = vunpack.c.l.b16 %v351
      %v831 = vunpack.c.l.b16 %v352
      %v832 = vunpack.c.l.b16 %v353
      %v833 = vunpack.c.l.b16 %v354
      %v834 = vunpack.c.l.b16 %v355
      %v835 = vunpack.c.l.b16 %v356
      %v836 = vunpack.c.l.b16 %v357
      %v837 = vunpack.c.l.b16 %v358
      %v838 = vunpack.c.l.b16 %v359
      %v839 = vunpack.c.l.b16 %v360
      %v840 = vunpack.c.l.b16 %v361
      %v841 = vunpack.c.l.b16 %v362
      %v842 = vunpack.c.l.b16 %v363
      %v843 = vunpack.c.l.b16 %v364
      %v844 = vunpack.c.l.b16 %v365
      %v845 = vunpack.c.l.b16 %v366
      %v846 = vunpack.c.l.b16 %v367
      %v847 = vunpack.c.l.b16 %v368
      %v848 = vunpack.c.l.b16 %v369
      %v849 = vunpack.c.l.b16 %v370
      %v850 = vunpack.c.l.b16 %v371
      %v851 = vunpack.c.l.b16 %v372
      %v852 = vunpack.c.l.b16 %v373
      %v853 = vunpack.c.l.b16 %v374
      %v854 = vunpack.c.l.b16 %v375
      %v855 = vunpack.c.l.b16 %v376
      %v856 = vunpack.c.l.b16 %v377
      %v857 = vunpack.c.l.b16 %v378
      %v858 = vunpack.c.l.b16 %v379
      %v859 = vunpack.c.l.b16 %v380
      %v860 = vunpack.c.l.b16 %v381
      %v861 = vunpack.c.l.b16 %v382
      %v862 = vunpack.c.l.b16 %v383
      %v863 = vunpack.c.l.b16 %v384
      %v864 = vunpack.c.l.b16 %v385
      %v865 = vunpack.c.l.b16 %v386
      %v866 = vunpack.c.l.b16 %v387
      %v867 = vunpack.c.l.b16 %v388
      %v868 = vunpack.c.l.b16 %v389
      %v869 = vunpack.c.l.b16 %v390
      %v870 = vunpack.c.l.b16 %v391
      %v871 = vunpack.c.l.b16 %v392
      %v872 = vunpack.c.l.b16 %v393
      %v873 = vunpack.c.l.b16 %v394
      %v874 = vunpack.c.l.b16 %v395
      %v875 = vunpack.c.l.b16 %v396
      %v876 = vunpack.c.l.b16 %v397
      %v877 = vunpack.c.l.b16 %v398
      %v878 = vunpack.c.l.b16 %v399
      %v879 = vunpack.c.l.b16 %v400
      %v880 = vunpack.c.l.b16 %v401
      %v881 = vunpack.c.l.b16 %v402
      %v882 = vunpack.c.l.b16 %v403
      %v883 = vunpack.c.l.b16 %v404
      %v884 = vunpack.c.l.b16 %v405
      %v885 = vunpack.c.l.b16 %v406
      %v886 = vunpack.c.l.b16 %v407
      %v887 = vunpack.c.l.b16 %v408
      %v888 = vunpack.c.l.b16 %v409
      %v889 = vunpack.c.l.b16 %v410
      %v890 = vunpack.c.l.b16 %v411
      %v891 = vunpack.c.l.b16 %v412
      %v892 = vpack.c.b16 %v749, %v748
      %v893 = vpack.c.b16 %v751, %v750
      %v894 = vpack.c.b16 %v753, %v752
      %v895 = vpack.c.b16 %v755, %v754
      %v896 = vpack.c.b16 %v757, %v756
      %v897 = vpack.c.b16 %v759, %v758
      %v898 = vpack.c.b16 %v761, %v760
      %v899 = vpack.c.b16 %v763, %v762
      %v900 = vpack.c.b16 %v765, %v764
      %v901 = vpack.c.b16 %v767, %v766
      %v902 = vpack.c.b16 %v769, %v768
      %v903 = vpack.c.b16 %v771, %v770
      %v904 = vpack.c.b16 %v773, %v772
      %v905 = vpack.c.b16 %v775, %v774
      %v906 = vpack.c.b16 %v777, %v776
      %v907 = vpack.c.b16 %v779, %v778
      %v908 = vpack.c.b16 %v781, %v780
      %v909 = vpack.c.b16 %v783, %v782
      %v910 = vpack.c.b16 %v785, %v784
      %v911 = vpack.c.b16 %v787, %v786
      %v912 = vpack.c.b16 %v789, %v788
      %v913 = vpack.c.b16 %v791, %v790
      %v914 = vpack.c.b16 %v793, %v792
      %v915 = vpack.c.b16 %v795, %v794
      %v916 = vpack.c.b16 %v797, %v796
      %v917 = vpack.c.b16 %v799, %v798
      %v918 = vpack.c.b16 %v801, %v800
      %v919 = vpack.c.b16 %v803, %v802
      %v920 = vpack.c.b16 %v805, %v804
      %v921 = vpack.c.b16 %v807, %v806
      %v922 = vpack.c.b16 %v809, %v808
      %v923 = vpack.c.b16 %v811, %v810
      %v924 = vpack.c.b16 %v813, %v812
      %v925 = vpack.c.b16 %v815, %v814
      %v926 = vpack.c.b16 %v817, %v816
      %v927 = vpack.c.b16 %v819, %v818
      %v928 = vpack.c.b16 %v821, %v820
      %v929 = vpack.c.b16 %v823, %v822
      %v930 = vpack.c.b16 %v825, %v824
      %v931 = vpack.c.b16 %v827, %v826
      %v932 = vpack.c.b16 %v829, %v828
      %v933 = vpack.c.b16 %v831, %v830
      %v934 = vpack.c.b16 %v833, %v832
      %v935 = vpack.c.b16 %v835, %v834
      %v936 = vpack.c.b16 %v837, %v836
      %v937 = vpack.c.b16 %v839, %v838
      %v938 = vpack.c.b16 %v841, %v840
      %v939 = vpack.c.b16 %v843, %v842
      %v940 = vpack.c.b16 %v845, %v844
      %v941 = vpack.c.b16 %v847, %v846
      %v942 = vpack.c.b16 %v849, %v848
      %v943 = vpack.c.b16 %v851, %v850
      %v944 = vpack.c.b16 %v853, %v852
      %v945 = vpack.c.b16 %v855, %v854
      %v946 = vpack.c.b16 %v857, %v856
      %v947 = vpack.c.b16 %v859, %v858
      %v948 = vpack.c.b16 %v861, %v860
      %v949 = vpack.c.b16 %v863, %v862
      %v950 = vpack.c.b16 %v865, %v864
      %v951 = vpack.c.b16 %v867, %v866
      %v952 = vpack.c.b16 %v869, %v868
      %v953 = vpack.c.b16 %v871, %v870
      %v954 = vpack.c.b16 %v873, %v872
      %v955 = vpack.c.b16 %v875, %v874
      %v956 = vpack.c.b16 %v877, %v876
      %v957 = vpack.c.b16 %v879, %v878
      %v958 = vpack.c.b16 %v881, %v880
      %v959 = vpack.c.b16 %v883, %v882
      %v960 = vpack.c.b16 %v885, %v884
      %v961 = vpack.c.b16 %v887, %v886
      %v962 = vpack.c.b16 %v889, %v888
      %v963 = vpack.c.b16 %v891, %v890
      %1036 = vmatprep.subr.bf16.mxu0 0
      %1037 = vmatpush1.bf16.msra.mxu0 %v892
      %1038 = vmatprep.subr.bf16.mxu0 0
      %1039 = vmatpush1.bf16.msra.mxu0 %v893
      %1040 = vmatprep.subr.bf16.mxu0 0
      %1041 = vmatpush1.bf16.msra.mxu0 %v894
      %1042 = vmatprep.subr.bf16.mxu0 0
      %1043 = vmatpush1.bf16.msra.mxu0 %v895
      %1044 = vmatprep.subr.bf16.mxu0 0
      %1045 = vmatpush1.bf16.msra.mxu0 %v896
      %1046 = vmatprep.subr.bf16.mxu0 0
      %1047 = vmatpush1.bf16.msra.mxu0 %v897
      %1048 = vmatprep.subr.bf16.mxu0 0
      %1049 = vmatpush1.bf16.msra.mxu0 %v898
      %1050 = vmatprep.subr.bf16.mxu0 0
      %1051 = vmatpush1.bf16.msra.mxu0 %v899
      %1052 = vmatprep.subr.bf16.mxu0 0
      %1053 = vmatpush1.bf16.msra.mxu0 %v900
      %1054 = vmatprep.subr.bf16.mxu0 0
      %1055 = vmatpush1.bf16.msra.mxu0 %v901
      %1056 = vmatprep.subr.bf16.mxu0 0
      %1057 = vmatpush1.bf16.msra.mxu0 %v902
      %1058 = vmatprep.subr.bf16.mxu0 0
      %1059 = vmatpush1.bf16.msra.mxu0 %v903
      %1060 = vmatprep.subr.bf16.mxu0 0
      %1061 = vmatpush1.bf16.msra.mxu0 %v904
      %1062 = vmatprep.subr.bf16.mxu0 0
      %1063 = vmatpush1.bf16.msra.mxu0 %v905
      %1064 = vmatprep.subr.bf16.mxu0 0
      %1065 = vmatpush1.bf16.msra.mxu0 %v906
      %1066 = vmatprep.subr.bf16.mxu0 0
      %1067 = vmatpush1.bf16.msra.mxu0 %v907
      %1068 = vmatprep.mubr.bf16.mxu0 %v533
      %1069 = vmatmul.mubr.bf16.gmra.mrb[0].mxu0 %v532
      %v1070 = vpop.f32.mrb[0].mxu0
      %v1071 = vadd.f32 %v418, %v1070
      %v1072 = vpop.f32.mrb[0].mxu0
      %v1073 = vpop.f32.mrb[0].mxu0
      %v1074 = vadd.f32 %v418, %v1073
      %v1075 = vpop.f32.mrb[0].mxu0
      %1076 = vmatprep.mubr.bf16.mxu0 %v542
      %1077 = vmatmul.mubr.bf16.gmra.mrb[0].mxu0 %v541
      %v1078 = vpop.f32.mrb[0].mxu0
      %v1079 = vadd.f32 %v418, %v1078
      %v1080 = vpop.f32.mrb[0].mxu0
      %v1081 = vpop.f32.mrb[0].mxu0
      %v1082 = vadd.f32 %v418, %v1081
      %v1083 = vpop.f32.mrb[0].mxu0
      %1084 = vmatprep.mubr.bf16.mxu0 %v551
      %1085 = vmatmul.mubr.bf16.gmra.mrb[0].mxu0 %v550
      %v1086 = vpop.f32.mrb[0].mxu0
      %v1087 = vadd.f32 %v418, %v1086
      %v1088 = vpop.f32.mrb[0].mxu0
      %v1089 = vpop.f32.mrb[0].mxu0
      %v1090 = vadd.f32 %v418, %v1089
      %v1091 = vpop.f32.mrb[0].mxu0
      %1092 = vmatprep.mubr.bf16.mxu0 %v560
      %1093 = vmatmul.mubr.bf16.gmra.mrb[0].mxu0 %v559
      %v1094 = vpop.f32.mrb[0].mxu0
      %v1095 = vadd.f32 %v418, %v1094
      %v1096 = vpop.f32.mrb[0].mxu0
      %v1097 = vpop.f32.mrb[0].mxu0
      %v1098 = vadd.f32 %v418, %v1097
      %v1099 = vpop.f32.mrb[0].mxu0
      %1100 = vdwg.mxu0
      %1101 = vmatprep.subr.bf16.mxu0 0
      %1102 = vmatpush1.bf16.msra.mxu0 %v908
      %1103 = vmatprep.subr.bf16.mxu0 0
      %1104 = vmatpush1.bf16.msra.mxu0 %v909
      %1105 = vmatprep.subr.bf16.mxu0 0
      %1106 = vmatpush1.bf16.msra.mxu0 %v910
      %1107 = vmatprep.subr.bf16.mxu0 0
      %1108 = vmatpush1.bf16.msra.mxu0 %v911
      %1109 = vmatprep.subr.bf16.mxu0 0
      %1110 = vmatpush1.bf16.msra.mxu0 %v912
      %1111 = vmatprep.subr.bf16.mxu0 0
      %1112 = vmatpush1.bf16.msra.mxu0 %v913
      %1113 = vmatprep.subr.bf16.mxu0 0
      %1114 = vmatpush1.bf16.msra.mxu0 %v914
      %1115 = vmatprep.subr.bf16.mxu0 0
      %1116 = vmatpush1.bf16.msra.mxu0 %v915
      %1117 = vmatprep.subr.bf16.mxu0 0
      %1118 = vmatpush1.bf16.msra.mxu0 %v916
      %1119 = vmatprep.subr.bf16.mxu0 0
      %1120 = vmatpush1.bf16.msra.mxu0 %v917
      %1121 = vmatprep.subr.bf16.mxu0 0
      %1122 = vmatpush1.bf16.msra.mxu0 %v918
      %1123 = vmatprep.subr.bf16.mxu0 0
      %1124 = vmatpush1.bf16.msra.mxu0 %v919
      %1125 = vmatprep.subr.bf16.mxu0 0
      %1126 = vmatpush1.bf16.msra.mxu0 %v920
      %1127 = vmatprep.subr.bf16.mxu0 0
      %1128 = vmatpush1.bf16.msra.mxu0 %v921
      %1129 = vmatprep.subr.bf16.mxu0 0
      %1130 = vmatpush1.bf16.msra.mxu0 %v922
      %1131 = vmatprep.subr.bf16.mxu0 0
      %1132 = vmatpush1.bf16.msra.mxu0 %v923
      %1133 = vmatprep.mubr.bf16.mxu0 %v535
      %1134 = vmatmul.mubr.bf16.gmra.mrb[0].mxu0 %v534
      %v1135 = vpop.f32.mrb[0].mxu0
      %v1136 = vadd.f32 %v1071, %v1135
      %v1137 = vpop.f32.mrb[0].mxu0
      %v1138 = vpop.f32.mrb[0].mxu0
      %v1139 = vadd.f32 %v1074, %v1138
      %v1140 = vpop.f32.mrb[0].mxu0
      %1141 = vmatprep.mubr.bf16.mxu0 %v544
      %1142 = vmatmul.mubr.bf16.gmra.mrb[0].mxu0 %v543
      %v1143 = vpop.f32.mrb[0].mxu0
      %v1144 = vadd.f32 %v1079, %v1143
      %v1145 = vpop.f32.mrb[0].mxu0
      %v1146 = vpop.f32.mrb[0].mxu0
      %v1147 = vadd.f32 %v1082, %v1146
      %v1148 = vpop.f32.mrb[0].mxu0
      %1149 = vmatprep.mubr.bf16.mxu0 %v553
      %1150 = vmatmul.mubr.bf16.gmra.mrb[0].mxu0 %v552
      %v1151 = vpop.f32.mrb[0].mxu0
      %v1152 = vadd.f32 %v1087, %v1151
      %v1153 = vpop.f32.mrb[0].mxu0
      %v1154 = vpop.f32.mrb[0].mxu0
      %v1155 = vadd.f32 %v1090, %v1154
      %v1156 = vpop.f32.mrb[0].mxu0
      %1157 = vmatprep.mubr.bf16.mxu0 %v562
      %1158 = vmatmul.mubr.bf16.gmra.mrb[0].mxu0 %v561
      %v1159 = vpop.f32.mrb[0].mxu0
      %v1160 = vadd.f32 %v1095, %v1159
      %v1161 = vpop.f32.mrb[0].mxu0
      %v1162 = vpop.f32.mrb[0].mxu0
      %v1163 = vadd.f32 %v1098, %v1162
      %v1164 = vpop.f32.mrb[0].mxu0
      %1165 = vdwg.mxu0
      %1166 = vmatprep.subr.bf16.mxu0 0
      %1167 = vmatpush1.bf16.msra.mxu0 %v924
      %1168 = vmatprep.subr.bf16.mxu0 0
      %1169 = vmatpush1.bf16.msra.mxu0 %v925
      %1170 = vmatprep.subr.bf16.mxu0 0
      %1171 = vmatpush1.bf16.msra.mxu0 %v926
      %1172 = vmatprep.subr.bf16.mxu0 0
      %1173 = vmatpush1.bf16.msra.mxu0 %v927
      %1174 = vmatprep.subr.bf16.mxu0 0
      %1175 = vmatpush1.bf16.msra.mxu0 %v928
      %1176 = vmatprep.subr.bf16.mxu0 0
      %1177 = vmatpush1.bf16.msra.mxu0 %v929
      %1178 = vmatprep.subr.bf16.mxu0 0
      %1179 = vmatpush1.bf16.msra.mxu0 %v930
      %1180 = vmatprep.subr.bf16.mxu0 0
      %1181 = vmatpush1.bf16.msra.mxu0 %v931
      %1182 = vmatprep.subr.bf16.mxu0 0
      %1183 = vmatpush1.bf16.msra.mxu0 %v932
      %1184 = vmatprep.subr.bf16.mxu0 0
      %1185 = vmatpush1.bf16.msra.mxu0 %v933
      %1186 = vmatprep.subr.bf16.mxu0 0
      %1187 = vmatpush1.bf16.msra.mxu0 %v934
      %1188 = vmatprep.subr.bf16.mxu0 0
      %1189 = vmatpush1.bf16.msra.mxu0 %v935
      %1190 = vmatprep.subr.bf16.mxu0 0
      %1191 = vmatpush1.bf16.msra.mxu0 %v936
      %1192 = vmatprep.subr.bf16.mxu0 0
      %1193 = vmatpush1.bf16.msra.mxu0 %v937
      %1194 = vmatprep.subr.bf16.mxu0 0
      %1195 = vmatpush1.bf16.msra.mxu0 %v938
      %1196 = vmatprep.subr.bf16.mxu0 0
      %1197 = vmatpush1.bf16.msra.mxu0 %v939
      %1198 = vmatprep.mubr.bf16.mxu0 %v537
      %1199 = vmatmul.mubr.bf16.gmra.mrb[0].mxu0 %v536
      %v1200 = vpop.f32.mrb[0].mxu0
      %v1201 = vadd.f32 %v1136, %v1200
      %v1202 = vpop.f32.mrb[0].mxu0
      %v1203 = vpop.f32.mrb[0].mxu0
      %v1204 = vadd.f32 %v1139, %v1203
      %v1205 = vpop.f32.mrb[0].mxu0
      %1206 = vmatprep.mubr.bf16.mxu0 %v546
      %1207 = vmatmul.mubr.bf16.gmra.mrb[0].mxu0 %v545
      %v1208 = vpop.f32.mrb[0].mxu0
      %v1209 = vadd.f32 %v1144, %v1208
      %v1210 = vpop.f32.mrb[0].mxu0
      %v1211 = vpop.f32.mrb[0].mxu0
      %v1212 = vadd.f32 %v1147, %v1211
      %v1213 = vpop.f32.mrb[0].mxu0
      %1214 = vmatprep.mubr.bf16.mxu0 %v555
      %1215 = vmatmul.mubr.bf16.gmra.mrb[0].mxu0 %v554
      %v1216 = vpop.f32.mrb[0].mxu0
      %v1217 = vadd.f32 %v1152, %v1216
      %v1218 = vpop.f32.mrb[0].mxu0
      %v1219 = vpop.f32.mrb[0].mxu0
      %v1220 = vadd.f32 %v1155, %v1219
      %v1221 = vpop.f32.mrb[0].mxu0
      %1222 = vmatprep.mubr.bf16.mxu0 %v564
      %1223 = vmatmul.mubr.bf16.gmra.mrb[0].mxu0 %v563
      %v1224 = vpop.f32.mrb[0].mxu0
      %v1225 = vadd.f32 %v1160, %v1224
      %v1226 = vpop.f32.mrb[0].mxu0
      %v1227 = vpop.f32.mrb[0].mxu0
      %v1228 = vadd.f32 %v1163, %v1227
      %v1229 = vpop.f32.mrb[0].mxu0
      %1230 = vdwg.mxu0
      %1231 = vmatprep.subr.bf16.mxu0 0
      %1232 = vmatpush1.bf16.msra.mxu0 %v940
      %1233 = vmatprep.subr.bf16.mxu0 0
      %1234 = vmatpush1.bf16.msra.mxu0 %v941
      %1235 = vmatprep.subr.bf16.mxu0 0
      %1236 = vmatpush1.bf16.msra.mxu0 %v942
      %1237 = vmatprep.subr.bf16.mxu0 0
      %1238 = vmatpush1.bf16.msra.mxu0 %v943
      %1239 = vmatprep.subr.bf16.mxu0 0
      %1240 = vmatpush1.bf16.msra.mxu0 %v944
      %1241 = vmatprep.subr.bf16.mxu0 0
      %1242 = vmatpush1.bf16.msra.mxu0 %v945
      %1243 = vmatprep.subr.bf16.mxu0 0
      %1244 = vmatpush1.bf16.msra.mxu0 %v946
      %1245 = vmatprep.subr.bf16.mxu0 0
      %1246 = vmatpush1.bf16.msra.mxu0 %v947
      %1247 = vmatprep.subr.bf16.mxu0 0
      %1248 = vmatpush1.bf16.msra.mxu0 %v948
      %1249 = vmatprep.subr.bf16.mxu0 0
      %1250 = vmatpush1.bf16.msra.mxu0 %v949
      %1251 = vmatprep.subr.bf16.mxu0 0
      %1252 = vmatpush1.bf16.msra.mxu0 %v950
      %1253 = vmatprep.subr.bf16.mxu0 0
      %1254 = vmatpush1.bf16.msra.mxu0 %v951
      %1255 = vmatprep.subr.bf16.mxu0 0
      %1256 = vmatpush1.bf16.msra.mxu0 %v952
      %1257 = vmatprep.subr.bf16.mxu0 0
      %1258 = vmatpush1.bf16.msra.mxu0 %v953
      %1259 = vmatprep.subr.bf16.mxu0 0
      %1260 = vmatpush1.bf16.msra.mxu0 %v954
      %1261 = vmatprep.subr.bf16.mxu0 0
      %1262 = vmatpush1.bf16.msra.mxu0 %v955
      %1263 = vmatprep.mubr.bf16.mxu0 %v539
      %1264 = vmatmul.mubr.bf16.gmra.mrb[0].mxu0 %v538
      %v1265 = vpop.f32.mrb[0].mxu0
      %v1266 = vadd.f32 %v1201, %v1265
      %v1267 = vpop.f32.mrb[0].mxu0
      %v1268 = vpop.f32.mrb[0].mxu0
      %v1269 = vadd.f32 %v1204, %v1268
      %v1270 = vpop.f32.mrb[0].mxu0
      %1271 = vmatprep.mubr.bf16.mxu0 %v548
      %1272 = vmatmul.mubr.bf16.gmra.mrb[0].mxu0 %v547
      %v1273 = vpop.f32.mrb[0].mxu0
      %v1274 = vadd.f32 %v1209, %v1273
      %v1275 = vpop.f32.mrb[0].mxu0
      %v1276 = vpop.f32.mrb[0].mxu0
      %v1277 = vadd.f32 %v1212, %v1276
      %v1278 = vpop.f32.mrb[0].mxu0
      %1279 = vmatprep.mubr.bf16.mxu0 %v557
      %1280 = vmatmul.mubr.bf16.gmra.mrb[0].mxu0 %v556
      %v1281 = vpop.f32.mrb[0].mxu0
      %v1282 = vadd.f32 %v1217, %v1281
      %v1283 = vpop.f32.mrb[0].mxu0
      %v1284 = vpop.f32.mrb[0].mxu0
      %v1285 = vadd.f32 %v1220, %v1284
      %v1286 = vpop.f32.mrb[0].mxu0
      %1287 = vmatprep.mubr.bf16.mxu0 %v566
      %1288 = vmatmul.mubr.bf16.gmra.mrb[0].mxu0 %v565
      %v1289 = vpop.f32.mrb[0].mxu0
      %v1290 = vadd.f32 %v1225, %v1289
      %v1291 = vpop.f32.mrb[0].mxu0
      %v1292 = vpop.f32.mrb[0].mxu0
      %v1293 = vadd.f32 %v1228, %v1292
      %v1294 = vpop.f32.mrb[0].mxu0
      %1295 = vdwg.mxu0
      %1296 = vmatprep.subr.bf16.mxu0 0
      %1297 = vmatpush1.bf16.msra.mxu0 %v956
      %1298 = vmatprep.subr.bf16.mxu0 0
      %1299 = vmatpush1.bf16.msra.mxu0 %v957
      %1300 = vmatprep.subr.bf16.mxu0 0
      %1301 = vmatpush1.bf16.msra.mxu0 %v958
      %1302 = vmatprep.subr.bf16.mxu0 0
      %1303 = vmatpush1.bf16.msra.mxu0 %v959
      %1304 = vmatprep.subr.bf16.mxu0 0
      %1305 = vmatpush1.bf16.msra.mxu0 %v960
      %1306 = vmatprep.subr.bf16.mxu0 0
      %1307 = vmatpush1.bf16.msra.mxu0 %v961
      %1308 = vmatprep.subr.bf16.mxu0 0
      %1309 = vmatpush1.bf16.msra.mxu0 %v962
      %1310 = vmatprep.subr.bf16.mxu0 0
      %1311 = vmatpush1.bf16.msra.mxu0 %v963
      %1312 = vmatprep.subr.bf16.mxu0 0
      %1313 = vmatpush1.bf16.msra.mxu0 0
      %1314 = vmatprep.subr.bf16.mxu0 0
      %1315 = vmatpush1.bf16.msra.mxu0 0
      %1316 = vmatprep.subr.bf16.mxu0 0
      %1317 = vmatpush1.bf16.msra.mxu0 0
      %1318 = vmatprep.subr.bf16.mxu0 0
      %1319 = vmatpush1.bf16.msra.mxu0 0
      %1320 = vmatprep.subr.bf16.mxu0 0
      %1321 = vmatpush1.bf16.msra.mxu0 0
      %1322 = vmatprep.subr.bf16.mxu0 0
      %1323 = vmatpush1.bf16.msra.mxu0 0
      %1324 = vmatprep.subr.bf16.mxu0 0
      %1325 = vmatpush1.bf16.msra.mxu0 0
      %1326 = vmatprep.subr.bf16.mxu0 0
      %1327 = vmatpush1.bf16.msra.mxu0 0
      %1328 = vmatprep.mubr.bf16.mxu0 0
      %1329 = vmatmul.mubr.bf16.gmra.mrb[0].mxu0 %v540
      %v1330 = vpop.f32.mrb[0].mxu0
      %v1331 = vadd.f32 %v1266, %v1330
      %v1332 = vpop.f32.mrb[0].mxu0
      %v1333 = vpop.f32.mrb[0].mxu0
      %v1334 = vadd.f32 %v1269, %v1333
      %v1335 = vpop.f32.mrb[0].mxu0
      %1336 = vmatprep.mubr.bf16.mxu0 0
      %1337 = vmatmul.mubr.bf16.gmra.mrb[0].mxu0 %v549
      %v1338 = vpop.f32.mrb[0].mxu0
      %v1339 = vadd.f32 %v1274, %v1338
      %v1340 = vpop.f32.mrb[0].mxu0
      %v1341 = vpop.f32.mrb[0].mxu0
      %v1342 = vadd.f32 %v1277, %v1341
      %v1343 = vpop.f32.mrb[0].mxu0
      %1344 = vmatprep.mubr.bf16.mxu0 0
      %1345 = vmatmul.mubr.bf16.gmra.mrb[0].mxu0 %v558
      %v1346 = vpop.f32.mrb[0].mxu0
      %v1347 = vadd.f32 %v1282, %v1346
      %v1348 = vpop.f32.mrb[0].mxu0
      %v1349 = vpop.f32.mrb[0].mxu0
      %v1350 = vadd.f32 %v1285, %v1349
      %v1351 = vpop.f32.mrb[0].mxu0
      %1352 = vmatprep.mubr.bf16.mxu0 0
      %1353 = vmatmul.mubr.bf16.gmra.mrb[0].mxu0 %v567
      %v1354 = vpop.f32.mrb[0].mxu0
      %v1355 = vadd.f32 %v1290, %v1354
      %v1356 = vpop.f32.mrb[0].mxu0
      %v1357 = vpop.f32.mrb[0].mxu0
      %v1358 = vadd.f32 %v1293, %v1357
      %v1359 = vpop.f32.mrb[0].mxu0
      %1360 = vdwg.mxu0
      %v1361 = vmax.f32 %v1331, 0.0
      %v1362 = vmax.f32 %v1334, 0.0
      %v1363 = vmax.f32 %v1339, 0.0
      %v1364 = vmax.f32 %v1342, 0.0
      %v1365 = vmax.f32 %v1347, 0.0
      %v1366 = vmax.f32 %v1350, 0.0
      %v1367 = vmax.f32 %v1355, 0.0
      %v1368 = vmax.f32 %v1358, 0.0
      %v1369 = vpack.c.bf16 %v1362, %v1361
      %v1370 = vpack.c.bf16 %v1364, %v1363
      %v1371 = vpack.c.bf16 %v1366, %v1365
      %v1372 = vpack.c.bf16 %v1368, %v1367
      %v1377 = vunpack.c.l.b16 %v1369
      %v1378 = vunpack.c.h.b16 %v1369
      %v1379 = vunpack.c.l.b16 %v1370
      %v1380 = vunpack.c.h.b16 %v1370
      %v1381 = vunpack.c.l.b16 %v1371
      %v1382 = vunpack.c.h.b16 %v1371
      %v1383 = vunpack.c.l.b16 %v1372
      %v1384 = vunpack.c.h.b16 %v1372
      %v1385 = vpack.c.b16 %v1377, %v1377
      %v1386 = vpack.c.b16 %v1378, %v1378
      %v1387 = vpack.c.b16 %v1379, %v1379
      %v1388 = vpack.c.b16 %v1380, %v1380
      %v1389 = vpack.c.b16 %v1381, %v1381
      %v1390 = vpack.c.b16 %v1382, %v1382
      %v1391 = vpack.c.b16 %v1383, %v1383
      %v1392 = vpack.c.b16 %v1384, %v1384
      %1401 = vst [vmem:[%s226] sm:$0xf] %v1385
      %1402 = vst [vmem:[%s226 + $0x4] sm:$0xf] %v1386
      %1403 = vst [vmem:[%s226 + $0x8] sm:$0xf] %v1387
      %1404 = vst [vmem:[%s226 + $0xc] sm:$0xf] %v1388
      %1405 = vst [vmem:[%s226 + $0x10] sm:$0xf] %v1389
      %1406 = vst [vmem:[%s226 + $0x14] sm:$0xf] %v1390
      %1407 = vst [vmem:[%s226 + $0x18] sm:$0xf] %v1391
      %1408 = vst [vmem:[%s226 + $0x1c] sm:$0xf] %v1392
      %s1409 = smul.u32 8, %s18
      %p1410 = scmp.lt.s32.totalorder %s1409, 15
      %s1411 = scalar_select %p1410, %s1409, 15
      %p1412 = scmp.lt.s32.totalorder %s19, 0
      %s1413 = scalar_select %p1412, %s19, 0
      %s1414 = sadd.s32 %s1413, %s1411
      %s1415 = smul.addr %s1414, 4
      %s1416 = scalar_lea.vmem %s3, %s1415
      // Predicated region
      $region33: #{_lambda_.6} parent=31 // pred_check
        %p1417 = pneg %p124
      $region34: #{_lambda_.6} parent=31 // pred_check_branch
        %1419 = sbr.rel (%p1417) target = $region36
      $region35: #{_lambda_.6} parent=31 // pred_region
        %s1420 = smul.u32 8, %s18
      $region36: #{_lambda_.6} parent=31 // pred_fallthru
        _
    $region32: #{_lambda_.6} parent=5 // pred_fallthru
      _
    %p1421 = scmp.le.s32.totalorder 2, %s9
    // Predicated region
    $region37: #{_lambda_.6} parent=5 // pred_check
      %p1422 = pneg %p1421
    $region38: #{_lambda_.6} parent=5 // pred_check_branch
      %1424 = sbr.rel (%p1422) target = $region40
    $region39: #{_lambda_.6} parent=5 // pred_region
      %s1425 = ssub.s32 %s9, 2
      // Predicated region
      $region41: #{_lambda_.6} parent=39 // pred_check
        %p1426 = pneg %p130
      $region42: #{_lambda_.6} parent=39 // pred_check_branch
        %1428 = sbr.rel (%p1426) target = $region44
      $region43: #{_lambda_.6} parent=39 // pred_region
        %s1429 = smul.u32 8, %s20
        %p1430 = scmp.lt.s32.totalorder %s1429, 15
        %s1431 = scalar_select %p1430, %s1429, 15
        %p1432 = scmp.lt.s32.totalorder %s21, 0
        %s1433 = scalar_select %p1432, %s21, 0
        %s1434 = sadd.s32 %s1433, %s1431
        %s1435 = smul.addr %s1434, 4
        %s1436 = scalar_lea.vmem %s3, %s1435
      $region44: #{_lambda_.6} parent=39 // pred_fallthru
        _
    $region40: #{_lambda_.6} parent=5 // pred_fallthru
      _
  $region6: #{_lambda_.6} parent=0 // loop_footer
    %s13 = sadd.s32 1, %s9
  $region7: #{_lambda_.6} parent=0 // loop_footer_branch
    %8 = sbr.rel target = $region3
  $region8: #{_lambda_.6} parent=0 // loop_exit
    _

// kernel: _lambda_.7
$region0: #{_lambda_.7}
  #allocation0 [shape = 'u32[]', space=smem, size = 0x4, offset = 0x4, fixed_abs, tag = 'smem constant byte address 0x4 - core index']
  #allocation1 [shape = 'u32[144,128]{1,0:T(1,128)}', space=vmem, size = 0x12000, scoped, tag = 'internal scratch']
  %s0 = inlined_call_operand.vmem [shape: bf16[128,1152], index: 0, kind: input, shape index: {}]
  %s1 = inlined_call_operand.vmem [shape: bf16[1152,128], index: 1, kind: input, shape index: {}]
  %s2 = inlined_call_operand.vmem [shape: f32[1,128], index: 2, kind: input, shape index: {}]
  %s3 = inlined_call_operand.vmem [shape: bf16[128,128], index: 3, kind: input, shape index: {}]
  %s4 = inlined_call_operand.vmem [shape: bf16[128,128], index: 4, kind: output, shape index: {}]
  %s5 = sld [smem:[#allocation0]]
  $region49: #{_lambda_.7} parent=0
    _
  %s7 = ssub.s32 1, %s5
  %s8 = scalar_select 0, %s7, %s5
  loop: start=0, step=1, limit=4
  $region2: #{_lambda_.7} parent=0 // loop_pre_header
    _
  $region3: #{_lambda_.7} parent=0 // loop_header
    %s10 = sphi 0, %s14
    %p11 = scmp.ge.s32.totalorder %s10, 4
    %s17 = sphi 0, %s29
    %s18 = sphi 0, %s25
    %s19 = sphi 0, %s17
    %s20 = sphi 0, %s18
    %s21 = sphi 0, %s19
    %s22 = sphi 0, %s20
    %s32 = sphi 0, %s34
    %s35 = sphi 0, %s32
    %s36 = sphi 0, %s35
    %s52 = sphi 0, %s36
    %s58 = sphi 0, %s60
    %s61 = sphi 0, %s58
    %s62 = sphi 0, %s61
    %s78 = sphi 0, %s62
    %s84 = sphi 0, %s86
    %s87 = sphi 0, %s84
    %s88 = sphi 0, %s87
    %s104 = sphi 0, %s88
    %s112 = sphi 0, %s114
    %s115 = sphi 0, %s112
    %s116 = sphi 0, %s115
    %s132 = sphi 0, %s116
    %s140 = sphi 0, %s142
    %s143 = sphi 0, %s140
    %s144 = sphi 0, %s143
    %s160 = sphi 0, %s144
  $region4: #{_lambda_.7} parent=0 // loop_header_branch
    %13 = sbr.rel (%p11) target = $region8
  $region5: #{_lambda_.7} parent=0 // loop_body
    %s15 = ssub.s32 %s10, 1
    %s16 = ssub.s32 %s10, 2
    %s23 = sadd.s32 1, %s18
    %p24 = scmp.ge.s32.totalorder %s23, 1
    %s25 = scalar_select %p24, 0, %s23
    %s26 = sadd.s32 1, %s17
    %s27 = scalar_select %p24, %s26, %s17
    %p28 = scmp.ge.s32.totalorder %s27, 2
    %s29 = scalar_select %p28, 0, %s27
    %s30 = ssub.s32 %s17, %s29
    %p31 = scmp.eq.s32.totalorder %s30, 0
    %s33 = sadd.s32 %s32, 1
    %s34 = scalar_select %p31, %s32, %s33
    %p37 = pneg %p31
    %p38 = scmp.eq.s32.totalorder %s10, 1
    %p39 = por %p37, %p38
    %p40 = scmp.ne.s32.totalorder %s32, %s35
    %p41 = scmp.eq.s32.totalorder %s10, 0
    %p42 = por %p40, %p41
    %p43 = scmp.ne.s32.totalorder %s32, %s35
    %p44 = scmp.eq.s32.totalorder %s15, 1
    %p45 = por %p43, %p44
    %p46 = scmp.ne.s32.totalorder %s35, %s36
    %p47 = scmp.eq.s32.totalorder %s15, 0
    %p48 = por %p46, %p47
    %p49 = scmp.ne.s32.totalorder %s35, %s36
    %p50 = scmp.eq.s32.totalorder %s16, 1
    %p51 = por %p49, %p50
    %p53 = scmp.ne.s32.totalorder %s36, %s52
    %p54 = scmp.eq.s32.totalorder %s16, 0
    %p55 = por %p53, %p54
    %s56 = ssub.s32 %s18, %s25
    %p57 = scmp.eq.s32.totalorder %s56, 0
    %s59 = sadd.s32 %s58, 1
    %s60 = scalar_select %p57, %s58, %s59
    %p63 = pneg %p57
    %p64 = scmp.eq.s32.totalorder %s10, 1
    %p65 = por %p63, %p64
    %p66 = scmp.ne.s32.totalorder %s58, %s61
    %p67 = scmp.eq.s32.totalorder %s10, 0
    %p68 = por %p66, %p67
    %p69 = scmp.ne.s32.totalorder %s58, %s61
    %p70 = scmp.eq.s32.totalorder %s15, 1
    %p71 = por %p69, %p70
    %p72 = scmp.ne.s32.totalorder %s61, %s62
    %p73 = scmp.eq.s32.totalorder %s15, 0
    %p74 = por %p72, %p73
    %p75 = scmp.ne.s32.totalorder %s61, %s62
    %p76 = scmp.eq.s32.totalorder %s16, 1
    %p77 = por %p75, %p76
    %p79 = scmp.ne.s32.totalorder %s62, %s78
    %p80 = scmp.eq.s32.totalorder %s16, 0
    %p81 = por %p79, %p80
    %s82 = ssub.s32 %s18, %s25
    %p83 = scmp.eq.s32.totalorder %s82, 0
    %s85 = sadd.s32 %s84, 1
    %s86 = scalar_select %p83, %s84, %s85
    %p89 = pneg %p83
    %p90 = scmp.eq.s32.totalorder %s10, 1
    %p91 = por %p89, %p90
    %p92 = scmp.ne.s32.totalorder %s84, %s87
    %p93 = scmp.eq.s32.totalorder %s10, 0
    %p94 = por %p92, %p93
    %p95 = scmp.ne.s32.totalorder %s84, %s87
    %p96 = scmp.eq.s32.totalorder %s15, 1
    %p97 = por %p95, %p96
    %p98 = scmp.ne.s32.totalorder %s87, %s88
    %p99 = scmp.eq.s32.totalorder %s15, 0
    %p100 = por %p98, %p99
    %p101 = scmp.ne.s32.totalorder %s87, %s88
    %p102 = scmp.eq.s32.totalorder %s16, 1
    %p103 = por %p101, %p102
    %p105 = scmp.ne.s32.totalorder %s88, %s104
    %p106 = scmp.eq.s32.totalorder %s16, 0
    %p107 = por %p105, %p106
    %s108 = ssub.s32 %s17, %s29
    %s109 = ssub.s32 %s18, %s25
    %s110 = sor.u32 %s108, %s109
    %p111 = scmp.eq.s32.totalorder %s110, 0
    %s113 = sadd.s32 %s112, 1
    %s114 = scalar_select %p111, %s112, %s113
    %p117 = pneg %p111
    %p118 = scmp.eq.s32.totalorder %s10, 1
    %p119 = por %p117, %p118
    %p120 = scmp.ne.s32.totalorder %s112, %s115
    %p121 = scmp.eq.s32.totalorder %s10, 0
    %p122 = por %p120, %p121
    %p123 = scmp.ne.s32.totalorder %s112, %s115
    %p124 = scmp.eq.s32.totalorder %s15, 1
    %p125 = por %p123, %p124
    %p126 = scmp.ne.s32.totalorder %s115, %s116
    %p127 = scmp.eq.s32.totalorder %s15, 0
    %p128 = por %p126, %p127
    %p129 = scmp.ne.s32.totalorder %s115, %s116
    %p130 = scmp.eq.s32.totalorder %s16, 1
    %p131 = por %p129, %p130
    %p133 = scmp.ne.s32.totalorder %s116, %s132
    %p134 = scmp.eq.s32.totalorder %s16, 0
    %p135 = por %p133, %p134
    %s136 = ssub.s32 %s17, %s29
    %s137 = ssub.s32 %s18, %s25
    %s138 = sor.u32 %s136, %s137
    %p139 = scmp.eq.s32.totalorder %s138, 0
    %s141 = sadd.s32 %s140, 1
    %s142 = scalar_select %p139, %s140, %s141
    %p145 = pneg %p139
    %p146 = scmp.eq.s32.totalorder %s10, 1
    %p147 = por %p145, %p146
    %p148 = scmp.ne.s32.totalorder %s140, %s143
    %p149 = scmp.eq.s32.totalorder %s10, 0
    %p150 = por %p148, %p149
    %p151 = scmp.ne.s32.totalorder %s140, %s143
    %p152 = scmp.eq.s32.totalorder %s15, 1
    %p153 = por %p151, %p152
    %p154 = scmp.ne.s32.totalorder %s143, %s144
    %p155 = scmp.eq.s32.totalorder %s15, 0
    %p156 = por %p154, %p155
    %p157 = scmp.ne.s32.totalorder %s143, %s144
    %p158 = scmp.eq.s32.totalorder %s16, 1
    %p159 = por %p157, %p158
    %p161 = scmp.ne.s32.totalorder %s144, %s160
    %p162 = scmp.eq.s32.totalorder %s16, 0
    %p163 = por %p161, %p162
    %p164 = scmp.le.s32.totalorder 1, %s10
    %p165 = scmp.lt.s32.totalorder %s10, 3
    %p166 = pnand %p164, %p165
    %p167 = pneg %p166
    // Predicated region
    $region9: #{_lambda_.7} parent=5 // pred_check
      _
    $region10: #{_lambda_.7} parent=5 // pred_check_branch
      %169 = sbr.rel (%p166) target = $region12
    $region11: #{_lambda_.7} parent=5 // pred_region
      %s170 = ssub.s32 %s10, 1
      // Predicated region
      $region13: #{_lambda_.7} parent=11 // pred_check
        %p171 = pneg %p74
      $region14: #{_lambda_.7} parent=11 // pred_check_branch
        %173 = sbr.rel (%p171) target = $region16
      $region15: #{_lambda_.7} parent=11 // pred_region
        %p174 = scmp.lt.s32.totalorder %s20, 0
        %s175 = scalar_select %p174, %s20, 0
        %s176 = smul.addr %s175, 4
        %s177 = scalar_lea.vmem %s1, %s176
      $region16: #{_lambda_.7} parent=11 // pred_fallthru
        _
      // Predicated region
      $region17: #{_lambda_.7} parent=11 // pred_check
        %p178 = pneg %p100
      $region18: #{_lambda_.7} parent=11 // pred_check_branch
        %180 = sbr.rel (%p178) target = $region20
      $region19: #{_lambda_.7} parent=11 // pred_region
        %p181 = scmp.lt.s32.totalorder %s20, 0
        %s182 = scalar_select %p181, %s20, 0
        %s183 = scalar_lea.vmem %s2, %s182
      $region20: #{_lambda_.7} parent=11 // pred_fallthru
        _
    $region12: #{_lambda_.7} parent=5 // pred_fallthru
      _
    %p184 = scmp.lt.s32.totalorder %s10, 2
    // Predicated region
    $region21: #{_lambda_.7} parent=5 // pred_check
      %p185 = pneg %p184
    $region22: #{_lambda_.7} parent=5 // pred_check_branch
      %187 = sbr.rel (%p185) target = $region24
    $region23: #{_lambda_.7} parent=5 // pred_region
      // Predicated region
      $region25: #{_lambda_.7} parent=23 // pred_check
        %p188 = pneg %p42
      $region26: #{_lambda_.7} parent=23 // pred_check_branch
        %190 = sbr.rel (%p188) target = $region28
      $region27: #{_lambda_.7} parent=23 // pred_region
        %s191 = smul.u32 8, %s17
        %p192 = scmp.lt.s32.totalorder %s191, 15
        %s193 = scalar_select %p192, %s191, 15
        %s194 = smul.addr %s193, 9
        %s195 = smul.addr %s194, 4
        %s196 = scalar_lea.vmem %s0, %s195
        %s197 = smul.u32 8, %s17
      $region28: #{_lambda_.7} parent=23 // pred_fallthru
        _
      // Predicated region
      $region29: #{_lambda_.7} parent=23 // pred_check
        %p198 = pneg %p122
      $region30: #{_lambda_.7} parent=23 // pred_check_branch
        %200 = sbr.rel (%p198) target = $region32
      $region31: #{_lambda_.7} parent=23 // pred_region
        %s201 = smul.u32 8, %s17
        %p202 = scmp.lt.s32.totalorder %s201, 15
        %s203 = scalar_select %p202, %s201, 15
        %p204 = scmp.lt.s32.totalorder %s18, 0
        %s205 = scalar_select %p204, %s18, 0
        %s206 = sadd.s32 %s205, %s203
        %s207 = smul.addr %s206, 4
        %s208 = scalar_lea.vmem %s3, %s207
        %s209 = smul.u32 8, %s17
      $region32: #{_lambda_.7} parent=23 // pred_fallthru
        _
    $region24: #{_lambda_.7} parent=5 // pred_fallthru
      _
    %p210 = scmp.le.s32.totalorder 1, %s10
    %p211 = scmp.lt.s32.totalorder %s10, 3
    %p212 = pnand %p210, %p211
    %p213 = pneg %p212
    // Predicated region
    $region33: #{_lambda_.7} parent=5 // pred_check
      _
    $region34: #{_lambda_.7} parent=5 // pred_check_branch
      %215 = sbr.rel (%p212) target = $region36
    $region35: #{_lambda_.7} parent=5 // pred_region
      %s216 = ssub.s32 %s10, 1
      %s217 = smul.u32 8, %s19
      %p218 = scmp.lt.s32.totalorder %s217, 15
      %s219 = scalar_select %p218, %s217, 15
      %s220 = smul.addr %s219, 9
      %s221 = smul.addr %s220, 4
      %s222 = scalar_lea.vmem %s0, %s221
      %p223 = pneg %p48
      %p224 = pneg %p45
      %p225 = scmp.lt.s32.totalorder %s20, 0
      %s226 = scalar_select %p225, %s20, 0
      %s227 = smul.addr %s226, 4
      %s228 = scalar_lea.vmem %s1, %s227
      %p229 = pneg %p74
      %p230 = pneg %p71
      %p231 = scmp.lt.s32.totalorder %s20, 0
      %s232 = scalar_select %p231, %s20, 0
      %s233 = scalar_lea.vmem %s2, %s232
      %p234 = pneg %p100
      %p235 = pneg %p97
      %s236 = smul.u32 8, %s19
      %p237 = scmp.lt.s32.totalorder %s236, 15
      %s238 = scalar_select %p237, %s236, 15
      %p239 = scmp.lt.s32.totalorder %s20, 0
      %s240 = scalar_select %p239, %s20, 0
      %s241 = sadd.s32 %s240, %s238
      %s242 = smul.addr %s241, 4
      %s243 = scalar_lea.vmem %s3, %s242
      %p244 = pneg %p128
      %p245 = pneg %p125
      %p246 = pneg %p156
      %p247 = pneg %p153
      %s248 = smul.u32 8, %s19
      %p249 = scmp.lt.s32.totalorder %s248, 15
      %s250 = scalar_select %p249, %s248, 15
      %p251 = scmp.lt.s32.totalorder %s20, 0
      %s252 = scalar_select %p251, %s20, 0
      %s253 = sadd.s32 %s252, %s250
      %s254 = smul.addr %s253, 4
      %s255 = scalar_lea.vmem %s4, %s254
      %s256 = smul.u32 8, %s19
      %p257 = scmp.lt.s32.totalorder %s256, 15
      %s258 = scalar_select %p257, %s256, 15
      %s259 = smul.addr %s258, 9
      %s260 = smul.addr %s259, 4
      %s261 = scalar_lea.vmem %s0, %s260
      %s262 = smul.u32 8, %s19
      %p263 = scmp.lt.s32.totalorder %s20, 0
      %s264 = scalar_select %p263, %s20, 0
      %s265 = smul.addr %s264, 4
      %s266 = scalar_lea.vmem %s1, %s265
      %p267 = scmp.lt.s32.totalorder %s20, 0
      %s268 = scalar_select %p267, %s20, 0
      %s269 = scalar_lea.vmem %s2, %s268
      %s270 = smul.u32 8, %s19
      %p271 = scmp.lt.s32.totalorder %s270, 15
      %s272 = scalar_select %p271, %s270, 15
      %p273 = scmp.lt.s32.totalorder %s20, 0
      %s274 = scalar_select %p273, %s20, 0
      %s275 = sadd.s32 %s274, %s272
      %s276 = smul.addr %s275, 4
      %s277 = scalar_lea.vmem %s3, %s276
      %s278 = smul.u32 8, %s19
      %s279 = smul.u32 8, %s19
      %p280 = scmp.lt.s32.totalorder %s279, 15
      %s281 = scalar_select %p280, %s279, 15
      %p282 = scmp.lt.s32.totalorder %s20, 0
      %s283 = scalar_select %p282, %s20, 0
      %s284 = sadd.s32 %s283, %s281
      %s285 = smul.addr %s284, 4
      %s286 = scalar_lea.vmem %s4, %s285
      %s287 = smul.u32 8, %s19
      %v289 = vld [vmem:[%s261] sm:$0xff]
      %v290 = vld [vmem:[%s261 + $0x8] sm:$0xff]
      %v291 = vld [vmem:[%s261 + $0x10] sm:$0xff]
      %v292 = vld [vmem:[%s261 + $0x18] sm:$0xff]
      %v293 = vld [vmem:[%s261 + $0x20] sm:$0xf]
      %v294 = vld [vmem:[%s261 + $0x24] sm:$0xff]
      %v295 = vld [vmem:[%s261 + $0x2c] sm:$0xff]
      %v296 = vld [vmem:[%s261 + $0x34] sm:$0xff]
      %v297 = vld [vmem:[%s261 + $0x3c] sm:$0xff]
      %v298 = vld [vmem:[%s261 + $0x44] sm:$0xf]
      %v299 = vld [vmem:[%s261 + $0x48] sm:$0xff]
      %v300 = vld [vmem:[%s261 + $0x50] sm:$0xff]
      %v301 = vld [vmem:[%s261 + $0x58] sm:$0xff]
      %v302 = vld [vmem:[%s261 + $0x60] sm:$0xff]
      %v303 = vld [vmem:[%s261 + $0x68] sm:$0xf]
      %v304 = vld [vmem:[%s261 + $0x6c] sm:$0xff]
      %v305 = vld [vmem:[%s261 + $0x74] sm:$0xff]
      %v306 = vld [vmem:[%s261 + $0x7c] sm:$0xff]
      %v307 = vld [vmem:[%s261 + $0x84] sm:$0xff]
      %v308 = vld [vmem:[%s261 + $0x8c] sm:$0xf]
      %v309 = vld [vmem:[%s261 + $0x90] sm:$0xff]
      %v310 = vld [vmem:[%s261 + $0x98] sm:$0xff]
      %v311 = vld [vmem:[%s261 + $0xa0] sm:$0xff]
      %v312 = vld [vmem:[%s261 + $0xa8] sm:$0xff]
      %v313 = vld [vmem:[%s261 + $0xb0] sm:$0xf]
      %v314 = vld [vmem:[%s261 + $0xb4] sm:$0xff]
      %v315 = vld [vmem:[%s261 + $0xbc] sm:$0xff]
      %v316 = vld [vmem:[%s261 + $0xc4] sm:$0xff]
      %v317 = vld [vmem:[%s261 + $0xcc] sm:$0xff]
      %v318 = vld [vmem:[%s261 + $0xd4] sm:$0xf]
      %v319 = vld [vmem:[%s261 + $0xd8] sm:$0xff]
      %v320 = vld [vmem:[%s261 + $0xe0] sm:$0xff]
      %v321 = vld [vmem:[%s261 + $0xe8] sm:$0xff]
      %v322 = vld [vmem:[%s261 + $0xf0] sm:$0xff]
      %v323 = vld [vmem:[%s261 + $0xf8] sm:$0xf]
      %v324 = vld [vmem:[%s261 + $0xfc] sm:$0xff]
      %v325 = vld [vmem:[%s261 + $0x104] sm:$0xff]
      %v326 = vld [vmem:[%s261 + $0x10c] sm:$0xff]
      %v327 = vld [vmem:[%s261 + $0x114] sm:$0xff]
      %v328 = vld [vmem:[%s261 + $0x11c] sm:$0xf]
      %v329 = vld [vmem:[%s266] sm:$0xf]
      %v330 = vld [vmem:[%s266 + $0x4] sm:$0xf]
      %v331 = vld [vmem:[%s266 + $0x8] sm:$0xf]
      %v332 = vld [vmem:[%s266 + $0xc] sm:$0xf]
      %v333 = vld [vmem:[%s266 + $0x10] sm:$0xf]
      %v334 = vld [vmem:[%s266 + $0x14] sm:$0xf]
      %v335 = vld [vmem:[%s266 + $0x18] sm:$0xf]
      %v336 = vld [vmem:[%s266 + $0x1c] sm:$0xf]
      %v337 = vld [vmem:[%s266 + $0x20] sm:$0xf]
      %v338 = vld [vmem:[%s266 + $0x24] sm:$0xf]
      %v339 = vld [vmem:[%s266 + $0x28] sm:$0xf]
      %v340 = vld [vmem:[%s266 + $0x2c] sm:$0xf]
      %v341 = vld [vmem:[%s266 + $0x30] sm:$0xf]
      %v342 = vld [vmem:[%s266 + $0x34] sm:$0xf]
      %v343 = vld [vmem:[%s266 + $0x38] sm:$0xf]
      %v344 = vld [vmem:[%s266 + $0x3c] sm:$0xf]
      %v345 = vld [vmem:[%s266 + $0x40] sm:$0xf]
      %v346 = vld [vmem:[%s266 + $0x44] sm:$0xf]
      %v347 = vld [vmem:[%s266 + $0x48] sm:$0xf]
      %v348 = vld [vmem:[%s266 + $0x4c] sm:$0xf]
      %v349 = vld [vmem:[%s266 + $0x50] sm:$0xf]
      %v350 = vld [vmem:[%s266 + $0x54] sm:$0xf]
      %v351 = vld [vmem:[%s266 + $0x58] sm:$0xf]
      %v352 = vld [vmem:[%s266 + $0x5c] sm:$0xf]
      %v353 = vld [vmem:[%s266 + $0x60] sm:$0xf]
      %v354 = vld [vmem:[%s266 + $0x64] sm:$0xf]
      %v355 = vld [vmem:[%s266 + $0x68] sm:$0xf]
      %v356 = vld [vmem:[%s266 + $0x6c] sm:$0xf]
      %v357 = vld [vmem:[%s266 + $0x70] sm:$0xf]
      %v358 = vld [vmem:[%s266 + $0x74] sm:$0xf]
      %v359 = vld [vmem:[%s266 + $0x78] sm:$0xf]
      %v360 = vld [vmem:[%s266 + $0x7c] sm:$0xf]
      %v361 = vld [vmem:[%s266 + $0x80] sm:$0xf]
      %v362 = vld [vmem:[%s266 + $0x84] sm:$0xf]
      %v363 = vld [vmem:[%s266 + $0x88] sm:$0xf]
      %v364 = vld [vmem:[%s266 + $0x8c] sm:$0xf]
      %v365 = vld [vmem:[%s266 + $0x90] sm:$0xf]
      %v366 = vld [vmem:[%s266 + $0x94] sm:$0xf]
      %v367 = vld [vmem:[%s266 + $0x98] sm:$0xf]
      %v368 = vld [vmem:[%s266 + $0x9c] sm:$0xf]
      %v369 = vld [vmem:[%s266 + $0xa0] sm:$0xf]
      %v370 = vld [vmem:[%s266 + $0xa4] sm:$0xf]
      %v371 = vld [vmem:[%s266 + $0xa8] sm:$0xf]
      %v372 = vld [vmem:[%s266 + $0xac] sm:$0xf]
      %v373 = vld [vmem:[%s266 + $0xb0] sm:$0xf]
      %v374 = vld [vmem:[%s266 + $0xb4] sm:$0xf]
      %v375 = vld [vmem:[%s266 + $0xb8] sm:$0xf]
      %v376 = vld [vmem:[%s266 + $0xbc] sm:$0xf]
      %v377 = vld [vmem:[%s266 + $0xc0] sm:$0xf]
      %v378 = vld [vmem:[%s266 + $0xc4] sm:$0xf]
      %v379 = vld [vmem:[%s266 + $0xc8] sm:$0xf]
      %v380 = vld [vmem:[%s266 + $0xcc] sm:$0xf]
      %v381 = vld [vmem:[%s266 + $0xd0] sm:$0xf]
      %v382 = vld [vmem:[%s266 + $0xd4] sm:$0xf]
      %v383 = vld [vmem:[%s266 + $0xd8] sm:$0xf]
      %v384 = vld [vmem:[%s266 + $0xdc] sm:$0xf]
      %v385 = vld [vmem:[%s266 + $0xe0] sm:$0xf]
      %v386 = vld [vmem:[%s266 + $0xe4] sm:$0xf]
      %v387 = vld [vmem:[%s266 + $0xe8] sm:$0xf]
      %v388 = vld [vmem:[%s266 + $0xec] sm:$0xf]
      %v389 = vld [vmem:[%s266 + $0xf0] sm:$0xf]
      %v390 = vld [vmem:[%s266 + $0xf4] sm:$0xf]
      %v391 = vld [vmem:[%s266 + $0xf8] sm:$0xf]
      %v392 = vld [vmem:[%s266 + $0xfc] sm:$0xf]
      %v393 = vld [vmem:[%s266 + $0x100] sm:$0xf]
      %v394 = vld [vmem:[%s266 + $0x104] sm:$0xf]
      %v395 = vld [vmem:[%s266 + $0x108] sm:$0xf]
      %v396 = vld [vmem:[%s266 + $0x10c] sm:$0xf]
      %v397 = vld [vmem:[%s266 + $0x110] sm:$0xf]
      %v398 = vld [vmem:[%s266 + $0x114] sm:$0xf]
      %v399 = vld [vmem:[%s266 + $0x118] sm:$0xf]
      %v400 = vld [vmem:[%s266 + $0x11c] sm:$0xf]
      %v401 = vld [vmem:[%s266 + $0x120] sm:$0xf]
      %v402 = vld [vmem:[%s266 + $0x124] sm:$0xf]
      %v403 = vld [vmem:[%s266 + $0x128] sm:$0xf]
      %v404 = vld [vmem:[%s266 + $0x12c] sm:$0xf]
      %v405 = vld [vmem:[%s266 + $0x130] sm:$0xf]
      %v406 = vld [vmem:[%s266 + $0x134] sm:$0xf]
      %v407 = vld [vmem:[%s266 + $0x138] sm:$0xf]
      %v408 = vld [vmem:[%s266 + $0x13c] sm:$0xf]
      %v409 = vld [vmem:[%s266 + $0x140] sm:$0xf]
      %v410 = vld [vmem:[%s266 + $0x144] sm:$0xf]
      %v411 = vld [vmem:[%s266 + $0x148] sm:$0xf]
      %v412 = vld [vmem:[%s266 + $0x14c] sm:$0xf]
      %v413 = vld [vmem:[%s266 + $0x150] sm:$0xf]
      %v414 = vld [vmem:[%s266 + $0x154] sm:$0xf]
      %v415 = vld [vmem:[%s266 + $0x158] sm:$0xf]
      %v416 = vld [vmem:[%s266 + $0x15c] sm:$0xf]
      %v417 = vld [vmem:[%s266 + $0x160] sm:$0xf]
      %v418 = vld [vmem:[%s266 + $0x164] sm:$0xf]
      %v419 = vld [vmem:[%s266 + $0x168] sm:$0xf]
      %v420 = vld [vmem:[%s266 + $0x16c] sm:$0xf]
      %v421 = vld [vmem:[%s266 + $0x170] sm:$0xf]
      %v422 = vld [vmem:[%s266 + $0x174] sm:$0xf]
      %v423 = vld [vmem:[%s266 + $0x178] sm:$0xf]
      %v424 = vld [vmem:[%s266 + $0x17c] sm:$0xf]
      %v425 = vld [vmem:[%s266 + $0x180] sm:$0xf]
      %v426 = vld [vmem:[%s266 + $0x184] sm:$0xf]
      %v427 = vld [vmem:[%s266 + $0x188] sm:$0xf]
      %v428 = vld [vmem:[%s266 + $0x18c] sm:$0xf]
      %v429 = vld [vmem:[%s266 + $0x190] sm:$0xf]
      %v430 = vld [vmem:[%s266 + $0x194] sm:$0xf]
      %v431 = vld [vmem:[%s266 + $0x198] sm:$0xf]
      %v432 = vld [vmem:[%s266 + $0x19c] sm:$0xf]
      %v433 = vld [vmem:[%s266 + $0x1a0] sm:$0xf]
      %v434 = vld [vmem:[%s266 + $0x1a4] sm:$0xf]
      %v435 = vld [vmem:[%s266 + $0x1a8] sm:$0xf]
      %v436 = vld [vmem:[%s266 + $0x1ac] sm:$0xf]
      %v437 = vld [vmem:[%s266 + $0x1b0] sm:$0xf]
      %v438 = vld [vmem:[%s266 + $0x1b4] sm:$0xf]
      %v439 = vld [vmem:[%s266 + $0x1b8] sm:$0xf]
      %v440 = vld [vmem:[%s266 + $0x1bc] sm:$0xf]
      %v441 = vld [vmem:[%s266 + $0x1c0] sm:$0xf]
      %v442 = vld [vmem:[%s266 + $0x1c4] sm:$0xf]
      %v443 = vld [vmem:[%s266 + $0x1c8] sm:$0xf]
      %v444 = vld [vmem:[%s266 + $0x1cc] sm:$0xf]
      %v445 = vld [vmem:[%s266 + $0x1d0] sm:$0xf]
      %v446 = vld [vmem:[%s266 + $0x1d4] sm:$0xf]
      %v447 = vld [vmem:[%s266 + $0x1d8] sm:$0xf]
      %v448 = vld [vmem:[%s266 + $0x1dc] sm:$0xf]
      %v449 = vld [vmem:[%s266 + $0x1e0] sm:$0xf]
      %v450 = vld [vmem:[%s266 + $0x1e4] sm:$0xf]
      %v451 = vld [vmem:[%s266 + $0x1e8] sm:$0xf]
      %v452 = vld [vmem:[%s266 + $0x1ec] sm:$0xf]
      %v453 = vld [vmem:[%s266 + $0x1f0] sm:$0xf]
      %v454 = vld [vmem:[%s266 + $0x1f4] sm:$0xf]
      %v455 = vld [vmem:[%s266 + $0x1f8] sm:$0xf]
      %v456 = vld [vmem:[%s266 + $0x1fc] sm:$0xf]
      %v457 = vld [vmem:[%s266 + $0x200] sm:$0xf]
      %v458 = vld [vmem:[%s266 + $0x204] sm:$0xf]
      %v459 = vld [vmem:[%s266 + $0x208] sm:$0xf]
      %v460 = vld [vmem:[%s266 + $0x20c] sm:$0xf]
      %v461 = vld [vmem:[%s266 + $0x210] sm:$0xf]
      %v462 = vld [vmem:[%s266 + $0x214] sm:$0xf]
      %v463 = vld [vmem:[%s266 + $0x218] sm:$0xf]
      %v464 = vld [vmem:[%s266 + $0x21c] sm:$0xf]
      %v465 = vld [vmem:[%s266 + $0x220] sm:$0xf]
      %v466 = vld [vmem:[%s266 + $0x224] sm:$0xf]
      %v467 = vld [vmem:[%s266 + $0x228] sm:$0xf]
      %v468 = vld [vmem:[%s266 + $0x22c] sm:$0xf]
      %v469 = vld [vmem:[%s266 + $0x230] sm:$0xf]
      %v470 = vld [vmem:[%s266 + $0x234] sm:$0xf]
      %v471 = vld [vmem:[%s266 + $0x238] sm:$0xf]
      %v472 = vld [vmem:[%s266 + $0x23c] sm:$0xf]
      %v473 = vld [vmem:[%s269] sm:$0x1]
      %v475 = vlaneseq
      %v476 = vshrl.u32 %v475, 7
      %v477 = vsub.s32 0, %v476
      %v478 = vrot.slane %v473, %v477
      %v520 = vunpack.c.l.b16 %v289
      %v521 = vunpack.c.h.b16 %v289
      %v522 = vunpack.c.l.b16 %v290
      %v523 = vunpack.c.h.b16 %v290
      %v524 = vunpack.c.l.b16 %v291
      %v525 = vunpack.c.h.b16 %v291
      %v526 = vunpack.c.l.b16 %v292
      %v527 = vunpack.c.h.b16 %v292
      %v528 = vunpack.c.l.b16 %v293
      %v529 = vunpack.c.l.b16 %v294
      %v530 = vunpack.c.h.b16 %v294
      %v531 = vunpack.c.l.b16 %v295
      %v532 = vunpack.c.h.b16 %v295
      %v533 = vunpack.c.l.b16 %v296
      %v534 = vunpack.c.h.b16 %v296
      %v535 = vunpack.c.l.b16 %v297
      %v536 = vunpack.c.h.b16 %v297
      %v537 = vunpack.c.l.b16 %v298
      %v538 = vunpack.c.l.b16 %v299
      %v539 = vunpack.c.h.b16 %v299
      %v540 = vunpack.c.l.b16 %v300
      %v541 = vunpack.c.h.b16 %v300
      %v542 = vunpack.c.l.b16 %v301
      %v543 = vunpack.c.h.b16 %v301
      %v544 = vunpack.c.l.b16 %v302
      %v545 = vunpack.c.h.b16 %v302
      %v546 = vunpack.c.l.b16 %v303
      %v547 = vunpack.c.l.b16 %v304
      %v548 = vunpack.c.h.b16 %v304
      %v549 = vunpack.c.l.b16 %v305
      %v550 = vunpack.c.h.b16 %v305
      %v551 = vunpack.c.l.b16 %v306
      %v552 = vunpack.c.h.b16 %v306
      %v553 = vunpack.c.l.b16 %v307
      %v554 = vunpack.c.h.b16 %v307
      %v555 = vunpack.c.l.b16 %v308
      %v556 = vunpack.c.l.b16 %v309
      %v557 = vunpack.c.h.b16 %v309
      %v558 = vunpack.c.l.b16 %v310
      %v559 = vunpack.c.h.b16 %v310
      %v560 = vunpack.c.l.b16 %v311
      %v561 = vunpack.c.h.b16 %v311
      %v562 = vunpack.c.l.b16 %v312
      %v563 = vunpack.c.h.b16 %v312
      %v564 = vunpack.c.l.b16 %v313
      %v565 = vunpack.c.l.b16 %v314
      %v566 = vunpack.c.h.b16 %v314
      %v567 = vunpack.c.l.b16 %v315
      %v568 = vunpack.c.h.b16 %v315
      %v569 = vunpack.c.l.b16 %v316
      %v570 = vunpack.c.h.b16 %v316
      %v571 = vunpack.c.l.b16 %v317
      %v572 = vunpack.c.h.b16 %v317
      %v573 = vunpack.c.l.b16 %v318
      %v574 = vunpack.c.l.b16 %v319
      %v575 = vunpack.c.h.b16 %v319
      %v576 = vunpack.c.l.b16 %v320
      %v577 = vunpack.c.h.b16 %v320
      %v578 = vunpack.c.l.b16 %v321
      %v579 = vunpack.c.h.b16 %v321
      %v580 = vunpack.c.l.b16 %v322
      %v581 = vunpack.c.h.b16 %v322
      %v582 = vunpack.c.l.b16 %v323
      %v583 = vunpack.c.l.b16 %v324
      %v584 = vunpack.c.h.b16 %v324
      %v585 = vunpack.c.l.b16 %v325
      %v586 = vunpack.c.h.b16 %v325
      %v587 = vunpack.c.l.b16 %v326
      %v588 = vunpack.c.h.b16 %v326
      %v589 = vunpack.c.l.b16 %v327
      %v590 = vunpack.c.h.b16 %v327
      %v591 = vunpack.c.l.b16 %v328
      %v592 = vpack.c.b16 %v529, %v520
      %v593 = vpack.c.b16 %v530, %v521
      %v594 = vpack.c.b16 %v531, %v522
      %v595 = vpack.c.b16 %v532, %v523
      %v596 = vpack.c.b16 %v533, %v524
      %v597 = vpack.c.b16 %v534, %v525
      %v598 = vpack.c.b16 %v535, %v526
      %v599 = vpack.c.b16 %v536, %v527
      %v600 = vpack.c.b16 %v537, %v528
      %v601 = vpack.c.b16 %v547, %v538
      %v602 = vpack.c.b16 %v548, %v539
      %v603 = vpack.c.b16 %v549, %v540
      %v604 = vpack.c.b16 %v550, %v541
      %v605 = vpack.c.b16 %v551, %v542
      %v606 = vpack.c.b16 %v552, %v543
      %v607 = vpack.c.b16 %v553, %v544
      %v608 = vpack.c.b16 %v554, %v545
      %v609 = vpack.c.b16 %v555, %v546
      %v610 = vpack.c.b16 %v565, %v556
      %v611 = vpack.c.b16 %v566, %v557
      %v612 = vpack.c.b16 %v567, %v558
      %v613 = vpack.c.b16 %v568, %v559
      %v614 = vpack.c.b16 %v569, %v560
      %v615 = vpack.c.b16 %v570, %v561
      %v616 = vpack.c.b16 %v571, %v562
      %v617 = vpack.c.b16 %v572, %v563
      %v618 = vpack.c.b16 %v573, %v564
      %v619 = vpack.c.b16 %v583, %v574
      %v620 = vpack.c.b16 %v584, %v575
      %v621 = vpack.c.b16 %v585, %v576
      %v622 = vpack.c.b16 %v586, %v577
      %v623 = vpack.c.b16 %v587, %v578
      %v624 = vpack.c.b16 %v588, %v579
      %v625 = vpack.c.b16 %v589, %v580
      %v626 = vpack.c.b16 %v590, %v581
      %v627 = vpack.c.b16 %v591, %v582
      %v808 = vunpack.c.l.b16 %v329
      %v809 = vunpack.c.l.b16 %v330
      %v810 = vunpack.c.l.b16 %v331
      %v811 = vunpack.c.l.b16 %v332
      %v812 = vunpack.c.l.b16 %v333
      %v813 = vunpack.c.l.b16 %v334
      %v814 = vunpack.c.l.b16 %v335
      %v815 = vunpack.c.l.b16 %v336
      %v816 = vunpack.c.l.b16 %v337
      %v817 = vunpack.c.l.b16 %v338
      %v818 = vunpack.c.l.b16 %v339
      %v819 = vunpack.c.l.b16 %v340
      %v820 = vunpack.c.l.b16 %v341
      %v821 = vunpack.c.l.b16 %v342
      %v822 = vunpack.c.l.b16 %v343
      %v823 = vunpack.c.l.b16 %v344
      %v824 = vunpack.c.l.b16 %v345
      %v825 = vunpack.c.l.b16 %v346
      %v826 = vunpack.c.l.b16 %v347
      %v827 = vunpack.c.l.b16 %v348
      %v828 = vunpack.c.l.b16 %v349
      %v829 = vunpack.c.l.b16 %v350
      %v830 = vunpack.c.l.b16 %v351
      %v831 = vunpack.c.l.b16 %v352
      %v832 = vunpack.c.l.b16 %v353
      %v833 = vunpack.c.l.b16 %v354
      %v834 = vunpack.c.l.b16 %v355
      %v835 = vunpack.c.l.b16 %v356
      %v836 = vunpack.c.l.b16 %v357
      %v837 = vunpack.c.l.b16 %v358
      %v838 = vunpack.c.l.b16 %v359
      %v839 = vunpack.c.l.b16 %v360
      %v840 = vunpack.c.l.b16 %v361
      %v841 = vunpack.c.l.b16 %v362
      %v842 = vunpack.c.l.b16 %v363
      %v843 = vunpack.c.l.b16 %v364
      %v844 = vunpack.c.l.b16 %v365
      %v845 = vunpack.c.l.b16 %v366
      %v846 = vunpack.c.l.b16 %v367
      %v847 = vunpack.c.l.b16 %v368
      %v848 = vunpack.c.l.b16 %v369
      %v849 = vunpack.c.l.b16 %v370
      %v850 = vunpack.c.l.b16 %v371
      %v851 = vunpack.c.l.b16 %v372
      %v852 = vunpack.c.l.b16 %v373
      %v853 = vunpack.c.l.b16 %v374
      %v854 = vunpack.c.l.b16 %v375
      %v855 = vunpack.c.l.b16 %v376
      %v856 = vunpack.c.l.b16 %v377
      %v857 = vunpack.c.l.b16 %v378
      %v858 = vunpack.c.l.b16 %v379
      %v859 = vunpack.c.l.b16 %v380
      %v860 = vunpack.c.l.b16 %v381
      %v861 = vunpack.c.l.b16 %v382
      %v862 = vunpack.c.l.b16 %v383
      %v863 = vunpack.c.l.b16 %v384
      %v864 = vunpack.c.l.b16 %v385
      %v865 = vunpack.c.l.b16 %v386
      %v866 = vunpack.c.l.b16 %v387
      %v867 = vunpack.c.l.b16 %v388
      %v868 = vunpack.c.l.b16 %v389
      %v869 = vunpack.c.l.b16 %v390
      %v870 = vunpack.c.l.b16 %v391
      %v871 = vunpack.c.l.b16 %v392
      %v872 = vunpack.c.l.b16 %v393
      %v873 = vunpack.c.l.b16 %v394
      %v874 = vunpack.c.l.b16 %v395
      %v875 = vunpack.c.l.b16 %v396
      %v876 = vunpack.c.l.b16 %v397
      %v877 = vunpack.c.l.b16 %v398
      %v878 = vunpack.c.l.b16 %v399
      %v879 = vunpack.c.l.b16 %v400
      %v880 = vunpack.c.l.b16 %v401
      %v881 = vunpack.c.l.b16 %v402
      %v882 = vunpack.c.l.b16 %v403
      %v883 = vunpack.c.l.b16 %v404
      %v884 = vunpack.c.l.b16 %v405
      %v885 = vunpack.c.l.b16 %v406
      %v886 = vunpack.c.l.b16 %v407
      %v887 = vunpack.c.l.b16 %v408
      %v888 = vunpack.c.l.b16 %v409
      %v889 = vunpack.c.l.b16 %v410
      %v890 = vunpack.c.l.b16 %v411
      %v891 = vunpack.c.l.b16 %v412
      %v892 = vunpack.c.l.b16 %v413
      %v893 = vunpack.c.l.b16 %v414
      %v894 = vunpack.c.l.b16 %v415
      %v895 = vunpack.c.l.b16 %v416
      %v896 = vunpack.c.l.b16 %v417
      %v897 = vunpack.c.l.b16 %v418
      %v898 = vunpack.c.l.b16 %v419
      %v899 = vunpack.c.l.b16 %v420
      %v900 = vunpack.c.l.b16 %v421
      %v901 = vunpack.c.l.b16 %v422
      %v902 = vunpack.c.l.b16 %v423
      %v903 = vunpack.c.l.b16 %v424
      %v904 = vunpack.c.l.b16 %v425
      %v905 = vunpack.c.l.b16 %v426
      %v906 = vunpack.c.l.b16 %v427
      %v907 = vunpack.c.l.b16 %v428
      %v908 = vunpack.c.l.b16 %v429
      %v909 = vunpack.c.l.b16 %v430
      %v910 = vunpack.c.l.b16 %v431
      %v911 = vunpack.c.l.b16 %v432
      %v912 = vunpack.c.l.b16 %v433
      %v913 = vunpack.c.l.b16 %v434
      %v914 = vunpack.c.l.b16 %v435
      %v915 = vunpack.c.l.b16 %v436
      %v916 = vunpack.c.l.b16 %v437
      %v917 = vunpack.c.l.b16 %v438
      %v918 = vunpack.c.l.b16 %v439
      %v919 = vunpack.c.l.b16 %v440
      %v920 = vunpack.c.l.b16 %v441
      %v921 = vunpack.c.l.b16 %v442
      %v922 = vunpack.c.l.b16 %v443
      %v923 = vunpack.c.l.b16 %v444
      %v924 = vunpack.c.l.b16 %v445
      %v925 = vunpack.c.l.b16 %v446
      %v926 = vunpack.c.l.b16 %v447
      %v927 = vunpack.c.l.b16 %v448
      %v928 = vunpack.c.l.b16 %v449
      %v929 = vunpack.c.l.b16 %v450
      %v930 = vunpack.c.l.b16 %v451
      %v931 = vunpack.c.l.b16 %v452
      %v932 = vunpack.c.l.b16 %v453
      %v933 = vunpack.c.l.b16 %v454
      %v934 = vunpack.c.l.b16 %v455
      %v935 = vunpack.c.l.b16 %v456
      %v936 = vunpack.c.l.b16 %v457
      %v937 = vunpack.c.l.b16 %v458
      %v938 = vunpack.c.l.b16 %v459
      %v939 = vunpack.c.l.b16 %v460
      %v940 = vunpack.c.l.b16 %v461
      %v941 = vunpack.c.l.b16 %v462
      %v942 = vunpack.c.l.b16 %v463
      %v943 = vunpack.c.l.b16 %v464
      %v944 = vunpack.c.l.b16 %v465
      %v945 = vunpack.c.l.b16 %v466
      %v946 = vunpack.c.l.b16 %v467
      %v947 = vunpack.c.l.b16 %v468
      %v948 = vunpack.c.l.b16 %v469
      %v949 = vunpack.c.l.b16 %v470
      %v950 = vunpack.c.l.b16 %v471
      %v951 = vunpack.c.l.b16 %v472
      %v952 = vpack.c.b16 %v809, %v808
      %v953 = vpack.c.b16 %v811, %v810
      %v954 = vpack.c.b16 %v813, %v812
      %v955 = vpack.c.b16 %v815, %v814
      %v956 = vpack.c.b16 %v817, %v816
      %v957 = vpack.c.b16 %v819, %v818
      %v958 = vpack.c.b16 %v821, %v820
      %v959 = vpack.c.b16 %v823, %v822
      %v960 = vpack.c.b16 %v825, %v824
      %v961 = vpack.c.b16 %v827, %v826
      %v962 = vpack.c.b16 %v829, %v828
      %v963 = vpack.c.b16 %v831, %v830
      %v964 = vpack.c.b16 %v833, %v832
      %v965 = vpack.c.b16 %v835, %v834
      %v966 = vpack.c.b16 %v837, %v836
      %v967 = vpack.c.b16 %v839, %v838
      %v968 = vpack.c.b16 %v841, %v840
      %v969 = vpack.c.b16 %v843, %v842
      %v970 = vpack.c.b16 %v845, %v844
      %v971 = vpack.c.b16 %v847, %v846
      %v972 = vpack.c.b16 %v849, %v848
      %v973 = vpack.c.b16 %v851, %v850
      %v974 = vpack.c.b16 %v853, %v852
      %v975 = vpack.c.b16 %v855, %v854
      %v976 = vpack.c.b16 %v857, %v856
      %v977 = vpack.c.b16 %v859, %v858
      %v978 = vpack.c.b16 %v861, %v860
      %v979 = vpack.c.b16 %v863, %v862
      %v980 = vpack.c.b16 %v865, %v864
      %v981 = vpack.c.b16 %v867, %v866
      %v982 = vpack.c.b16 %v869, %v868
      %v983 = vpack.c.b16 %v871, %v870
      %v984 = vpack.c.b16 %v873, %v872
      %v985 = vpack.c.b16 %v875, %v874
      %v986 = vpack.c.b16 %v877, %v876
      %v987 = vpack.c.b16 %v879, %v878
      %v988 = vpack.c.b16 %v881, %v880
      %v989 = vpack.c.b16 %v883, %v882
      %v990 = vpack.c.b16 %v885, %v884
      %v991 = vpack.c.b16 %v887, %v886
      %v992 = vpack.c.b16 %v889, %v888
      %v993 = vpack.c.b16 %v891, %v890
      %v994 = vpack.c.b16 %v893, %v892
      %v995 = vpack.c.b16 %v895, %v894
      %v996 = vpack.c.b16 %v897, %v896
      %v997 = vpack.c.b16 %v899, %v898
      %v998 = vpack.c.b16 %v901, %v900
      %v999 = vpack.c.b16 %v903, %v902
      %v1000 = vpack.c.b16 %v905, %v904
      %v1001 = vpack.c.b16 %v907, %v906
      %v1002 = vpack.c.b16 %v909, %v908
      %v1003 = vpack.c.b16 %v911, %v910
      %v1004 = vpack.c.b16 %v913, %v912
      %v1005 = vpack.c.b16 %v915, %v914
      %v1006 = vpack.c.b16 %v917, %v916
      %v1007 = vpack.c.b16 %v919, %v918
      %v1008 = vpack.c.b16 %v921, %v920
      %v1009 = vpack.c.b16 %v923, %v922
      %v1010 = vpack.c.b16 %v925, %v924
      %v1011 = vpack.c.b16 %v927, %v926
      %v1012 = vpack.c.b16 %v929, %v928
      %v1013 = vpack.c.b16 %v931, %v930
      %v1014 = vpack.c.b16 %v933, %v932
      %v1015 = vpack.c.b16 %v935, %v934
      %v1016 = vpack.c.b16 %v937, %v936
      %v1017 = vpack.c.b16 %v939, %v938
      %v1018 = vpack.c.b16 %v941, %v940
      %v1019 = vpack.c.b16 %v943, %v942
      %v1020 = vpack.c.b16 %v945, %v944
      %v1021 = vpack.c.b16 %v947, %v946
      %v1022 = vpack.c.b16 %v949, %v948
      %v1023 = vpack.c.b16 %v951, %v950
      %1096 = vmatprep.subr.bf16.mxu0 0
      %1097 = vmatpush1.bf16.msra.mxu0 %v952
      %1098 = vmatprep.subr.bf16.mxu0 0
      %1099 = vmatpush1.bf16.msra.mxu0 %v953
      %1100 = vmatprep.subr.bf16.mxu0 0
      %1101 = vmatpush1.bf16.msra.mxu0 %v954
      %1102 = vmatprep.subr.bf16.mxu0 0
      %1103 = vmatpush1.bf16.msra.mxu0 %v955
      %1104 = vmatprep.subr.bf16.mxu0 0
      %1105 = vmatpush1.bf16.msra.mxu0 %v956
      %1106 = vmatprep.subr.bf16.mxu0 0
      %1107 = vmatpush1.bf16.msra.mxu0 %v957
      %1108 = vmatprep.subr.bf16.mxu0 0
      %1109 = vmatpush1.bf16.msra.mxu0 %v958
      %1110 = vmatprep.subr.bf16.mxu0 0
      %1111 = vmatpush1.bf16.msra.mxu0 %v959
      %1112 = vmatprep.subr.bf16.mxu0 0
      %1113 = vmatpush1.bf16.msra.mxu0 %v960
      %1114 = vmatprep.subr.bf16.mxu0 0
      %1115 = vmatpush1.bf16.msra.mxu0 %v961
      %1116 = vmatprep.subr.bf16.mxu0 0
      %1117 = vmatpush1.bf16.msra.mxu0 %v962
      %1118 = vmatprep.subr.bf16.mxu0 0
      %1119 = vmatpush1.bf16.msra.mxu0 %v963
      %1120 = vmatprep.subr.bf16.mxu0 0
      %1121 = vmatpush1.bf16.msra.mxu0 %v964
      %1122 = vmatprep.subr.bf16.mxu0 0
      %1123 = vmatpush1.bf16.msra.mxu0 %v965
      %1124 = vmatprep.subr.bf16.mxu0 0
      %1125 = vmatpush1.bf16.msra.mxu0 %v966
      %1126 = vmatprep.subr.bf16.mxu0 0
      %1127 = vmatpush1.bf16.msra.mxu0 %v967
      %1128 = vmatprep.mubr.bf16.mxu0 %v593
      %1129 = vmatmul.mubr.bf16.gmra.mrb[0].mxu0 %v592
      %v1130 = vpop.f32.mrb[0].mxu0
      %v1131 = vadd.f32 %v478, %v1130
      %v1132 = vpop.f32.mrb[0].mxu0
      %v1133 = vpop.f32.mrb[0].mxu0
      %v1134 = vadd.f32 %v478, %v1133
      %v1135 = vpop.f32.mrb[0].mxu0
      %1136 = vmatprep.mubr.bf16.mxu0 %v602
      %1137 = vmatmul.mubr.bf16.gmra.mrb[0].mxu0 %v601
      %v1138 = vpop.f32.mrb[0].mxu0
      %v1139 = vadd.f32 %v478, %v1138
      %v1140 = vpop.f32.mrb[0].mxu0
      %v1141 = vpop.f32.mrb[0].mxu0
      %v1142 = vadd.f32 %v478, %v1141
      %v1143 = vpop.f32.mrb[0].mxu0
      %1144 = vmatprep.mubr.bf16.mxu0 %v611
      %1145 = vmatmul.mubr.bf16.gmra.mrb[0].mxu0 %v610
      %v1146 = vpop.f32.mrb[0].mxu0
      %v1147 = vadd.f32 %v478, %v1146
      %v1148 = vpop.f32.mrb[0].mxu0
      %v1149 = vpop.f32.mrb[0].mxu0
      %v1150 = vadd.f32 %v478, %v1149
      %v1151 = vpop.f32.mrb[0].mxu0
      %1152 = vmatprep.mubr.bf16.mxu0 %v620
      %1153 = vmatmul.mubr.bf16.gmra.mrb[0].mxu0 %v619
      %v1154 = vpop.f32.mrb[0].mxu0
      %v1155 = vadd.f32 %v478, %v1154
      %v1156 = vpop.f32.mrb[0].mxu0
      %v1157 = vpop.f32.mrb[0].mxu0
      %v1158 = vadd.f32 %v478, %v1157
      %v1159 = vpop.f32.mrb[0].mxu0
      %1160 = vdwg.mxu0
      %1161 = vmatprep.subr.bf16.mxu0 0
      %1162 = vmatpush1.bf16.msra.mxu0 %v968
      %1163 = vmatprep.subr.bf16.mxu0 0
      %1164 = vmatpush1.bf16.msra.mxu0 %v969
      %1165 = vmatprep.subr.bf16.mxu0 0
      %1166 = vmatpush1.bf16.msra.mxu0 %v970
      %1167 = vmatprep.subr.bf16.mxu0 0
      %1168 = vmatpush1.bf16.msra.mxu0 %v971
      %1169 = vmatprep.subr.bf16.mxu0 0
      %1170 = vmatpush1.bf16.msra.mxu0 %v972
      %1171 = vmatprep.subr.bf16.mxu0 0
      %1172 = vmatpush1.bf16.msra.mxu0 %v973
      %1173 = vmatprep.subr.bf16.mxu0 0
      %1174 = vmatpush1.bf16.msra.mxu0 %v974
      %1175 = vmatprep.subr.bf16.mxu0 0
      %1176 = vmatpush1.bf16.msra.mxu0 %v975
      %1177 = vmatprep.subr.bf16.mxu0 0
      %1178 = vmatpush1.bf16.msra.mxu0 %v976
      %1179 = vmatprep.subr.bf16.mxu0 0
      %1180 = vmatpush1.bf16.msra.mxu0 %v977
      %1181 = vmatprep.subr.bf16.mxu0 0
      %1182 = vmatpush1.bf16.msra.mxu0 %v978
      %1183 = vmatprep.subr.bf16.mxu0 0
      %1184 = vmatpush1.bf16.msra.mxu0 %v979
      %1185 = vmatprep.subr.bf16.mxu0 0
      %1186 = vmatpush1.bf16.msra.mxu0 %v980
      %1187 = vmatprep.subr.bf16.mxu0 0
      %1188 = vmatpush1.bf16.msra.mxu0 %v981
      %1189 = vmatprep.subr.bf16.mxu0 0
      %1190 = vmatpush1.bf16.msra.mxu0 %v982
      %1191 = vmatprep.subr.bf16.mxu0 0
      %1192 = vmatpush1.bf16.msra.mxu0 %v983
      %1193 = vmatprep.mubr.bf16.mxu0 %v595
      %1194 = vmatmul.mubr.bf16.gmra.mrb[0].mxu0 %v594
      %v1195 = vpop.f32.mrb[0].mxu0
      %v1196 = vadd.f32 %v1131, %v1195
      %v1197 = vpop.f32.mrb[0].mxu0
      %v1198 = vpop.f32.mrb[0].mxu0
      %v1199 = vadd.f32 %v1134, %v1198
      %v1200 = vpop.f32.mrb[0].mxu0
      %1201 = vmatprep.mubr.bf16.mxu0 %v604
      %1202 = vmatmul.mubr.bf16.gmra.mrb[0].mxu0 %v603
      %v1203 = vpop.f32.mrb[0].mxu0
      %v1204 = vadd.f32 %v1139, %v1203
      %v1205 = vpop.f32.mrb[0].mxu0
      %v1206 = vpop.f32.mrb[0].mxu0
      %v1207 = vadd.f32 %v1142, %v1206
      %v1208 = vpop.f32.mrb[0].mxu0
      %1209 = vmatprep.mubr.bf16.mxu0 %v613
      %1210 = vmatmul.mubr.bf16.gmra.mrb[0].mxu0 %v612
      %v1211 = vpop.f32.mrb[0].mxu0
      %v1212 = vadd.f32 %v1147, %v1211
      %v1213 = vpop.f32.mrb[0].mxu0
      %v1214 = vpop.f32.mrb[0].mxu0
      %v1215 = vadd.f32 %v1150, %v1214
      %v1216 = vpop.f32.mrb[0].mxu0
      %1217 = vmatprep.mubr.bf16.mxu0 %v622
      %1218 = vmatmul.mubr.bf16.gmra.mrb[0].mxu0 %v621
      %v1219 = vpop.f32.mrb[0].mxu0
      %v1220 = vadd.f32 %v1155, %v1219
      %v1221 = vpop.f32.mrb[0].mxu0
      %v1222 = vpop.f32.mrb[0].mxu0
      %v1223 = vadd.f32 %v1158, %v1222
      %v1224 = vpop.f32.mrb[0].mxu0
      %1225 = vdwg.mxu0
      %1226 = vmatprep.subr.bf16.mxu0 0
      %1227 = vmatpush1.bf16.msra.mxu0 %v984
      %1228 = vmatprep.subr.bf16.mxu0 0
      %1229 = vmatpush1.bf16.msra.mxu0 %v985
      %1230 = vmatprep.subr.bf16.mxu0 0
      %1231 = vmatpush1.bf16.msra.mxu0 %v986
      %1232 = vmatprep.subr.bf16.mxu0 0
      %1233 = vmatpush1.bf16.msra.mxu0 %v987
      %1234 = vmatprep.subr.bf16.mxu0 0
      %1235 = vmatpush1.bf16.msra.mxu0 %v988
      %1236 = vmatprep.subr.bf16.mxu0 0
      %1237 = vmatpush1.bf16.msra.mxu0 %v989
      %1238 = vmatprep.subr.bf16.mxu0 0
      %1239 = vmatpush1.bf16.msra.mxu0 %v990
      %1240 = vmatprep.subr.bf16.mxu0 0
      %1241 = vmatpush1.bf16.msra.mxu0 %v991
      %1242 = vmatprep.subr.bf16.mxu0 0
      %1243 = vmatpush1.bf16.msra.mxu0 %v992
      %1244 = vmatprep.subr.bf16.mxu0 0
      %1245 = vmatpush1.bf16.msra.mxu0 %v993
      %1246 = vmatprep.subr.bf16.mxu0 0
      %1247 = vmatpush1.bf16.msra.mxu0 %v994
      %1248 = vmatprep.subr.bf16.mxu0 0
      %1249 = vmatpush1.bf16.msra.mxu0 %v995
      %1250 = vmatprep.subr.bf16.mxu0 0
      %1251 = vmatpush1.bf16.msra.mxu0 %v996
      %1252 = vmatprep.subr.bf16.mxu0 0
      %1253 = vmatpush1.bf16.msra.mxu0 %v997
      %1254 = vmatprep.subr.bf16.mxu0 0
      %1255 = vmatpush1.bf16.msra.mxu0 %v998
      %1256 = vmatprep.subr.bf16.mxu0 0
      %1257 = vmatpush1.bf16.msra.mxu0 %v999
      %1258 = vmatprep.mubr.bf16.mxu0 %v597
      %1259 = vmatmul.mubr.bf16.gmra.mrb[0].mxu0 %v596
      %v1260 = vpop.f32.mrb[0].mxu0
      %v1261 = vadd.f32 %v1196, %v1260
      %v1262 = vpop.f32.mrb[0].mxu0
      %v1263 = vpop.f32.mrb[0].mxu0
      %v1264 = vadd.f32 %v1199, %v1263
      %v1265 = vpop.f32.mrb[0].mxu0
      %1266 = vmatprep.mubr.bf16.mxu0 %v606
      %1267 = vmatmul.mubr.bf16.gmra.mrb[0].mxu0 %v605
      %v1268 = vpop.f32.mrb[0].mxu0
      %v1269 = vadd.f32 %v1204, %v1268
      %v1270 = vpop.f32.mrb[0].mxu0
      %v1271 = vpop.f32.mrb[0].mxu0
      %v1272 = vadd.f32 %v1207, %v1271
      %v1273 = vpop.f32.mrb[0].mxu0
      %1274 = vmatprep.mubr.bf16.mxu0 %v615
      %1275 = vmatmul.mubr.bf16.gmra.mrb[0].mxu0 %v614
      %v1276 = vpop.f32.mrb[0].mxu0
      %v1277 = vadd.f32 %v1212, %v1276
      %v1278 = vpop.f32.mrb[0].mxu0
      %v1279 = vpop.f32.mrb[0].mxu0
      %v1280 = vadd.f32 %v1215, %v1279
      %v1281 = vpop.f32.mrb[0].mxu0
      %1282 = vmatprep.mubr.bf16.mxu0 %v624
      %1283 = vmatmul.mubr.bf16.gmra.mrb[0].mxu0 %v623
      %v1284 = vpop.f32.mrb[0].mxu0
      %v1285 = vadd.f32 %v1220, %v1284
      %v1286 = vpop.f32.mrb[0].mxu0
      %v1287 = vpop.f32.mrb[0].mxu0
      %v1288 = vadd.f32 %v1223, %v1287
      %v1289 = vpop.f32.mrb[0].mxu0
      %1290 = vdwg.mxu0
      %1291 = vmatprep.subr.bf16.mxu0 0
      %1292 = vmatpush1.bf16.msra.mxu0 %v1000
      %1293 = vmatprep.subr.bf16.mxu0 0
      %1294 = vmatpush1.bf16.msra.mxu0 %v1001
      %1295 = vmatprep.subr.bf16.mxu0 0
      %1296 = vmatpush1.bf16.msra.mxu0 %v1002
      %1297 = vmatprep.subr.bf16.mxu0 0
      %1298 = vmatpush1.bf16.msra.mxu0 %v1003
      %1299 = vmatprep.subr.bf16.mxu0 0
      %1300 = vmatpush1.bf16.msra.mxu0 %v1004
      %1301 = vmatprep.subr.bf16.mxu0 0
      %1302 = vmatpush1.bf16.msra.mxu0 %v1005
      %1303 = vmatprep.subr.bf16.mxu0 0
      %1304 = vmatpush1.bf16.msra.mxu0 %v1006
      %1305 = vmatprep.subr.bf16.mxu0 0
      %1306 = vmatpush1.bf16.msra.mxu0 %v1007
      %1307 = vmatprep.subr.bf16.mxu0 0
      %1308 = vmatpush1.bf16.msra.mxu0 %v1008
      %1309 = vmatprep.subr.bf16.mxu0 0
      %1310 = vmatpush1.bf16.msra.mxu0 %v1009
      %1311 = vmatprep.subr.bf16.mxu0 0
      %1312 = vmatpush1.bf16.msra.mxu0 %v1010
      %1313 = vmatprep.subr.bf16.mxu0 0
      %1314 = vmatpush1.bf16.msra.mxu0 %v1011
      %1315 = vmatprep.subr.bf16.mxu0 0
      %1316 = vmatpush1.bf16.msra.mxu0 %v1012
      %1317 = vmatprep.subr.bf16.mxu0 0
      %1318 = vmatpush1.bf16.msra.mxu0 %v1013
      %1319 = vmatprep.subr.bf16.mxu0 0
      %1320 = vmatpush1.bf16.msra.mxu0 %v1014
      %1321 = vmatprep.subr.bf16.mxu0 0
      %1322 = vmatpush1.bf16.msra.mxu0 %v1015
      %1323 = vmatprep.mubr.bf16.mxu0 %v599
      %1324 = vmatmul.mubr.bf16.gmra.mrb[0].mxu0 %v598
      %v1325 = vpop.f32.mrb[0].mxu0
      %v1326 = vadd.f32 %v1261, %v1325
      %v1327 = vpop.f32.mrb[0].mxu0
      %v1328 = vpop.f32.mrb[0].mxu0
      %v1329 = vadd.f32 %v1264, %v1328
      %v1330 = vpop.f32.mrb[0].mxu0
      %1331 = vmatprep.mubr.bf16.mxu0 %v608
      %1332 = vmatmul.mubr.bf16.gmra.mrb[0].mxu0 %v607
      %v1333 = vpop.f32.mrb[0].mxu0
      %v1334 = vadd.f32 %v1269, %v1333
      %v1335 = vpop.f32.mrb[0].mxu0
      %v1336 = vpop.f32.mrb[0].mxu0
      %v1337 = vadd.f32 %v1272, %v1336
      %v1338 = vpop.f32.mrb[0].mxu0
      %1339 = vmatprep.mubr.bf16.mxu0 %v617
      %1340 = vmatmul.mubr.bf16.gmra.mrb[0].mxu0 %v616
      %v1341 = vpop.f32.mrb[0].mxu0
      %v1342 = vadd.f32 %v1277, %v1341
      %v1343 = vpop.f32.mrb[0].mxu0
      %v1344 = vpop.f32.mrb[0].mxu0
      %v1345 = vadd.f32 %v1280, %v1344
      %v1346 = vpop.f32.mrb[0].mxu0
      %1347 = vmatprep.mubr.bf16.mxu0 %v626
      %1348 = vmatmul.mubr.bf16.gmra.mrb[0].mxu0 %v625
      %v1349 = vpop.f32.mrb[0].mxu0
      %v1350 = vadd.f32 %v1285, %v1349
      %v1351 = vpop.f32.mrb[0].mxu0
      %v1352 = vpop.f32.mrb[0].mxu0
      %v1353 = vadd.f32 %v1288, %v1352
      %v1354 = vpop.f32.mrb[0].mxu0
      %1355 = vdwg.mxu0
      %1356 = vmatprep.subr.bf16.mxu0 0
      %1357 = vmatpush1.bf16.msra.mxu0 %v1016
      %1358 = vmatprep.subr.bf16.mxu0 0
      %1359 = vmatpush1.bf16.msra.mxu0 %v1017
      %1360 = vmatprep.subr.bf16.mxu0 0
      %1361 = vmatpush1.bf16.msra.mxu0 %v1018
      %1362 = vmatprep.subr.bf16.mxu0 0
      %1363 = vmatpush1.bf16.msra.mxu0 %v1019
      %1364 = vmatprep.subr.bf16.mxu0 0
      %1365 = vmatpush1.bf16.msra.mxu0 %v1020
      %1366 = vmatprep.subr.bf16.mxu0 0
      %1367 = vmatpush1.bf16.msra.mxu0 %v1021
      %1368 = vmatprep.subr.bf16.mxu0 0
      %1369 = vmatpush1.bf16.msra.mxu0 %v1022
      %1370 = vmatprep.subr.bf16.mxu0 0
      %1371 = vmatpush1.bf16.msra.mxu0 %v1023
      %1372 = vmatprep.subr.bf16.mxu0 0
      %1373 = vmatpush1.bf16.msra.mxu0 0
      %1374 = vmatprep.subr.bf16.mxu0 0
      %1375 = vmatpush1.bf16.msra.mxu0 0
      %1376 = vmatprep.subr.bf16.mxu0 0
      %1377 = vmatpush1.bf16.msra.mxu0 0
      %1378 = vmatprep.subr.bf16.mxu0 0
      %1379 = vmatpush1.bf16.msra.mxu0 0
      %1380 = vmatprep.subr.bf16.mxu0 0
      %1381 = vmatpush1.bf16.msra.mxu0 0
      %1382 = vmatprep.subr.bf16.mxu0 0
      %1383 = vmatpush1.bf16.msra.mxu0 0
      %1384 = vmatprep.subr.bf16.mxu0 0
      %1385 = vmatpush1.bf16.msra.mxu0 0
      %1386 = vmatprep.subr.bf16.mxu0 0
      %1387 = vmatpush1.bf16.msra.mxu0 0
      %1388 = vmatprep.mubr.bf16.mxu0 0
      %1389 = vmatmul.mubr.bf16.gmra.mrb[0].mxu0 %v600
      %v1390 = vpop.f32.mrb[0].mxu0
      %v1391 = vadd.f32 %v1326, %v1390
      %v1392 = vpop.f32.mrb[0].mxu0
      %v1393 = vpop.f32.mrb[0].mxu0
      %v1394 = vadd.f32 %v1329, %v1393
      %v1395 = vpop.f32.mrb[0].mxu0
      %1396 = vmatprep.mubr.bf16.mxu0 0
      %1397 = vmatmul.mubr.bf16.gmra.mrb[0].mxu0 %v609
      %v1398 = vpop.f32.mrb[0].mxu0
      %v1399 = vadd.f32 %v1334, %v1398
      %v1400 = vpop.f32.mrb[0].mxu0
      %v1401 = vpop.f32.mrb[0].mxu0
      %v1402 = vadd.f32 %v1337, %v1401
      %v1403 = vpop.f32.mrb[0].mxu0
      %1404 = vmatprep.mubr.bf16.mxu0 0
      %1405 = vmatmul.mubr.bf16.gmra.mrb[0].mxu0 %v618
      %v1406 = vpop.f32.mrb[0].mxu0
      %v1407 = vadd.f32 %v1342, %v1406
      %v1408 = vpop.f32.mrb[0].mxu0
      %v1409 = vpop.f32.mrb[0].mxu0
      %v1410 = vadd.f32 %v1345, %v1409
      %v1411 = vpop.f32.mrb[0].mxu0
      %1412 = vmatprep.mubr.bf16.mxu0 0
      %1413 = vmatmul.mubr.bf16.gmra.mrb[0].mxu0 %v627
      %v1414 = vpop.f32.mrb[0].mxu0
      %v1415 = vadd.f32 %v1350, %v1414
      %v1416 = vpop.f32.mrb[0].mxu0
      %v1417 = vpop.f32.mrb[0].mxu0
      %v1418 = vadd.f32 %v1353, %v1417
      %v1419 = vpop.f32.mrb[0].mxu0
      %1420 = vdwg.mxu0
      %v1421 = vld [vmem:[%s277] sm:$0xf]
      %v1422 = vld [vmem:[%s277 + $0x4] sm:$0xf]
      %v1423 = vld [vmem:[%s277 + $0x8] sm:$0xf]
      %v1424 = vld [vmem:[%s277 + $0xc] sm:$0xf]
      %v1425 = vld [vmem:[%s277 + $0x10] sm:$0xf]
      %v1426 = vld [vmem:[%s277 + $0x14] sm:$0xf]
      %v1427 = vld [vmem:[%s277 + $0x18] sm:$0xf]
      %v1428 = vld [vmem:[%s277 + $0x1c] sm:$0xf]
      %v1429 = vunpack.c.l.bf16 %v1421
      %v1430 = vunpack.c.l.bf16 %v1422
      %v1431 = vunpack.c.l.bf16 %v1423
      %v1432 = vunpack.c.l.bf16 %v1424
      %v1433 = vunpack.c.l.bf16 %v1425
      %v1434 = vunpack.c.l.bf16 %v1426
      %v1435 = vunpack.c.l.bf16 %v1427
      %v1436 = vunpack.c.l.bf16 %v1428
      %v1437 = vadd.f32 %v1391, %v1429
      %v1438 = vadd.f32 %v1394, %v1430
      %v1439 = vadd.f32 %v1399, %v1431
      %v1440 = vadd.f32 %v1402, %v1432
      %v1441 = vadd.f32 %v1407, %v1433
      %v1442 = vadd.f32 %v1410, %v1434
      %v1443 = vadd.f32 %v1415, %v1435
      %v1444 = vadd.f32 %v1418, %v1436
      %v1445 = vmax.f32 %v1437, 0.0
      %v1446 = vmax.f32 %v1438, 0.0
      %v1447 = vmax.f32 %v1439, 0.0
      %v1448 = vmax.f32 %v1440, 0.0
      %v1449 = vmax.f32 %v1441, 0.0
      %v1450 = vmax.f32 %v1442, 0.0
      %v1451 = vmax.f32 %v1443, 0.0
      %v1452 = vmax.f32 %v1444, 0.0
      %v1453 = vpack.c.bf16 %v1446, %v1445
      %v1454 = vpack.c.bf16 %v1448, %v1447
      %v1455 = vpack.c.bf16 %v1450, %v1449
      %v1456 = vpack.c.bf16 %v1452, %v1451
      %v1461 = vunpack.c.l.b16 %v1453
      %v1462 = vunpack.c.h.b16 %v1453
      %v1463 = vunpack.c.l.b16 %v1454
      %v1464 = vunpack.c.h.b16 %v1454
      %v1465 = vunpack.c.l.b16 %v1455
      %v1466 = vunpack.c.h.b16 %v1455
      %v1467 = vunpack.c.l.b16 %v1456
      %v1468 = vunpack.c.h.b16 %v1456
      %v1469 = vpack.c.b16 %v1461, %v1461
      %v1470 = vpack.c.b16 %v1462, %v1462
      %v1471 = vpack.c.b16 %v1463, %v1463
      %v1472 = vpack.c.b16 %v1464, %v1464
      %v1473 = vpack.c.b16 %v1465, %v1465
      %v1474 = vpack.c.b16 %v1466, %v1466
      %v1475 = vpack.c.b16 %v1467, %v1467
      %v1476 = vpack.c.b16 %v1468, %v1468
      %1485 = vst [vmem:[%s286] sm:$0xf] %v1469
      %1486 = vst [vmem:[%s286 + $0x4] sm:$0xf] %v1470
      %1487 = vst [vmem:[%s286 + $0x8] sm:$0xf] %v1471
      %1488 = vst [vmem:[%s286 + $0xc] sm:$0xf] %v1472
      %1489 = vst [vmem:[%s286 + $0x10] sm:$0xf] %v1473
      %1490 = vst [vmem:[%s286 + $0x14] sm:$0xf] %v1474
      %1491 = vst [vmem:[%s286 + $0x18] sm:$0xf] %v1475
      %1492 = vst [vmem:[%s286 + $0x1c] sm:$0xf] %v1476
      %s1493 = smul.u32 8, %s19
      %p1494 = scmp.lt.s32.totalorder %s1493, 15
      %s1495 = scalar_select %p1494, %s1493, 15
      %p1496 = scmp.lt.s32.totalorder %s20, 0
      %s1497 = scalar_select %p1496, %s20, 0
      %s1498 = sadd.s32 %s1497, %s1495
      %s1499 = smul.addr %s1498, 4
      %s1500 = scalar_lea.vmem %s4, %s1499
      // Predicated region
      $region37: #{_lambda_.7} parent=35 // pred_check
        %p1501 = pneg %p153
      $region38: #{_lambda_.7} parent=35 // pred_check_branch
        %1503 = sbr.rel (%p1501) target = $region40
      $region39: #{_lambda_.7} parent=35 // pred_region
        %s1504 = smul.u32 8, %s19
      $region40: #{_lambda_.7} parent=35 // pred_fallthru
        _
    $region36: #{_lambda_.7} parent=5 // pred_fallthru
      _
    %p1505 = scmp.le.s32.totalorder 2, %s10
    // Predicated region
    $region41: #{_lambda_.7} parent=5 // pred_check
      %p1506 = pneg %p1505
    $region42: #{_lambda_.7} parent=5 // pred_check_branch
      %1508 = sbr.rel (%p1506) target = $region44
    $region43: #{_lambda_.7} parent=5 // pred_region
      %s1509 = ssub.s32 %s10, 2
      // Predicated region
      $region45: #{_lambda_.7} parent=43 // pred_check
        %p1510 = pneg %p159
      $region46: #{_lambda_.7} parent=43 // pred_check_branch
        %1512 = sbr.rel (%p1510) target = $region48
      $region47: #{_lambda_.7} parent=43 // pred_region
        %s1513 = smul.u32 8, %s21
        %p1514 = scmp.lt.s32.totalorder %s1513, 15
        %s1515 = scalar_select %p1514, %s1513, 15
        %p1516 = scmp.lt.s32.totalorder %s22, 0
        %s1517 = scalar_select %p1516, %s22, 0
        %s1518 = sadd.s32 %s1517, %s1515
        %s1519 = smul.addr %s1518, 4
        %s1520 = scalar_lea.vmem %s4, %s1519
      $region48: #{_lambda_.7} parent=43 // pred_fallthru
        _
    $region44: #{_lambda_.7} parent=5 // pred_fallthru
      _
  $region6: #{_lambda_.7} parent=0 // loop_footer
    %s14 = sadd.s32 1, %s10
  $region7: #{_lambda_.7} parent=0 // loop_footer_branch
    %9 = sbr.rel target = $region3
  $region8: #{_lambda_.7} parent=0 // loop_exit
    _

</llo_original>
